<compile_context>
chip_gen: v7x
topology: tpu7x:2x2x1
jax: 0.10.0
libtpu: 0.0.40
codegen_flags: <defaults>
</compile_context>

<pallas_src>
import functools

import jax
import jax.numpy as jnp
from jax.experimental import pallas as pl
from jax.experimental.pallas import tpu as pltpu


def _mha_kernel(x_ref, wqkv_ref, wout_ref, bout_ref, out_ref, attn_ref=None,
                *, num_heads, head_dim):
    # x_ref:    (b_blk, N, D_in)
    # wqkv_ref: (D_in, 3*inner)   lane-dense, softmax scale folded into Q cols
    # wout_ref: (inner, D_in)     lane-dense (inner = H*Dh = 128)
    # bout_ref: (1, D_in)
    # out_ref:  (b_blk, N, D_in)
    # attn_ref: (b_blk, H, N, N)  only present when keep_attn=True
    b_blk, n, d_in = x_ref.shape
    inner = num_heads * head_dim

    # --- Fused QKV projection: one lane-dense MXU pass over all rows. ---
    x2d = x_ref[...].reshape(b_blk * n, d_in)                    # (b*n, D_in)
    qkv = jnp.dot(x2d, wqkv_ref[...],
                  preferred_element_type=jnp.float32)            # (b*n, 3*inner)

    attn_list = []
    o_list = []
    # Static loop over heads only (H is a small, fixed module hyper-parameter).
    for h in range(num_heads):
        q_off = h * head_dim
        k_off = inner + h * head_dim
        v_off = 2 * inner + h * head_dim
        q_h = qkv[:, q_off:q_off + head_dim].reshape(b_blk, n, head_dim)
        k_h = qkv[:, k_off:k_off + head_dim].reshape(b_blk, n, head_dim)
        v_h = qkv[:, v_off:v_off + head_dim].reshape(b_blk, n, head_dim)

        # sim = (q * scale) @ k^T, batched over the batch dim (scale is
        # pre-folded into the Q weight columns).
        sim = jnp.einsum("bid,bjd->bij", q_h, k_h,
                         preferred_element_type=jnp.float32)     # (b, n, n)

        # Numerically-stable softmax along the last axis (exact reciprocal:
        # attention weights are a user-visible output).
        sim_max = jnp.max(sim, axis=-1, keepdims=True)
        p = jnp.exp(sim - sim_max)
        denom = jnp.sum(p, axis=-1, keepdims=True)
        attn = p * pl.reciprocal(denom, approx=False)

        if attn_ref is not None:
            attn_list.append(attn)

        o_list.append(jnp.einsum("bij,bjd->bid", attn, v_h,
                                 preferred_element_type=jnp.float32))

    if attn_ref is not None:
        # One full-block store instead of 8 strided per-head stores.
        attn_ref[...] = jnp.stack(attn_list, axis=1).astype(attn_ref.dtype)

    # --- Output projection: lane-concat heads, one 128-deep MXU pass. ---
    o_cat = jnp.concatenate(o_list, axis=-1)                     # (b, n, inner)
    o2d = o_cat.reshape(b_blk * n, inner)
    out2d = jnp.dot(o2d, wout_ref[...],
                    preferred_element_type=jnp.float32) + bout_ref[...]
    out_ref[...] = out2d.reshape(b_blk, n, d_in).astype(out_ref.dtype)


def multi_headed_attention(x, w_qkv, w_out, b_out, *, num_heads, head_dim,
                           keep_attn=True, num_batch_blocks=1,
                           vmem_limit_bytes=None):
    """x: (B, N, D_in). w_qkv: (D_in, 3*inner), w_out: (inner, D_in), b_out: (D_in,).

    Returns (out, attn) with attn=None when keep_attn=False.

    num_batch_blocks=1 is best on v5e/v6e (single TensorCore) and for tiny B
    everywhere; on v7x use 2 only when per-core work exceeds the ~0.35 us
    per-grid-step overhead (roughly B >= 32-64 at these N/D) so the "parallel"
    batch axis shards across its two TensorCores.  For large N with
    keep_attn=True on v7x (64 MiB VMEM), shrink b_blk via num_batch_blocks and
    set vmem_limit_bytes explicitly.
    """
    B, N, D_in = x.shape
    inner = num_heads * head_dim
    assert w_qkv.shape == (D_in, 3 * inner)
    assert w_out.shape == (inner, D_in)
    assert B % num_batch_blocks == 0
    b_blk = B // num_batch_blocks

    # Fold the softmax scale into the Q columns (exact in f32).
    scale = float(head_dim) ** -0.5
    w_qkv_scaled = w_qkv.at[:, :inner].multiply(scale)
    b_out2d = b_out.reshape(1, D_in)

    kernel = functools.partial(_mha_kernel, num_heads=num_heads,
                               head_dim=head_dim)

    in_specs = [
        pl.BlockSpec((b_blk, N, D_in), lambda g: (g, 0, 0)),
        pl.BlockSpec((D_in, 3 * inner), lambda g: (0, 0)),
        pl.BlockSpec((inner, D_in), lambda g: (0, 0)),
        pl.BlockSpec((1, D_in), lambda g: (0, 0)),
    ]
    if keep_attn:
        out_shape = (jax.ShapeDtypeStruct((B, N, D_in), x.dtype),
                     jax.ShapeDtypeStruct((B, num_heads, N, N), jnp.float32))
        out_specs = (pl.BlockSpec((b_blk, N, D_in), lambda g: (g, 0, 0)),
                     pl.BlockSpec((b_blk, num_heads, N, N),
                                  lambda g: (g, 0, 0, 0)))
    else:
        out_shape = jax.ShapeDtypeStruct((B, N, D_in), x.dtype)
        out_specs = pl.BlockSpec((b_blk, N, D_in), lambda g: (g, 0, 0))

    compiler_kwargs = dict(dimension_semantics=("parallel",))
    if vmem_limit_bytes is not None:
        compiler_kwargs["vmem_limit_bytes"] = vmem_limit_bytes

    grid_spec = pltpu.PrefetchScalarGridSpec(
        num_scalar_prefetch=0,
        grid=(num_batch_blocks,),
        in_specs=in_specs,
        out_specs=out_specs,
    )

    result = pl.pallas_call(
        kernel,
        out_shape=out_shape,
        grid_spec=grid_spec,
        compiler_params=pltpu.CompilerParams(**compiler_kwargs),
    )(x, w_qkv_scaled, w_out, b_out2d)

    if keep_attn:
        out, attn = result
        return out, attn
    return result, None


def _reference(x, w_qkv, w_out, b_out, *, num_heads, head_dim):
    """Pure-JAX reference mirroring the PyTorch forward (eval mode)."""
    B, N, D_in = x.shape
    inner = num_heads * head_dim
    scale = float(head_dim) ** -0.5
    qkv = jnp.einsum("bnd,de->bne", x, w_qkv)
    q, k, v = jnp.split(qkv, 3, axis=-1)

    def to_heads(t):  # b n (h d) -> b h n d
        return t.reshape(B, N, num_heads, head_dim).transpose(0, 2, 1, 3)

    q, k, v = map(to_heads, (q, k, v))
    sim = jnp.einsum("bhid,bhjd->bhij", q, k) * scale
    attn = jax.nn.softmax(sim, axis=-1)
    out = jnp.einsum("bhij,bhjd->bhid", attn, v)
    out = out.transpose(0, 2, 1, 3).reshape(B, N, inner)   # b h n d -> b n (h d)
    out = jnp.einsum("bne,ed->bnd", out, w_out) + b_out
    return out, attn


if __name__ == "__main__":
    # Module config: input_dim=32, num_heads=8, head_dim=16 -> inner_dim=128
    B, N, D_IN = 2, 8, 32
    NUM_HEADS, HEAD_DIM = 8, 16
    INNER = NUM_HEADS * HEAD_DIM

    key = jax.random.PRNGKey(0)
    kx, kq, ko, kb = jax.random.split(key, 4)
    x = jax.random.normal(kx, (B, N, D_IN), dtype=jnp.float32)
    # Deterministic synthetic parameters (Linear weights stored pre-transposed).
    w_qkv = jax.random.normal(kq, (D_IN, 3 * INNER), dtype=jnp.float32) * 0.05
    w_out = jax.random.normal(ko, (INNER, D_IN), dtype=jnp.float32) * 0.05
    b_out = jax.random.normal(kb, (D_IN,), dtype=jnp.float32) * 0.05

    out, attn = multi_headed_attention(
        x, w_qkv, w_out, b_out, num_heads=NUM_HEADS, head_dim=HEAD_DIM,
        keep_attn=True)
    out = jax.block_until_ready(out)
    attn = jax.block_until_ready(attn)

    ref_out, ref_attn = _reference(
        x, w_qkv, w_out, b_out, num_heads=NUM_HEADS, head_dim=HEAD_DIM)

    assert out.shape == (B, N, D_IN)
    assert attn.shape == (B, NUM_HEADS, N, N)
    assert jnp.allclose(out, ref_out, atol=1e-4, rtol=1e-4)
    assert jnp.allclose(attn, ref_attn, atol=1e-4, rtol=1e-4)

    # keep_attn=False path: no attention-weights output allocated or written.
    out_only, no_attn = multi_headed_attention(
        x, w_qkv, w_out, b_out, num_heads=NUM_HEADS, head_dim=HEAD_DIM,
        keep_attn=False)
    out_only = jax.block_until_ready(out_only)
    assert no_attn is None
    assert jnp.allclose(out_only, ref_out, atol=1e-4, rtol=1e-4)

    print("KERNEL_OK")
</pallas_src>

<mosaic_0001>
module attributes {stable_mosaic.version = 11 : i64} {
  func.func @_mha_kernel(%arg0: i32, %arg1: memref<2x8x32xf32, #tpu.memory_space<vmem>>, %arg2: memref<32x384xf32, #tpu.memory_space<vmem>>, %arg3: memref<128x32xf32, #tpu.memory_space<vmem>>, %arg4: memref<1x32xf32, #tpu.memory_space<vmem>>, %arg5: memref<2x8x32xf32, #tpu.memory_space<vmem>>, %arg6: memref<2x8x8x8xf32, #tpu.memory_space<vmem>>) attributes {dimension_semantics = [#tpu.dimension_semantics<parallel>], iteration_bounds = array<i64: 1>, scalar_prefetch = 0 : i64, scratch_operands = 0 : i64, tpu.core_type = #tpu.core_type<tc>, window_params = [{transform_indices = @transform_0, window_bounds = array<i64: 2, 8, 32>}, {pipeline_mode = #tpu.pipeline_mode<synchronous>, transform_indices = @transform_1, window_bounds = array<i64: 32, 384>}, {pipeline_mode = #tpu.pipeline_mode<synchronous>, transform_indices = @transform_2, window_bounds = array<i64: 128, 32>}, {pipeline_mode = #tpu.pipeline_mode<synchronous>, transform_indices = @transform_3, window_bounds = array<i64: 1, 32>}, {transform_indices = @transform_4, window_bounds = array<i64: 2, 8, 32>}, {transform_indices = @transform_5, window_bounds = array<i64: 2, 8, 8, 8>}]} {
    %c0 = arith.constant 0 : index
    %c0_0 = arith.constant 0 : index
    %c0_1 = arith.constant 0 : index
    %0 = vector.load %arg1[%c0, %c0_0, %c0_1] : memref<2x8x32xf32, #tpu.memory_space<vmem>>, vector<2x8x32xf32>
    %1 = vector.shape_cast %0 : vector<2x8x32xf32> to vector<16x32xf32>
    %c0_2 = arith.constant 0 : index
    %c0_3 = arith.constant 0 : index
    %2 = vector.load %arg2[%c0_2, %c0_3] : memref<32x384xf32, #tpu.memory_space<vmem>>, vector<32x384xf32>
    %cst = arith.constant dense<0.000000e+00> : vector<16x384xf32>
    %3 = tpu.matmul %1, %2, %cst {dimension_numbers = #tpu.dot_dimension_numbers<[1], [0], [0], [1], [0, 0, 1, 1], [], []>} : vector<16x32xf32>, vector<32x384xf32>, vector<16x384xf32> -> vector<16x384xf32>
    %4 = vector.extract_strided_slice %3 {offsets = [0, 0], sizes = [16, 16], strides = [1, 1]} : vector<16x384xf32> to vector<16x16xf32>
    %5 = vector.shape_cast %4 : vector<16x16xf32> to vector<2x8x16xf32>
    %6 = vector.extract_strided_slice %3 {offsets = [0, 128], sizes = [16, 16], strides = [1, 1]} : vector<16x384xf32> to vector<16x16xf32>
    %7 = vector.shape_cast %6 : vector<16x16xf32> to vector<2x8x16xf32>
    %8 = vector.extract_strided_slice %3 {offsets = [0, 256], sizes = [16, 16], strides = [1, 1]} : vector<16x384xf32> to vector<16x16xf32>
    %9 = vector.shape_cast %8 : vector<16x16xf32> to vector<2x8x16xf32>
    "tpu.trace_start"() <{level = 10 : i32, message = "bid,bjd->bij"}> : () -> ()
    %cst_4 = arith.constant dense<0.000000e+00> : vector<2x8x8xf32>
    %10 = tpu.matmul %5, %7, %cst_4 {dimension_numbers = #tpu.dot_dimension_numbers<[2], [2], [1], [1], [0, 0, 0, 1, 1, 1], [0], [0]>} : vector<2x8x16xf32>, vector<2x8x16xf32>, vector<2x8x8xf32> -> vector<2x8x8xf32>
    "tpu.trace_stop"() : () -> ()
    %cst_5 = arith.constant dense<0xFF800000> : vector<2x8xf32>
    %11 = vector.multi_reduction <maximumf>, %10, %cst_5 [2] : vector<2x8x8xf32> to vector<2x8xf32>
    %12 = vector.shape_cast %11 : vector<2x8xf32> to vector<2x8x1xf32>
    %13 = vector.broadcast %12 : vector<2x8x1xf32> to vector<2x8x8xf32>
    %14 = arith.subf %10, %13 : vector<2x8x8xf32>
    %15 = math.exp %14 : vector<2x8x8xf32>
    %cst_6 = arith.constant dense<0.000000e+00> : vector<2x8xf32>
    %16 = vector.multi_reduction <add>, %15, %cst_6 [2] : vector<2x8x8xf32> to vector<2x8xf32>
    %17 = vector.shape_cast %16 : vector<2x8xf32> to vector<2x8x1xf32>
    %18 = tpu.reciprocal %17 : vector<2x8x1xf32> -> vector<2x8x1xf32>
    %19 = vector.broadcast %18 : vector<2x8x1xf32> to vector<2x8x8xf32>
    %20 = arith.mulf %15, %19 : vector<2x8x8xf32>
    "tpu.trace_start"() <{level = 10 : i32, message = "bij,bjd->bid"}> : () -> ()
    %cst_7 = arith.constant dense<0.000000e+00> : vector<2x8x16xf32>
    %21 = tpu.matmul %20, %9, %cst_7 {dimension_numbers = #tpu.dot_dimension_numbers<[2], [1], [1], [2], [0, 0, 0, 1, 1, 2], [0], [0]>} : vector<2x8x8xf32>, vector<2x8x16xf32>, vector<2x8x16xf32> -> vector<2x8x16xf32>
    "tpu.trace_stop"() : () -> ()
    %22 = vector.extract_strided_slice %3 {offsets = [0, 16], sizes = [16, 16], strides = [1, 1]} : vector<16x384xf32> to vector<16x16xf32>
    %23 = vector.shape_cast %22 : vector<16x16xf32> to vector<2x8x16xf32>
    %24 = vector.extract_strided_slice %3 {offsets = [0, 144], sizes = [16, 16], strides = [1, 1]} : vector<16x384xf32> to vector<16x16xf32>
    %25 = vector.shape_cast %24 : vector<16x16xf32> to vector<2x8x16xf32>
    %26 = vector.extract_strided_slice %3 {offsets = [0, 272], sizes = [16, 16], strides = [1, 1]} : vector<16x384xf32> to vector<16x16xf32>
    %27 = vector.shape_cast %26 : vector<16x16xf32> to vector<2x8x16xf32>
    "tpu.trace_start"() <{level = 10 : i32, message = "bid,bjd->bij"}> : () -> ()
    %cst_8 = arith.constant dense<0.000000e+00> : vector<2x8x8xf32>
    %28 = tpu.matmul %23, %25, %cst_8 {dimension_numbers = #tpu.dot_dimension_numbers<[2], [2], [1], [1], [0, 0, 0, 1, 1, 1], [0], [0]>} : vector<2x8x16xf32>, vector<2x8x16xf32>, vector<2x8x8xf32> -> vector<2x8x8xf32>
    "tpu.trace_stop"() : () -> ()
    %cst_9 = arith.constant dense<0xFF800000> : vector<2x8xf32>
    %29 = vector.multi_reduction <maximumf>, %28, %cst_9 [2] : vector<2x8x8xf32> to vector<2x8xf32>
    %30 = vector.shape_cast %29 : vector<2x8xf32> to vector<2x8x1xf32>
    %31 = vector.broadcast %30 : vector<2x8x1xf32> to vector<2x8x8xf32>
    %32 = arith.subf %28, %31 : vector<2x8x8xf32>
    %33 = math.exp %32 : vector<2x8x8xf32>
    %cst_10 = arith.constant dense<0.000000e+00> : vector<2x8xf32>
    %34 = vector.multi_reduction <add>, %33, %cst_10 [2] : vector<2x8x8xf32> to vector<2x8xf32>
    %35 = vector.shape_cast %34 : vector<2x8xf32> to vector<2x8x1xf32>
    %36 = tpu.reciprocal %35 : vector<2x8x1xf32> -> vector<2x8x1xf32>
    %37 = vector.broadcast %36 : vector<2x8x1xf32> to vector<2x8x8xf32>
    %38 = arith.mulf %33, %37 : vector<2x8x8xf32>
    "tpu.trace_start"() <{level = 10 : i32, message = "bij,bjd->bid"}> : () -> ()
    %cst_11 = arith.constant dense<0.000000e+00> : vector<2x8x16xf32>
    %39 = tpu.matmul %38, %27, %cst_11 {dimension_numbers = #tpu.dot_dimension_numbers<[2], [1], [1], [2], [0, 0, 0, 1, 1, 2], [0], [0]>} : vector<2x8x8xf32>, vector<2x8x16xf32>, vector<2x8x16xf32> -> vector<2x8x16xf32>
    "tpu.trace_stop"() : () -> ()
    %40 = vector.extract_strided_slice %3 {offsets = [0, 32], sizes = [16, 16], strides = [1, 1]} : vector<16x384xf32> to vector<16x16xf32>
    %41 = vector.shape_cast %40 : vector<16x16xf32> to vector<2x8x16xf32>
    %42 = vector.extract_strided_slice %3 {offsets = [0, 160], sizes = [16, 16], strides = [1, 1]} : vector<16x384xf32> to vector<16x16xf32>
    %43 = vector.shape_cast %42 : vector<16x16xf32> to vector<2x8x16xf32>
    %44 = vector.extract_strided_slice %3 {offsets = [0, 288], sizes = [16, 16], strides = [1, 1]} : vector<16x384xf32> to vector<16x16xf32>
    %45 = vector.shape_cast %44 : vector<16x16xf32> to vector<2x8x16xf32>
    "tpu.trace_start"() <{level = 10 : i32, message = "bid,bjd->bij"}> : () -> ()
    %cst_12 = arith.constant dense<0.000000e+00> : vector<2x8x8xf32>
    %46 = tpu.matmul %41, %43, %cst_12 {dimension_numbers = #tpu.dot_dimension_numbers<[2], [2], [1], [1], [0, 0, 0, 1, 1, 1], [0], [0]>} : vector<2x8x16xf32>, vector<2x8x16xf32>, vector<2x8x8xf32> -> vector<2x8x8xf32>
    "tpu.trace_stop"() : () -> ()
    %cst_13 = arith.constant dense<0xFF800000> : vector<2x8xf32>
    %47 = vector.multi_reduction <maximumf>, %46, %cst_13 [2] : vector<2x8x8xf32> to vector<2x8xf32>
    %48 = vector.shape_cast %47 : vector<2x8xf32> to vector<2x8x1xf32>
    %49 = vector.broadcast %48 : vector<2x8x1xf32> to vector<2x8x8xf32>
    %50 = arith.subf %46, %49 : vector<2x8x8xf32>
    %51 = math.exp %50 : vector<2x8x8xf32>
    %cst_14 = arith.constant dense<0.000000e+00> : vector<2x8xf32>
    %52 = vector.multi_reduction <add>, %51, %cst_14 [2] : vector<2x8x8xf32> to vector<2x8xf32>
    %53 = vector.shape_cast %52 : vector<2x8xf32> to vector<2x8x1xf32>
    %54 = tpu.reciprocal %53 : vector<2x8x1xf32> -> vector<2x8x1xf32>
    %55 = vector.broadcast %54 : vector<2x8x1xf32> to vector<2x8x8xf32>
    %56 = arith.mulf %51, %55 : vector<2x8x8xf32>
    "tpu.trace_start"() <{level = 10 : i32, message = "bij,bjd->bid"}> : () -> ()
    %cst_15 = arith.constant dense<0.000000e+00> : vector<2x8x16xf32>
    %57 = tpu.matmul %56, %45, %cst_15 {dimension_numbers = #tpu.dot_dimension_numbers<[2], [1], [1], [2], [0, 0, 0, 1, 1, 2], [0], [0]>} : vector<2x8x8xf32>, vector<2x8x16xf32>, vector<2x8x16xf32> -> vector<2x8x16xf32>
    "tpu.trace_stop"() : () -> ()
    %58 = vector.extract_strided_slice %3 {offsets = [0, 48], sizes = [16, 16], strides = [1, 1]} : vector<16x384xf32> to vector<16x16xf32>
    %59 = vector.shape_cast %58 : vector<16x16xf32> to vector<2x8x16xf32>
    %60 = vector.extract_strided_slice %3 {offsets = [0, 176], sizes = [16, 16], strides = [1, 1]} : vector<16x384xf32> to vector<16x16xf32>
    %61 = vector.shape_cast %60 : vector<16x16xf32> to vector<2x8x16xf32>
    %62 = vector.extract_strided_slice %3 {offsets = [0, 304], sizes = [16, 16], strides = [1, 1]} : vector<16x384xf32> to vector<16x16xf32>
    %63 = vector.shape_cast %62 : vector<16x16xf32> to vector<2x8x16xf32>
    "tpu.trace_start"() <{level = 10 : i32, message = "bid,bjd->bij"}> : () -> ()
    %cst_16 = arith.constant dense<0.000000e+00> : vector<2x8x8xf32>
    %64 = tpu.matmul %59, %61, %cst_16 {dimension_numbers = #tpu.dot_dimension_numbers<[2], [2], [1], [1], [0, 0, 0, 1, 1, 1], [0], [0]>} : vector<2x8x16xf32>, vector<2x8x16xf32>, vector<2x8x8xf32> -> vector<2x8x8xf32>
    "tpu.trace_stop"() : () -> ()
    %cst_17 = arith.constant dense<0xFF800000> : vector<2x8xf32>
    %65 = vector.multi_reduction <maximumf>, %64, %cst_17 [2] : vector<2x8x8xf32> to vector<2x8xf32>
    %66 = vector.shape_cast %65 : vector<2x8xf32> to vector<2x8x1xf32>
    %67 = vector.broadcast %66 : vector<2x8x1xf32> to vector<2x8x8xf32>
    %68 = arith.subf %64, %67 : vector<2x8x8xf32>
    %69 = math.exp %68 : vector<2x8x8xf32>
    %cst_18 = arith.constant dense<0.000000e+00> : vector<2x8xf32>
    %70 = vector.multi_reduction <add>, %69, %cst_18 [2] : vector<2x8x8xf32> to vector<2x8xf32>
    %71 = vector.shape_cast %70 : vector<2x8xf32> to vector<2x8x1xf32>
    %72 = tpu.reciprocal %71 : vector<2x8x1xf32> -> vector<2x8x1xf32>
    %73 = vector.broadcast %72 : vector<2x8x1xf32> to vector<2x8x8xf32>
    %74 = arith.mulf %69, %73 : vector<2x8x8xf32>
    "tpu.trace_start"() <{level = 10 : i32, message = "bij,bjd->bid"}> : () -> ()
    %cst_19 = arith.constant dense<0.000000e+00> : vector<2x8x16xf32>
    %75 = tpu.matmul %74, %63, %cst_19 {dimension_numbers = #tpu.dot_dimension_numbers<[2], [1], [1], [2], [0, 0, 0, 1, 1, 2], [0], [0]>} : vector<2x8x8xf32>, vector<2x8x16xf32>, vector<2x8x16xf32> -> vector<2x8x16xf32>
    "tpu.trace_stop"() : () -> ()
    %76 = vector.extract_strided_slice %3 {offsets = [0, 64], sizes = [16, 16], strides = [1, 1]} : vector<16x384xf32> to vector<16x16xf32>
    %77 = vector.shape_cast %76 : vector<16x16xf32> to vector<2x8x16xf32>
    %78 = vector.extract_strided_slice %3 {offsets = [0, 192], sizes = [16, 16], strides = [1, 1]} : vector<16x384xf32> to vector<16x16xf32>
    %79 = vector.shape_cast %78 : vector<16x16xf32> to vector<2x8x16xf32>
    %80 = vector.extract_strided_slice %3 {offsets = [0, 320], sizes = [16, 16], strides = [1, 1]} : vector<16x384xf32> to vector<16x16xf32>
    %81 = vector.shape_cast %80 : vector<16x16xf32> to vector<2x8x16xf32>
    "tpu.trace_start"() <{level = 10 : i32, message = "bid,bjd->bij"}> : () -> ()
    %cst_20 = arith.constant dense<0.000000e+00> : vector<2x8x8xf32>
    %82 = tpu.matmul %77, %79, %cst_20 {dimension_numbers = #tpu.dot_dimension_numbers<[2], [2], [1], [1], [0, 0, 0, 1, 1, 1], [0], [0]>} : vector<2x8x16xf32>, vector<2x8x16xf32>, vector<2x8x8xf32> -> vector<2x8x8xf32>
    "tpu.trace_stop"() : () -> ()
    %cst_21 = arith.constant dense<0xFF800000> : vector<2x8xf32>
    %83 = vector.multi_reduction <maximumf>, %82, %cst_21 [2] : vector<2x8x8xf32> to vector<2x8xf32>
    %84 = vector.shape_cast %83 : vector<2x8xf32> to vector<2x8x1xf32>
    %85 = vector.broadcast %84 : vector<2x8x1xf32> to vector<2x8x8xf32>
    %86 = arith.subf %82, %85 : vector<2x8x8xf32>
    %87 = math.exp %86 : vector<2x8x8xf32>
    %cst_22 = arith.constant dense<0.000000e+00> : vector<2x8xf32>
    %88 = vector.multi_reduction <add>, %87, %cst_22 [2] : vector<2x8x8xf32> to vector<2x8xf32>
    %89 = vector.shape_cast %88 : vector<2x8xf32> to vector<2x8x1xf32>
    %90 = tpu.reciprocal %89 : vector<2x8x1xf32> -> vector<2x8x1xf32>
    %91 = vector.broadcast %90 : vector<2x8x1xf32> to vector<2x8x8xf32>
    %92 = arith.mulf %87, %91 : vector<2x8x8xf32>
    "tpu.trace_start"() <{level = 10 : i32, message = "bij,bjd->bid"}> : () -> ()
    %cst_23 = arith.constant dense<0.000000e+00> : vector<2x8x16xf32>
    %93 = tpu.matmul %92, %81, %cst_23 {dimension_numbers = #tpu.dot_dimension_numbers<[2], [1], [1], [2], [0, 0, 0, 1, 1, 2], [0], [0]>} : vector<2x8x8xf32>, vector<2x8x16xf32>, vector<2x8x16xf32> -> vector<2x8x16xf32>
    "tpu.trace_stop"() : () -> ()
    %94 = vector.extract_strided_slice %3 {offsets = [0, 80], sizes = [16, 16], strides = [1, 1]} : vector<16x384xf32> to vector<16x16xf32>
    %95 = vector.shape_cast %94 : vector<16x16xf32> to vector<2x8x16xf32>
    %96 = vector.extract_strided_slice %3 {offsets = [0, 208], sizes = [16, 16], strides = [1, 1]} : vector<16x384xf32> to vector<16x16xf32>
    %97 = vector.shape_cast %96 : vector<16x16xf32> to vector<2x8x16xf32>
    %98 = vector.extract_strided_slice %3 {offsets = [0, 336], sizes = [16, 16], strides = [1, 1]} : vector<16x384xf32> to vector<16x16xf32>
    %99 = vector.shape_cast %98 : vector<16x16xf32> to vector<2x8x16xf32>
    "tpu.trace_start"() <{level = 10 : i32, message = "bid,bjd->bij"}> : () -> ()
    %cst_24 = arith.constant dense<0.000000e+00> : vector<2x8x8xf32>
    %100 = tpu.matmul %95, %97, %cst_24 {dimension_numbers = #tpu.dot_dimension_numbers<[2], [2], [1], [1], [0, 0, 0, 1, 1, 1], [0], [0]>} : vector<2x8x16xf32>, vector<2x8x16xf32>, vector<2x8x8xf32> -> vector<2x8x8xf32>
    "tpu.trace_stop"() : () -> ()
    %cst_25 = arith.constant dense<0xFF800000> : vector<2x8xf32>
    %101 = vector.multi_reduction <maximumf>, %100, %cst_25 [2] : vector<2x8x8xf32> to vector<2x8xf32>
    %102 = vector.shape_cast %101 : vector<2x8xf32> to vector<2x8x1xf32>
    %103 = vector.broadcast %102 : vector<2x8x1xf32> to vector<2x8x8xf32>
    %104 = arith.subf %100, %103 : vector<2x8x8xf32>
    %105 = math.exp %104 : vector<2x8x8xf32>
    %cst_26 = arith.constant dense<0.000000e+00> : vector<2x8xf32>
    %106 = vector.multi_reduction <add>, %105, %cst_26 [2] : vector<2x8x8xf32> to vector<2x8xf32>
    %107 = vector.shape_cast %106 : vector<2x8xf32> to vector<2x8x1xf32>
    %108 = tpu.reciprocal %107 : vector<2x8x1xf32> -> vector<2x8x1xf32>
    %109 = vector.broadcast %108 : vector<2x8x1xf32> to vector<2x8x8xf32>
    %110 = arith.mulf %105, %109 : vector<2x8x8xf32>
    "tpu.trace_start"() <{level = 10 : i32, message = "bij,bjd->bid"}> : () -> ()
    %cst_27 = arith.constant dense<0.000000e+00> : vector<2x8x16xf32>
    %111 = tpu.matmul %110, %99, %cst_27 {dimension_numbers = #tpu.dot_dimension_numbers<[2], [1], [1], [2], [0, 0, 0, 1, 1, 2], [0], [0]>} : vector<2x8x8xf32>, vector<2x8x16xf32>, vector<2x8x16xf32> -> vector<2x8x16xf32>
    "tpu.trace_stop"() : () -> ()
    %112 = vector.extract_strided_slice %3 {offsets = [0, 96], sizes = [16, 16], strides = [1, 1]} : vector<16x384xf32> to vector<16x16xf32>
    %113 = vector.shape_cast %112 : vector<16x16xf32> to vector<2x8x16xf32>
    %114 = vector.extract_strided_slice %3 {offsets = [0, 224], sizes = [16, 16], strides = [1, 1]} : vector<16x384xf32> to vector<16x16xf32>
    %115 = vector.shape_cast %114 : vector<16x16xf32> to vector<2x8x16xf32>
    %116 = vector.extract_strided_slice %3 {offsets = [0, 352], sizes = [16, 16], strides = [1, 1]} : vector<16x384xf32> to vector<16x16xf32>
    %117 = vector.shape_cast %116 : vector<16x16xf32> to vector<2x8x16xf32>
    "tpu.trace_start"() <{level = 10 : i32, message = "bid,bjd->bij"}> : () -> ()
    %cst_28 = arith.constant dense<0.000000e+00> : vector<2x8x8xf32>
    %118 = tpu.matmul %113, %115, %cst_28 {dimension_numbers = #tpu.dot_dimension_numbers<[2], [2], [1], [1], [0, 0, 0, 1, 1, 1], [0], [0]>} : vector<2x8x16xf32>, vector<2x8x16xf32>, vector<2x8x8xf32> -> vector<2x8x8xf32>
    "tpu.trace_stop"() : () -> ()
    %cst_29 = arith.constant dense<0xFF800000> : vector<2x8xf32>
    %119 = vector.multi_reduction <maximumf>, %118, %cst_29 [2] : vector<2x8x8xf32> to vector<2x8xf32>
    %120 = vector.shape_cast %119 : vector<2x8xf32> to vector<2x8x1xf32>
    %121 = vector.broadcast %120 : vector<2x8x1xf32> to vector<2x8x8xf32>
    %122 = arith.subf %118, %121 : vector<2x8x8xf32>
    %123 = math.exp %122 : vector<2x8x8xf32>
    %cst_30 = arith.constant dense<0.000000e+00> : vector<2x8xf32>
    %124 = vector.multi_reduction <add>, %123, %cst_30 [2] : vector<2x8x8xf32> to vector<2x8xf32>
    %125 = vector.shape_cast %124 : vector<2x8xf32> to vector<2x8x1xf32>
    %126 = tpu.reciprocal %125 : vector<2x8x1xf32> -> vector<2x8x1xf32>
    %127 = vector.broadcast %126 : vector<2x8x1xf32> to vector<2x8x8xf32>
    %128 = arith.mulf %123, %127 : vector<2x8x8xf32>
    "tpu.trace_start"() <{level = 10 : i32, message = "bij,bjd->bid"}> : () -> ()
    %cst_31 = arith.constant dense<0.000000e+00> : vector<2x8x16xf32>
    %129 = tpu.matmul %128, %117, %cst_31 {dimension_numbers = #tpu.dot_dimension_numbers<[2], [1], [1], [2], [0, 0, 0, 1, 1, 2], [0], [0]>} : vector<2x8x8xf32>, vector<2x8x16xf32>, vector<2x8x16xf32> -> vector<2x8x16xf32>
    "tpu.trace_stop"() : () -> ()
    %130 = vector.extract_strided_slice %3 {offsets = [0, 112], sizes = [16, 16], strides = [1, 1]} : vector<16x384xf32> to vector<16x16xf32>
    %131 = vector.shape_cast %130 : vector<16x16xf32> to vector<2x8x16xf32>
    %132 = vector.extract_strided_slice %3 {offsets = [0, 240], sizes = [16, 16], strides = [1, 1]} : vector<16x384xf32> to vector<16x16xf32>
    %133 = vector.shape_cast %132 : vector<16x16xf32> to vector<2x8x16xf32>
    %134 = vector.extract_strided_slice %3 {offsets = [0, 368], sizes = [16, 16], strides = [1, 1]} : vector<16x384xf32> to vector<16x16xf32>
    %135 = vector.shape_cast %134 : vector<16x16xf32> to vector<2x8x16xf32>
    "tpu.trace_start"() <{level = 10 : i32, message = "bid,bjd->bij"}> : () -> ()
    %cst_32 = arith.constant dense<0.000000e+00> : vector<2x8x8xf32>
    %136 = tpu.matmul %131, %133, %cst_32 {dimension_numbers = #tpu.dot_dimension_numbers<[2], [2], [1], [1], [0, 0, 0, 1, 1, 1], [0], [0]>} : vector<2x8x16xf32>, vector<2x8x16xf32>, vector<2x8x8xf32> -> vector<2x8x8xf32>
    "tpu.trace_stop"() : () -> ()
    %cst_33 = arith.constant dense<0xFF800000> : vector<2x8xf32>
    %137 = vector.multi_reduction <maximumf>, %136, %cst_33 [2] : vector<2x8x8xf32> to vector<2x8xf32>
    %138 = vector.shape_cast %137 : vector<2x8xf32> to vector<2x8x1xf32>
    %139 = vector.broadcast %138 : vector<2x8x1xf32> to vector<2x8x8xf32>
    %140 = arith.subf %136, %139 : vector<2x8x8xf32>
    %141 = math.exp %140 : vector<2x8x8xf32>
    %cst_34 = arith.constant dense<0.000000e+00> : vector<2x8xf32>
    %142 = vector.multi_reduction <add>, %141, %cst_34 [2] : vector<2x8x8xf32> to vector<2x8xf32>
    %143 = vector.shape_cast %142 : vector<2x8xf32> to vector<2x8x1xf32>
    %144 = tpu.reciprocal %143 : vector<2x8x1xf32> -> vector<2x8x1xf32>
    %145 = vector.broadcast %144 : vector<2x8x1xf32> to vector<2x8x8xf32>
    %146 = arith.mulf %141, %145 : vector<2x8x8xf32>
    "tpu.trace_start"() <{level = 10 : i32, message = "bij,bjd->bid"}> : () -> ()
    %cst_35 = arith.constant dense<0.000000e+00> : vector<2x8x16xf32>
    %147 = tpu.matmul %146, %135, %cst_35 {dimension_numbers = #tpu.dot_dimension_numbers<[2], [1], [1], [2], [0, 0, 0, 1, 1, 2], [0], [0]>} : vector<2x8x8xf32>, vector<2x8x16xf32>, vector<2x8x16xf32> -> vector<2x8x16xf32>
    "tpu.trace_stop"() : () -> ()
    %148 = vector.shape_cast %20 : vector<2x8x8xf32> to vector<2x1x8x8xf32>
    %149 = vector.shape_cast %38 : vector<2x8x8xf32> to vector<2x1x8x8xf32>
    %150 = vector.shape_cast %56 : vector<2x8x8xf32> to vector<2x1x8x8xf32>
    %151 = vector.shape_cast %74 : vector<2x8x8xf32> to vector<2x1x8x8xf32>
    %152 = vector.shape_cast %92 : vector<2x8x8xf32> to vector<2x1x8x8xf32>
    %153 = vector.shape_cast %110 : vector<2x8x8xf32> to vector<2x1x8x8xf32>
    %154 = vector.shape_cast %128 : vector<2x8x8xf32> to vector<2x1x8x8xf32>
    %155 = vector.shape_cast %146 : vector<2x8x8xf32> to vector<2x1x8x8xf32>
    %156 = tpu.concatenate %148, %149, %150, %151, %152, %153, %154, %155 in 1 : vector<2x1x8x8xf32>, vector<2x1x8x8xf32>, vector<2x1x8x8xf32>, vector<2x1x8x8xf32>, vector<2x1x8x8xf32>, vector<2x1x8x8xf32>, vector<2x1x8x8xf32>, vector<2x1x8x8xf32> -> vector<2x8x8x8xf32>
    %c0_36 = arith.constant 0 : index
    %c0_37 = arith.constant 0 : index
    %c0_38 = arith.constant 0 : index
    %c0_39 = arith.constant 0 : index
    %157 = vector.load %arg6[%c0_36, %c0_37, %c0_38, %c0_39] : memref<2x8x8x8xf32, #tpu.memory_space<vmem>>, vector<2x8x8x8xf32>
    tpu.vector_store %arg6[%c0_36, %c0_37, %c0_38, %c0_39], %156 {strides = array<i32>} : memref<2x8x8x8xf32, #tpu.memory_space<vmem>>, vector<2x8x8x8xf32>,
    %158 = tpu.concatenate %21, %39, %57, %75, %93, %111, %129, %147 in 2 : vector<2x8x16xf32>, vector<2x8x16xf32>, vector<2x8x16xf32>, vector<2x8x16xf32>, vector<2x8x16xf32>, vector<2x8x16xf32>, vector<2x8x16xf32>, vector<2x8x16xf32> -> vector<2x8x128xf32>
    %159 = vector.shape_cast %158 : vector<2x8x128xf32> to vector<16x128xf32>
    %c0_40 = arith.constant 0 : index
    %c0_41 = arith.constant 0 : index
    %160 = vector.load %arg3[%c0_40, %c0_41] : memref<128x32xf32, #tpu.memory_space<vmem>>, vector<128x32xf32>
    %cst_42 = arith.constant dense<0.000000e+00> : vector<16x32xf32>
    %161 = tpu.matmul %159, %160, %cst_42 {dimension_numbers = #tpu.dot_dimension_numbers<[1], [0], [0], [1], [0, 0, 1, 1], [], []>} : vector<16x128xf32>, vector<128x32xf32>, vector<16x32xf32> -> vector<16x32xf32>
    %c0_43 = arith.constant 0 : index
    %c0_44 = arith.constant 0 : index
    %162 = vector.load %arg4[%c0_43, %c0_44] : memref<1x32xf32, #tpu.memory_space<vmem>>, vector<1x32xf32>
    %163 = vector.broadcast %162 : vector<1x32xf32> to vector<16x32xf32>
    %164 = arith.addf %161, %163 : vector<16x32xf32>
    %165 = vector.shape_cast %164 : vector<16x32xf32> to vector<2x8x32xf32>
    %c0_45 = arith.constant 0 : index
    %c0_46 = arith.constant 0 : index
    %c0_47 = arith.constant 0 : index
    %166 = vector.load %arg5[%c0_45, %c0_46, %c0_47] : memref<2x8x32xf32, #tpu.memory_space<vmem>>, vector<2x8x32xf32>
    tpu.vector_store %arg5[%c0_45, %c0_46, %c0_47], %165 {strides = array<i32>} : memref<2x8x32xf32, #tpu.memory_space<vmem>>, vector<2x8x32xf32>,
    return
  }
  func.func @transform_0(%arg0: i32) -> (i32, i32, i32) {
    %c0_i32 = arith.constant 0 : i32
    %c0_i32_0 = arith.constant 0 : i32
    %c0_i32_1 = arith.constant 0 : i32
    return %arg0, %c0_i32, %c0_i32_0 : i32, i32, i32
  }
  func.func @transform_1(%arg0: i32) -> (i32, i32) {
    %c0_i32 = arith.constant 0 : i32
    %c0_i32_0 = arith.constant 0 : i32
    %c0_i32_1 = arith.constant 0 : i32
    return %c0_i32, %c0_i32_0 : i32, i32
  }
  func.func @transform_2(%arg0: i32) -> (i32, i32) {
    %c0_i32 = arith.constant 0 : i32
    %c0_i32_0 = arith.constant 0 : i32
    %c0_i32_1 = arith.constant 0 : i32
    return %c0_i32, %c0_i32_0 : i32, i32
  }
  func.func @transform_3(%arg0: i32) -> (i32, i32) {
    %c0_i32 = arith.constant 0 : i32
    %c0_i32_0 = arith.constant 0 : i32
    %c0_i32_1 = arith.constant 0 : i32
    return %c0_i32, %c0_i32_0 : i32, i32
  }
  func.func @transform_4(%arg0: i32) -> (i32, i32, i32) {
    %c0_i32 = arith.constant 0 : i32
    %c0_i32_0 = arith.constant 0 : i32
    %c0_i32_1 = arith.constant 0 : i32
    return %arg0, %c0_i32, %c0_i32_0 : i32, i32, i32
  }
  func.func @transform_5(%arg0: i32) -> (i32, i32, i32, i32) {
    %c0_i32 = arith.constant 0 : i32
    %c0_i32_0 = arith.constant 0 : i32
    %c0_i32_1 = arith.constant 0 : i32
    %c0_i32_2 = arith.constant 0 : i32
    return %arg0, %c0_i32, %c0_i32_0, %c0_i32_1 : i32, i32, i32, i32
  }
}

</mosaic_0001>

<llo_original>
// kernel: tpu_custom_call.1
$region0: #{tpu_custom_call.1}
  #allocation0 [shape = 'u32[]', space=smem, size = 0x4, offset = 0x4, fixed_abs, tag = 'smem constant byte address 0x4 - core index']
  #allocation1 [shape = 'u32[144,128]{1,0:T(1,128)}', space=vmem, size = 0x12000, scoped, tag = 'internal scratch']
  %s0 = inlined_call_operand.vmem [shape: f32[2,8,32], index: 0, kind: input, shape index: {}]
  %s1 = inlined_call_operand.vmem [shape: f32[32,384], index: 1, kind: input, shape index: {}]
  %s2 = inlined_call_operand.vmem [shape: f32[128,32], index: 2, kind: input, shape index: {}]
  %s3 = inlined_call_operand.vmem [shape: f32[1,32], index: 3, kind: input, shape index: {}]
  %s4 = inlined_call_operand.hbm [shape: f32[2,8,32], index: 4, kind: output, shape index: {0}]
  %s5 = inlined_call_operand.hbm [shape: f32[2,8,8,8], index: 5, kind: output, shape index: {1}]
  %6 = xla_tuple %s4, %s5
  %s7 = sld [smem:[#allocation0]]
  $region34: #{tpu_custom_call.1} parent=0
    _
  %s9 = ssub.s32 1, %s7
  %s10 = scalar_select 0, %s9, %s7
  $region1: #{tpu_custom_call.1} parent=0
    #allocation2 [shape = 'u8[8192]{0}', space=vmem, size = 0x2000, scoped, tag = 'output window, operand 0, single buffered']
    #allocation3 [shape = 's32[1]{0}', space=sflag, size = 0x4, scoped, tag = 'scoped memory for tpu_custom_call.1']
    #allocation4 [shape = 'u8[65536]{0}', space=vmem, size = 0x10000, scoped, tag = 'output window, operand 1, single buffered']
    #allocation5 [shape = 's32[1]{0}', space=sflag, size = 0x4, scoped, tag = 'scoped memory for tpu_custom_call.1']
    %11 = vsyncpa [#allocation3], 0
    %12 = vsyncpa [#allocation5], 0
    // Predicated region
    $region2: #{tpu_custom_call.1} parent=1 // pred_check
      _
    $region3: #{tpu_custom_call.1} parent=1 // pred_check_branch
      %14 = sbr.rel (0) target = $region5
    $region4: #{tpu_custom_call.1} parent=1 // pred_region
      _
    $region5: #{tpu_custom_call.1} parent=1 // pred_fallthru
      _
    // Predicated region
    $region6: #{tpu_custom_call.1} parent=1 // pred_check
      _
    $region7: #{tpu_custom_call.1} parent=1 // pred_check_branch
      %16 = sbr.rel (0) target = $region9
    $region8: #{tpu_custom_call.1} parent=1 // pred_region
      _
    $region9: #{tpu_custom_call.1} parent=1 // pred_fallthru
      _
    // Predicated region
    $region10: #{tpu_custom_call.1} parent=1 // pred_check
      _
    $region11: #{tpu_custom_call.1} parent=1 // pred_check_branch
      %18 = sbr.rel (0) target = $region13
    $region12: #{tpu_custom_call.1} parent=1 // pred_region
      _
    $region13: #{tpu_custom_call.1} parent=1 // pred_fallthru
      _
    // Predicated region
    $region14: #{tpu_custom_call.1} parent=1 // pred_check
      _
    $region15: #{tpu_custom_call.1} parent=1 // pred_check_branch
      %20 = sbr.rel (0) target = $region17
    $region16: #{tpu_custom_call.1} parent=1 // pred_region
      _
    $region17: #{tpu_custom_call.1} parent=1 // pred_fallthru
      _
    %v21 = vld [vmem:[%s0] sm:$0xff]
    %v22 = vld [vmem:[%s0 + $0x8] sm:$0xff]
    %v23 = vld [vmem:[%s1] sm:$0xff]
    %v24 = vld [vmem:[%s1 + $0x8] sm:$0xff]
    %v25 = vld [vmem:[%s1 + $0x10] sm:$0xff]
    %v26 = vld [vmem:[%s1 + $0x18] sm:$0xff]
    %v27 = vld [vmem:[%s1 + $0x20] sm:$0xff]
    %v28 = vld [vmem:[%s1 + $0x28] sm:$0xff]
    %v29 = vld [vmem:[%s1 + $0x30] sm:$0xff]
    %v30 = vld [vmem:[%s1 + $0x38] sm:$0xff]
    %v31 = vld [vmem:[%s1 + $0x40] sm:$0xff]
    %v32 = vld [vmem:[%s1 + $0x48] sm:$0xff]
    %v33 = vld [vmem:[%s1 + $0x50] sm:$0xff]
    %v34 = vld [vmem:[%s1 + $0x58] sm:$0xff]
    %vm35 = vcmask 261120
    %v37 = vsel %vm35, %v21, 0
    %v40 = vsel %vm35, %v22, 0
    %42 = vmatprep.subr.mxu0 %v24
    %43 = vmatpush1.msra.mxu0 %v23
    %44 = vmatprep.subr.mxu0 %v27
    %45 = vmatpush1.msra.mxu0 %v26
    %46 = vmatprep.subr.mxu0 %v30
    %47 = vmatpush1.msra.mxu0 %v29
    %48 = vmatprep.subr.mxu0 %v33
    %49 = vmatpush1.msra.mxu0 %v32
    %50 = vmatprep.subr.mxu0 0.0
    %51 = vmatpush1.msra.mxu0 0.0
    %52 = vmatprep.subr.mxu0 0.0
    %53 = vmatpush1.msra.mxu0 0.0
    %54 = vmatprep.subr.mxu0 0.0
    %55 = vmatpush1.msra.mxu0 0.0
    %56 = vmatprep.subr.mxu0 0.0
    %57 = vmatpush1.msra.mxu0 0.0
    %58 = vmatprep.subr.mxu0 0.0
    %59 = vmatpush1.msra.mxu0 0.0
    %60 = vmatprep.subr.mxu0 0.0
    %61 = vmatpush1.msra.mxu0 0.0
    %62 = vmatprep.subr.mxu0 0.0
    %63 = vmatpush1.msra.mxu0 0.0
    %64 = vmatprep.subr.mxu0 0.0
    %65 = vmatpush1.msra.mxu0 0.0
    %66 = vmatprep.subr.mxu0 0.0
    %67 = vmatpush1.msra.mxu0 0.0
    %68 = vmatprep.subr.mxu0 0.0
    %69 = vmatpush1.msra.mxu0 0.0
    %70 = vmatprep.subr.mxu0 0.0
    %71 = vmatpush1.msra.mxu0 0.0
    %72 = vmatprep.subr.mxu0 0.0
    %73 = vmatpush1.msra.mxu0 0.0
    %74 = vmatprep.subr.mxu0 0.0
    %75 = vmatpush1.msra.mxu0 0.0
    %76 = vmatprep.subr.mxu0 0.0
    %77 = vmatpush1.msra.mxu0 0.0
    %78 = vmatprep.subr.mxu0 0.0
    %79 = vmatpush1.msra.mxu0 0.0
    %80 = vmatprep.subr.mxu0 0.0
    %81 = vmatpush1.msra.mxu0 0.0
    %82 = vmatprep.subr.mxu0 0.0
    %83 = vmatpush1.msra.mxu0 0.0
    %84 = vmatprep.subr.mxu0 0.0
    %85 = vmatpush1.msra.mxu0 0.0
    %86 = vmatprep.subr.mxu0 0.0
    %87 = vmatpush1.msra.mxu0 0.0
    %88 = vmatprep.subr.mxu0 0.0
    %89 = vmatpush1.msra.mxu0 0.0
    %90 = vmatprep.subr.mxu0 0.0
    %91 = vmatpush1.msra.mxu0 0.0
    %92 = vmatprep.subr.mxu0 0.0
    %93 = vmatpush1.msra.mxu0 0.0
    %94 = vmatprep.subr.mxu0 0.0
    %95 = vmatpush1.msra.mxu0 0.0
    %96 = vmatprep.subr.mxu0 0.0
    %97 = vmatpush1.msra.mxu0 0.0
    %98 = vmatprep.subr.mxu0 0.0
    %99 = vmatpush1.msra.mxu0 0.0
    %100 = vmatprep.subr.mxu0 0.0
    %101 = vmatpush1.msra.mxu0 0.0
    %102 = vmatprep.subr.mxu0 0.0
    %103 = vmatpush1.msra.mxu0 0.0
    %104 = vmatprep.subr.mxu0 0.0
    %105 = vmatpush1.msra.mxu0 0.0
    %106 = vmatprep.mubr.f32.mxu0 0.0
    %107 = vmatmul.mubr.f32.gmra.mrb[0].mxu0 %v37
    %v108 = vpop.f32.mrb[0].mxu0
    %v109 = vadd.f32 0.0, %v108
    %v110 = vpop.f32.mrb[0].mxu0
    %v111 = vadd.f32 0.0, %v110
    %112 = vmatprep.mubr.f32.mxu0 0.0
    %113 = vmatmul.mubr.f32.gmra.mrb[0].mxu0 %v40
    %v114 = vpop.f32.mrb[0].mxu0
    %v115 = vadd.f32 0.0, %v114
    %v116 = vpop.f32.mrb[0].mxu0
    %v117 = vadd.f32 0.0, %v116
    %118 = vdwg.mxu0
    %119 = vmatprep.subr.mxu0 0.0
    %120 = vmatpush1.msra.mxu0 %v25
    %121 = vmatprep.subr.mxu0 0.0
    %122 = vmatpush1.msra.mxu0 %v28
    %123 = vmatprep.subr.mxu0 0.0
    %124 = vmatpush1.msra.mxu0 %v31
    %125 = vmatprep.subr.mxu0 0.0
    %126 = vmatpush1.msra.mxu0 %v34
    %127 = vmatprep.subr.mxu0 0.0
    %128 = vmatpush1.msra.mxu0 0.0
    %129 = vmatprep.subr.mxu0 0.0
    %130 = vmatpush1.msra.mxu0 0.0
    %131 = vmatprep.subr.mxu0 0.0
    %132 = vmatpush1.msra.mxu0 0.0
    %133 = vmatprep.subr.mxu0 0.0
    %134 = vmatpush1.msra.mxu0 0.0
    %135 = vmatprep.subr.mxu0 0.0
    %136 = vmatpush1.msra.mxu0 0.0
    %137 = vmatprep.subr.mxu0 0.0
    %138 = vmatpush1.msra.mxu0 0.0
    %139 = vmatprep.subr.mxu0 0.0
    %140 = vmatpush1.msra.mxu0 0.0
    %141 = vmatprep.subr.mxu0 0.0
    %142 = vmatpush1.msra.mxu0 0.0
    %143 = vmatprep.subr.mxu0 0.0
    %144 = vmatpush1.msra.mxu0 0.0
    %145 = vmatprep.subr.mxu0 0.0
    %146 = vmatpush1.msra.mxu0 0.0
    %147 = vmatprep.subr.mxu0 0.0
    %148 = vmatpush1.msra.mxu0 0.0
    %149 = vmatprep.subr.mxu0 0.0
    %150 = vmatpush1.msra.mxu0 0.0
    %151 = vmatprep.subr.mxu0 0.0
    %152 = vmatpush1.msra.mxu0 0.0
    %153 = vmatprep.subr.mxu0 0.0
    %154 = vmatpush1.msra.mxu0 0.0
    %155 = vmatprep.subr.mxu0 0.0
    %156 = vmatpush1.msra.mxu0 0.0
    %157 = vmatprep.subr.mxu0 0.0
    %158 = vmatpush1.msra.mxu0 0.0
    %159 = vmatprep.subr.mxu0 0.0
    %160 = vmatpush1.msra.mxu0 0.0
    %161 = vmatprep.subr.mxu0 0.0
    %162 = vmatpush1.msra.mxu0 0.0
    %163 = vmatprep.subr.mxu0 0.0
    %164 = vmatpush1.msra.mxu0 0.0
    %165 = vmatprep.subr.mxu0 0.0
    %166 = vmatpush1.msra.mxu0 0.0
    %167 = vmatprep.subr.mxu0 0.0
    %168 = vmatpush1.msra.mxu0 0.0
    %169 = vmatprep.subr.mxu0 0.0
    %170 = vmatpush1.msra.mxu0 0.0
    %171 = vmatprep.subr.mxu0 0.0
    %172 = vmatpush1.msra.mxu0 0.0
    %173 = vmatprep.subr.mxu0 0.0
    %174 = vmatpush1.msra.mxu0 0.0
    %175 = vmatprep.subr.mxu0 0.0
    %176 = vmatpush1.msra.mxu0 0.0
    %177 = vmatprep.subr.mxu0 0.0
    %178 = vmatpush1.msra.mxu0 0.0
    %179 = vmatprep.subr.mxu0 0.0
    %180 = vmatpush1.msra.mxu0 0.0
    %181 = vmatprep.subr.mxu0 0.0
    %182 = vmatpush1.msra.mxu0 0.0
    %183 = vmatprep.mubr.f32.mxu0 0.0
    %184 = vmatmul.mubr.f32.gmra.mrb[0].mxu0 %v37
    %v185 = vpop.f32.mrb[0].mxu0
    %v186 = vadd.f32 0.0, %v185
    %v187 = vpop.f32.mrb[0].mxu0
    %188 = vmatprep.mubr.f32.mxu0 0.0
    %189 = vmatmul.mubr.f32.gmra.mrb[0].mxu0 %v40
    %v190 = vpop.f32.mrb[0].mxu0
    %v191 = vadd.f32 0.0, %v190
    %v192 = vpop.f32.mrb[0].mxu0
    %193 = vdwg.mxu0
    %vm194 = vcmask 130048
    %v196 = vsel %vm194, %v109, 0
    %v199 = vsel %vm194, %v111, 0
    %201 = vmatprep.subr.mxu0 0.0
    %202 = vmatpush1.xpose.msra.mxu0 %v199
    %203 = vmatprep.subr.mxu0 0.0
    %204 = vmatpush1.xpose.msra.mxu0 0.0
    %205 = vmatprep.subr.mxu0 0.0
    %206 = vmatpush1.xpose.msra.mxu0 0.0
    %207 = vmatprep.subr.mxu0 0.0
    %208 = vmatpush1.xpose.msra.mxu0 0.0
    %209 = vmatprep.subr.mxu0 0.0
    %210 = vmatpush1.xpose.msra.mxu0 0.0
    %211 = vmatprep.subr.mxu0 0.0
    %212 = vmatpush1.xpose.msra.mxu0 0.0
    %213 = vmatprep.subr.mxu0 0.0
    %214 = vmatpush1.xpose.msra.mxu0 0.0
    %215 = vmatprep.subr.mxu0 0.0
    %216 = vmatpush1.xpose.msra.mxu0 0.0
    %217 = vmatprep.subr.mxu0 0.0
    %218 = vmatpush1.xpose.msra.mxu0 0.0
    %219 = vmatprep.subr.mxu0 0.0
    %220 = vmatpush1.xpose.msra.mxu0 0.0
    %221 = vmatprep.subr.mxu0 0.0
    %222 = vmatpush1.xpose.msra.mxu0 0.0
    %223 = vmatprep.subr.mxu0 0.0
    %224 = vmatpush1.xpose.msra.mxu0 0.0
    %225 = vmatprep.subr.mxu0 0.0
    %226 = vmatpush1.xpose.msra.mxu0 0.0
    %227 = vmatprep.subr.mxu0 0.0
    %228 = vmatpush1.xpose.msra.mxu0 0.0
    %229 = vmatprep.subr.mxu0 0.0
    %230 = vmatpush1.xpose.msra.mxu0 0.0
    %231 = vmatprep.subr.mxu0 0.0
    %232 = vmatpush1.xpose.msra.mxu0 0.0
    %233 = vmatprep.subr.mxu0 0.0
    %234 = vmatpush1.xpose.msra.mxu0 0.0
    %235 = vmatprep.subr.mxu0 0.0
    %236 = vmatpush1.xpose.msra.mxu0 0.0
    %237 = vmatprep.subr.mxu0 0.0
    %238 = vmatpush1.xpose.msra.mxu0 0.0
    %239 = vmatprep.subr.mxu0 0.0
    %240 = vmatpush1.xpose.msra.mxu0 0.0
    %241 = vmatprep.subr.mxu0 0.0
    %242 = vmatpush1.xpose.msra.mxu0 0.0
    %243 = vmatprep.subr.mxu0 0.0
    %244 = vmatpush1.xpose.msra.mxu0 0.0
    %245 = vmatprep.subr.mxu0 0.0
    %246 = vmatpush1.xpose.msra.mxu0 0.0
    %247 = vmatprep.subr.mxu0 0.0
    %248 = vmatpush1.xpose.msra.mxu0 0.0
    %249 = vmatprep.subr.mxu0 0.0
    %250 = vmatpush1.xpose.msra.mxu0 0.0
    %251 = vmatprep.subr.mxu0 0.0
    %252 = vmatpush1.xpose.msra.mxu0 0.0
    %253 = vmatprep.subr.mxu0 0.0
    %254 = vmatpush1.xpose.msra.mxu0 0.0
    %255 = vmatprep.subr.mxu0 0.0
    %256 = vmatpush1.xpose.msra.mxu0 0.0
    %257 = vmatprep.subr.mxu0 0.0
    %258 = vmatpush1.xpose.msra.mxu0 0.0
    %259 = vmatprep.subr.mxu0 0.0
    %260 = vmatpush1.xpose.msra.mxu0 0.0
    %261 = vmatprep.subr.mxu0 0.0
    %262 = vmatpush1.xpose.msra.mxu0 0.0
    %263 = vmatprep.subr.mxu0 0.0
    %264 = vmatpush1.xpose.msra.mxu0 0.0
    %265 = vmatprep.mubr.f32.mxu0 0.0
    %266 = vmatmul.mubr.f32.gmra.mrb[0].mxu0 %v196
    %v267 = vpop.f32.mrb[0].mxu0
    %v268 = vadd.f32 0.0, %v267
    %v269 = vpop.f32.mrb[0].mxu0
    %270 = vdwg.mxu0
    %v272 = vsel %vm194, %v115, 0
    %v275 = vsel %vm194, %v117, 0
    %277 = vmatprep.subr.mxu0 0.0
    %278 = vmatpush1.xpose.msra.mxu0 %v275
    %279 = vmatprep.subr.mxu0 0.0
    %280 = vmatpush1.xpose.msra.mxu0 0.0
    %281 = vmatprep.subr.mxu0 0.0
    %282 = vmatpush1.xpose.msra.mxu0 0.0
    %283 = vmatprep.subr.mxu0 0.0
    %284 = vmatpush1.xpose.msra.mxu0 0.0
    %285 = vmatprep.subr.mxu0 0.0
    %286 = vmatpush1.xpose.msra.mxu0 0.0
    %287 = vmatprep.subr.mxu0 0.0
    %288 = vmatpush1.xpose.msra.mxu0 0.0
    %289 = vmatprep.subr.mxu0 0.0
    %290 = vmatpush1.xpose.msra.mxu0 0.0
    %291 = vmatprep.subr.mxu0 0.0
    %292 = vmatpush1.xpose.msra.mxu0 0.0
    %293 = vmatprep.subr.mxu0 0.0
    %294 = vmatpush1.xpose.msra.mxu0 0.0
    %295 = vmatprep.subr.mxu0 0.0
    %296 = vmatpush1.xpose.msra.mxu0 0.0
    %297 = vmatprep.subr.mxu0 0.0
    %298 = vmatpush1.xpose.msra.mxu0 0.0
    %299 = vmatprep.subr.mxu0 0.0
    %300 = vmatpush1.xpose.msra.mxu0 0.0
    %301 = vmatprep.subr.mxu0 0.0
    %302 = vmatpush1.xpose.msra.mxu0 0.0
    %303 = vmatprep.subr.mxu0 0.0
    %304 = vmatpush1.xpose.msra.mxu0 0.0
    %305 = vmatprep.subr.mxu0 0.0
    %306 = vmatpush1.xpose.msra.mxu0 0.0
    %307 = vmatprep.subr.mxu0 0.0
    %308 = vmatpush1.xpose.msra.mxu0 0.0
    %309 = vmatprep.subr.mxu0 0.0
    %310 = vmatpush1.xpose.msra.mxu0 0.0
    %311 = vmatprep.subr.mxu0 0.0
    %312 = vmatpush1.xpose.msra.mxu0 0.0
    %313 = vmatprep.subr.mxu0 0.0
    %314 = vmatpush1.xpose.msra.mxu0 0.0
    %315 = vmatprep.subr.mxu0 0.0
    %316 = vmatpush1.xpose.msra.mxu0 0.0
    %317 = vmatprep.subr.mxu0 0.0
    %318 = vmatpush1.xpose.msra.mxu0 0.0
    %319 = vmatprep.subr.mxu0 0.0
    %320 = vmatpush1.xpose.msra.mxu0 0.0
    %321 = vmatprep.subr.mxu0 0.0
    %322 = vmatpush1.xpose.msra.mxu0 0.0
    %323 = vmatprep.subr.mxu0 0.0
    %324 = vmatpush1.xpose.msra.mxu0 0.0
    %325 = vmatprep.subr.mxu0 0.0
    %326 = vmatpush1.xpose.msra.mxu0 0.0
    %327 = vmatprep.subr.mxu0 0.0
    %328 = vmatpush1.xpose.msra.mxu0 0.0
    %329 = vmatprep.subr.mxu0 0.0
    %330 = vmatpush1.xpose.msra.mxu0 0.0
    %331 = vmatprep.subr.mxu0 0.0
    %332 = vmatpush1.xpose.msra.mxu0 0.0
    %333 = vmatprep.subr.mxu0 0.0
    %334 = vmatpush1.xpose.msra.mxu0 0.0
    %335 = vmatprep.subr.mxu0 0.0
    %336 = vmatpush1.xpose.msra.mxu0 0.0
    %337 = vmatprep.subr.mxu0 0.0
    %338 = vmatpush1.xpose.msra.mxu0 0.0
    %339 = vmatprep.subr.mxu0 0.0
    %340 = vmatpush1.xpose.msra.mxu0 0.0
    %341 = vmatprep.mubr.f32.mxu0 0.0
    %342 = vmatmul.mubr.f32.gmra.mrb[0].mxu0 %v272
    %v343 = vpop.f32.mrb[0].mxu0
    %v344 = vadd.f32 0.0, %v343
    %v345 = vpop.f32.mrb[0].mxu0
    %346 = vdwg.mxu0
    %vm347 = vcmask 64512
    %v348 = vsel %vm347, %v268, -inf
    %349 = vmax.xlane.f32.xlu0 %v348
    %v350 = vpop.xlane.xlu0 %349
    %v351 = vsel %vm347, %v344, -inf
    %352 = vmax.xlane.f32.xlu0 %v351
    %v353 = vpop.xlane.xlu0 %352
    %v354 = vsub.f32 %v268, %v350
    %v355 = vsub.f32 %v344, %v353
    %v356 = vmul.f32 %v354, 1.442695
    %v357 = vpow.pop %v356
    %v358 = vmul.f32 %v355, 1.442695
    %v359 = vpow.pop %v358
    %v360 = vsel %vm347, %v357, 0.0
    %361 = vadd.xlane.f32.xlu0 %v360
    %v362 = vpop.xlane.xlu0 %361
    %v363 = vsel %vm347, %v359, 0.0
    %364 = vadd.xlane.f32.xlu0 %v363
    %v365 = vpop.xlane.xlu0 %364
    %v366 = vrcp.pop %v362
    %v367 = vrcp.pop %v365
    %v368 = vmul.f32 %v357, %v366
    %v369 = vmul.f32 %v359, %v367
    %v371 = vsel %vm347, %v368, 0
    %373 = vmatprep.subr.mxu0 0.0
    %374 = vmatpush1.msra.mxu0 %v186
    %375 = vmatprep.subr.mxu0 0.0
    %376 = vmatpush1.msra.mxu0 0.0
    %377 = vmatprep.subr.mxu0 0.0
    %378 = vmatpush1.msra.mxu0 0.0
    %379 = vmatprep.subr.mxu0 0.0
    %380 = vmatpush1.msra.mxu0 0.0
    %381 = vmatprep.subr.mxu0 0.0
    %382 = vmatpush1.msra.mxu0 0.0
    %383 = vmatprep.subr.mxu0 0.0
    %384 = vmatpush1.msra.mxu0 0.0
    %385 = vmatprep.subr.mxu0 0.0
    %386 = vmatpush1.msra.mxu0 0.0
    %387 = vmatprep.subr.mxu0 0.0
    %388 = vmatpush1.msra.mxu0 0.0
    %389 = vmatprep.subr.mxu0 0.0
    %390 = vmatpush1.msra.mxu0 0.0
    %391 = vmatprep.subr.mxu0 0.0
    %392 = vmatpush1.msra.mxu0 0.0
    %393 = vmatprep.subr.mxu0 0.0
    %394 = vmatpush1.msra.mxu0 0.0
    %395 = vmatprep.subr.mxu0 0.0
    %396 = vmatpush1.msra.mxu0 0.0
    %397 = vmatprep.subr.mxu0 0.0
    %398 = vmatpush1.msra.mxu0 0.0
    %399 = vmatprep.subr.mxu0 0.0
    %400 = vmatpush1.msra.mxu0 0.0
    %401 = vmatprep.subr.mxu0 0.0
    %402 = vmatpush1.msra.mxu0 0.0
    %403 = vmatprep.subr.mxu0 0.0
    %404 = vmatpush1.msra.mxu0 0.0
    %405 = vmatprep.subr.mxu0 0.0
    %406 = vmatpush1.msra.mxu0 0.0
    %407 = vmatprep.subr.mxu0 0.0
    %408 = vmatpush1.msra.mxu0 0.0
    %409 = vmatprep.subr.mxu0 0.0
    %410 = vmatpush1.msra.mxu0 0.0
    %411 = vmatprep.subr.mxu0 0.0
    %412 = vmatpush1.msra.mxu0 0.0
    %413 = vmatprep.subr.mxu0 0.0
    %414 = vmatpush1.msra.mxu0 0.0
    %415 = vmatprep.subr.mxu0 0.0
    %416 = vmatpush1.msra.mxu0 0.0
    %417 = vmatprep.subr.mxu0 0.0
    %418 = vmatpush1.msra.mxu0 0.0
    %419 = vmatprep.subr.mxu0 0.0
    %420 = vmatpush1.msra.mxu0 0.0
    %421 = vmatprep.subr.mxu0 0.0
    %422 = vmatpush1.msra.mxu0 0.0
    %423 = vmatprep.subr.mxu0 0.0
    %424 = vmatpush1.msra.mxu0 0.0
    %425 = vmatprep.subr.mxu0 0.0
    %426 = vmatpush1.msra.mxu0 0.0
    %427 = vmatprep.subr.mxu0 0.0
    %428 = vmatpush1.msra.mxu0 0.0
    %429 = vmatprep.subr.mxu0 0.0
    %430 = vmatpush1.msra.mxu0 0.0
    %431 = vmatprep.subr.mxu0 0.0
    %432 = vmatpush1.msra.mxu0 0.0
    %433 = vmatprep.subr.mxu0 0.0
    %434 = vmatpush1.msra.mxu0 0.0
    %435 = vmatprep.subr.mxu0 0.0
    %436 = vmatpush1.msra.mxu0 0.0
    %437 = vmatprep.mubr.f32.mxu0 0.0
    %438 = vmatmul.mubr.f32.gmra.mrb[0].mxu0 %v371
    %v439 = vpop.f32.mrb[0].mxu0
    %v440 = vadd.f32 0.0, %v439
    %v441 = vpop.f32.mrb[0].mxu0
    %442 = vdwg.mxu0
    %v444 = vsel %vm347, %v369, 0
    %446 = vmatprep.subr.mxu0 0.0
    %447 = vmatpush1.msra.mxu0 %v191
    %448 = vmatprep.subr.mxu0 0.0
    %449 = vmatpush1.msra.mxu0 0.0
    %450 = vmatprep.subr.mxu0 0.0
    %451 = vmatpush1.msra.mxu0 0.0
    %452 = vmatprep.subr.mxu0 0.0
    %453 = vmatpush1.msra.mxu0 0.0
    %454 = vmatprep.subr.mxu0 0.0
    %455 = vmatpush1.msra.mxu0 0.0
    %456 = vmatprep.subr.mxu0 0.0
    %457 = vmatpush1.msra.mxu0 0.0
    %458 = vmatprep.subr.mxu0 0.0
    %459 = vmatpush1.msra.mxu0 0.0
    %460 = vmatprep.subr.mxu0 0.0
    %461 = vmatpush1.msra.mxu0 0.0
    %462 = vmatprep.subr.mxu0 0.0
    %463 = vmatpush1.msra.mxu0 0.0
    %464 = vmatprep.subr.mxu0 0.0
    %465 = vmatpush1.msra.mxu0 0.0
    %466 = vmatprep.subr.mxu0 0.0
    %467 = vmatpush1.msra.mxu0 0.0
    %468 = vmatprep.subr.mxu0 0.0
    %469 = vmatpush1.msra.mxu0 0.0
    %470 = vmatprep.subr.mxu0 0.0
    %471 = vmatpush1.msra.mxu0 0.0
    %472 = vmatprep.subr.mxu0 0.0
    %473 = vmatpush1.msra.mxu0 0.0
    %474 = vmatprep.subr.mxu0 0.0
    %475 = vmatpush1.msra.mxu0 0.0
    %476 = vmatprep.subr.mxu0 0.0
    %477 = vmatpush1.msra.mxu0 0.0
    %478 = vmatprep.subr.mxu0 0.0
    %479 = vmatpush1.msra.mxu0 0.0
    %480 = vmatprep.subr.mxu0 0.0
    %481 = vmatpush1.msra.mxu0 0.0
    %482 = vmatprep.subr.mxu0 0.0
    %483 = vmatpush1.msra.mxu0 0.0
    %484 = vmatprep.subr.mxu0 0.0
    %485 = vmatpush1.msra.mxu0 0.0
    %486 = vmatprep.subr.mxu0 0.0
    %487 = vmatpush1.msra.mxu0 0.0
    %488 = vmatprep.subr.mxu0 0.0
    %489 = vmatpush1.msra.mxu0 0.0
    %490 = vmatprep.subr.mxu0 0.0
    %491 = vmatpush1.msra.mxu0 0.0
    %492 = vmatprep.subr.mxu0 0.0
    %493 = vmatpush1.msra.mxu0 0.0
    %494 = vmatprep.subr.mxu0 0.0
    %495 = vmatpush1.msra.mxu0 0.0
    %496 = vmatprep.subr.mxu0 0.0
    %497 = vmatpush1.msra.mxu0 0.0
    %498 = vmatprep.subr.mxu0 0.0
    %499 = vmatpush1.msra.mxu0 0.0
    %500 = vmatprep.subr.mxu0 0.0
    %501 = vmatpush1.msra.mxu0 0.0
    %502 = vmatprep.subr.mxu0 0.0
    %503 = vmatpush1.msra.mxu0 0.0
    %504 = vmatprep.subr.mxu0 0.0
    %505 = vmatpush1.msra.mxu0 0.0
    %506 = vmatprep.subr.mxu0 0.0
    %507 = vmatpush1.msra.mxu0 0.0
    %508 = vmatprep.subr.mxu0 0.0
    %509 = vmatpush1.msra.mxu0 0.0
    %510 = vmatprep.mubr.f32.mxu0 0.0
    %511 = vmatmul.mubr.f32.gmra.mrb[0].mxu0 %v444
    %v512 = vpop.f32.mrb[0].mxu0
    %v513 = vadd.f32 0.0, %v512
    %v514 = vpop.f32.mrb[0].mxu0
    %515 = vdwg.mxu0
    %516 = vrot.lane.b32.xlu0 %v109, 112
    %v517 = vpop.permute.xlu0 %516
    %518 = vrot.lane.b32.xlu0 %v111, 112
    %v519 = vpop.permute.xlu0 %518
    %v520 = vsel %vm194, %v517, 0
    %v522 = vsel %vm194, %v519, 0
    %524 = vmatprep.subr.mxu0 0.0
    %525 = vmatpush1.xpose.msra.mxu0 %v522
    %526 = vmatprep.subr.mxu0 0.0
    %527 = vmatpush1.xpose.msra.mxu0 0.0
    %528 = vmatprep.subr.mxu0 0.0
    %529 = vmatpush1.xpose.msra.mxu0 0.0
    %530 = vmatprep.subr.mxu0 0.0
    %531 = vmatpush1.xpose.msra.mxu0 0.0
    %532 = vmatprep.subr.mxu0 0.0
    %533 = vmatpush1.xpose.msra.mxu0 0.0
    %534 = vmatprep.subr.mxu0 0.0
    %535 = vmatpush1.xpose.msra.mxu0 0.0
    %536 = vmatprep.subr.mxu0 0.0
    %537 = vmatpush1.xpose.msra.mxu0 0.0
    %538 = vmatprep.subr.mxu0 0.0
    %539 = vmatpush1.xpose.msra.mxu0 0.0
    %540 = vmatprep.subr.mxu0 0.0
    %541 = vmatpush1.xpose.msra.mxu0 0.0
    %542 = vmatprep.subr.mxu0 0.0
    %543 = vmatpush1.xpose.msra.mxu0 0.0
    %544 = vmatprep.subr.mxu0 0.0
    %545 = vmatpush1.xpose.msra.mxu0 0.0
    %546 = vmatprep.subr.mxu0 0.0
    %547 = vmatpush1.xpose.msra.mxu0 0.0
    %548 = vmatprep.subr.mxu0 0.0
    %549 = vmatpush1.xpose.msra.mxu0 0.0
    %550 = vmatprep.subr.mxu0 0.0
    %551 = vmatpush1.xpose.msra.mxu0 0.0
    %552 = vmatprep.subr.mxu0 0.0
    %553 = vmatpush1.xpose.msra.mxu0 0.0
    %554 = vmatprep.subr.mxu0 0.0
    %555 = vmatpush1.xpose.msra.mxu0 0.0
    %556 = vmatprep.subr.mxu0 0.0
    %557 = vmatpush1.xpose.msra.mxu0 0.0
    %558 = vmatprep.subr.mxu0 0.0
    %559 = vmatpush1.xpose.msra.mxu0 0.0
    %560 = vmatprep.subr.mxu0 0.0
    %561 = vmatpush1.xpose.msra.mxu0 0.0
    %562 = vmatprep.subr.mxu0 0.0
    %563 = vmatpush1.xpose.msra.mxu0 0.0
    %564 = vmatprep.subr.mxu0 0.0
    %565 = vmatpush1.xpose.msra.mxu0 0.0
    %566 = vmatprep.subr.mxu0 0.0
    %567 = vmatpush1.xpose.msra.mxu0 0.0
    %568 = vmatprep.subr.mxu0 0.0
    %569 = vmatpush1.xpose.msra.mxu0 0.0
    %570 = vmatprep.subr.mxu0 0.0
    %571 = vmatpush1.xpose.msra.mxu0 0.0
    %572 = vmatprep.subr.mxu0 0.0
    %573 = vmatpush1.xpose.msra.mxu0 0.0
    %574 = vmatprep.subr.mxu0 0.0
    %575 = vmatpush1.xpose.msra.mxu0 0.0
    %576 = vmatprep.subr.mxu0 0.0
    %577 = vmatpush1.xpose.msra.mxu0 0.0
    %578 = vmatprep.subr.mxu0 0.0
    %579 = vmatpush1.xpose.msra.mxu0 0.0
    %580 = vmatprep.subr.mxu0 0.0
    %581 = vmatpush1.xpose.msra.mxu0 0.0
    %582 = vmatprep.subr.mxu0 0.0
    %583 = vmatpush1.xpose.msra.mxu0 0.0
    %584 = vmatprep.subr.mxu0 0.0
    %585 = vmatpush1.xpose.msra.mxu0 0.0
    %586 = vmatprep.subr.mxu0 0.0
    %587 = vmatpush1.xpose.msra.mxu0 0.0
    %588 = vmatprep.mubr.f32.mxu0 0.0
    %589 = vmatmul.mubr.f32.gmra.mrb[0].mxu0 %v520
    %v590 = vpop.f32.mrb[0].mxu0
    %v591 = vadd.f32 0.0, %v590
    %v592 = vpop.f32.mrb[0].mxu0
    %593 = vdwg.mxu0
    %594 = vrot.lane.b32.xlu0 %v115, 112
    %v595 = vpop.permute.xlu0 %594
    %596 = vrot.lane.b32.xlu0 %v117, 112
    %v597 = vpop.permute.xlu0 %596
    %v598 = vsel %vm194, %v595, 0
    %v600 = vsel %vm194, %v597, 0
    %602 = vmatprep.subr.mxu0 0.0
    %603 = vmatpush1.xpose.msra.mxu0 %v600
    %604 = vmatprep.subr.mxu0 0.0
    %605 = vmatpush1.xpose.msra.mxu0 0.0
    %606 = vmatprep.subr.mxu0 0.0
    %607 = vmatpush1.xpose.msra.mxu0 0.0
    %608 = vmatprep.subr.mxu0 0.0
    %609 = vmatpush1.xpose.msra.mxu0 0.0
    %610 = vmatprep.subr.mxu0 0.0
    %611 = vmatpush1.xpose.msra.mxu0 0.0
    %612 = vmatprep.subr.mxu0 0.0
    %613 = vmatpush1.xpose.msra.mxu0 0.0
    %614 = vmatprep.subr.mxu0 0.0
    %615 = vmatpush1.xpose.msra.mxu0 0.0
    %616 = vmatprep.subr.mxu0 0.0
    %617 = vmatpush1.xpose.msra.mxu0 0.0
    %618 = vmatprep.subr.mxu0 0.0
    %619 = vmatpush1.xpose.msra.mxu0 0.0
    %620 = vmatprep.subr.mxu0 0.0
    %621 = vmatpush1.xpose.msra.mxu0 0.0
    %622 = vmatprep.subr.mxu0 0.0
    %623 = vmatpush1.xpose.msra.mxu0 0.0
    %624 = vmatprep.subr.mxu0 0.0
    %625 = vmatpush1.xpose.msra.mxu0 0.0
    %626 = vmatprep.subr.mxu0 0.0
    %627 = vmatpush1.xpose.msra.mxu0 0.0
    %628 = vmatprep.subr.mxu0 0.0
    %629 = vmatpush1.xpose.msra.mxu0 0.0
    %630 = vmatprep.subr.mxu0 0.0
    %631 = vmatpush1.xpose.msra.mxu0 0.0
    %632 = vmatprep.subr.mxu0 0.0
    %633 = vmatpush1.xpose.msra.mxu0 0.0
    %634 = vmatprep.subr.mxu0 0.0
    %635 = vmatpush1.xpose.msra.mxu0 0.0
    %636 = vmatprep.subr.mxu0 0.0
    %637 = vmatpush1.xpose.msra.mxu0 0.0
    %638 = vmatprep.subr.mxu0 0.0
    %639 = vmatpush1.xpose.msra.mxu0 0.0
    %640 = vmatprep.subr.mxu0 0.0
    %641 = vmatpush1.xpose.msra.mxu0 0.0
    %642 = vmatprep.subr.mxu0 0.0
    %643 = vmatpush1.xpose.msra.mxu0 0.0
    %644 = vmatprep.subr.mxu0 0.0
    %645 = vmatpush1.xpose.msra.mxu0 0.0
    %646 = vmatprep.subr.mxu0 0.0
    %647 = vmatpush1.xpose.msra.mxu0 0.0
    %648 = vmatprep.subr.mxu0 0.0
    %649 = vmatpush1.xpose.msra.mxu0 0.0
    %650 = vmatprep.subr.mxu0 0.0
    %651 = vmatpush1.xpose.msra.mxu0 0.0
    %652 = vmatprep.subr.mxu0 0.0
    %653 = vmatpush1.xpose.msra.mxu0 0.0
    %654 = vmatprep.subr.mxu0 0.0
    %655 = vmatpush1.xpose.msra.mxu0 0.0
    %656 = vmatprep.subr.mxu0 0.0
    %657 = vmatpush1.xpose.msra.mxu0 0.0
    %658 = vmatprep.subr.mxu0 0.0
    %659 = vmatpush1.xpose.msra.mxu0 0.0
    %660 = vmatprep.subr.mxu0 0.0
    %661 = vmatpush1.xpose.msra.mxu0 0.0
    %662 = vmatprep.subr.mxu0 0.0
    %663 = vmatpush1.xpose.msra.mxu0 0.0
    %664 = vmatprep.subr.mxu0 0.0
    %665 = vmatpush1.xpose.msra.mxu0 0.0
    %666 = vmatprep.mubr.f32.mxu0 0.0
    %667 = vmatmul.mubr.f32.gmra.mrb[0].mxu0 %v598
    %v668 = vpop.f32.mrb[0].mxu0
    %v669 = vadd.f32 0.0, %v668
    %v670 = vpop.f32.mrb[0].mxu0
    %671 = vdwg.mxu0
    %v672 = vsel %vm347, %v591, -inf
    %673 = vmax.xlane.f32.xlu0 %v672
    %v674 = vpop.xlane.xlu0 %673
    %v675 = vsel %vm347, %v669, -inf
    %676 = vmax.xlane.f32.xlu0 %v675
    %v677 = vpop.xlane.xlu0 %676
    %v678 = vsub.f32 %v591, %v674
    %v679 = vsub.f32 %v669, %v677
    %v680 = vmul.f32 %v678, 1.442695
    %v681 = vpow.pop %v680
    %v682 = vmul.f32 %v679, 1.442695
    %v683 = vpow.pop %v682
    %v684 = vsel %vm347, %v681, 0.0
    %685 = vadd.xlane.f32.xlu0 %v684
    %v686 = vpop.xlane.xlu0 %685
    %v687 = vsel %vm347, %v683, 0.0
    %688 = vadd.xlane.f32.xlu0 %v687
    %v689 = vpop.xlane.xlu0 %688
    %v690 = vrcp.pop %v686
    %v691 = vrcp.pop %v689
    %v692 = vmul.f32 %v681, %v690
    %v693 = vmul.f32 %v683, %v691
    %695 = vrot.lane.b32.xlu0 %v186, 112
    %v696 = vpop.permute.xlu0 %695
    %v699 = vsel %vm347, %v692, 0
    %701 = vmatprep.subr.mxu0 0.0
    %702 = vmatpush1.msra.mxu0 %v696
    %703 = vmatprep.subr.mxu0 0.0
    %704 = vmatpush1.msra.mxu0 0.0
    %705 = vmatprep.subr.mxu0 0.0
    %706 = vmatpush1.msra.mxu0 0.0
    %707 = vmatprep.subr.mxu0 0.0
    %708 = vmatpush1.msra.mxu0 0.0
    %709 = vmatprep.subr.mxu0 0.0
    %710 = vmatpush1.msra.mxu0 0.0
    %711 = vmatprep.subr.mxu0 0.0
    %712 = vmatpush1.msra.mxu0 0.0
    %713 = vmatprep.subr.mxu0 0.0
    %714 = vmatpush1.msra.mxu0 0.0
    %715 = vmatprep.subr.mxu0 0.0
    %716 = vmatpush1.msra.mxu0 0.0
    %717 = vmatprep.subr.mxu0 0.0
    %718 = vmatpush1.msra.mxu0 0.0
    %719 = vmatprep.subr.mxu0 0.0
    %720 = vmatpush1.msra.mxu0 0.0
    %721 = vmatprep.subr.mxu0 0.0
    %722 = vmatpush1.msra.mxu0 0.0
    %723 = vmatprep.subr.mxu0 0.0
    %724 = vmatpush1.msra.mxu0 0.0
    %725 = vmatprep.subr.mxu0 0.0
    %726 = vmatpush1.msra.mxu0 0.0
    %727 = vmatprep.subr.mxu0 0.0
    %728 = vmatpush1.msra.mxu0 0.0
    %729 = vmatprep.subr.mxu0 0.0
    %730 = vmatpush1.msra.mxu0 0.0
    %731 = vmatprep.subr.mxu0 0.0
    %732 = vmatpush1.msra.mxu0 0.0
    %733 = vmatprep.subr.mxu0 0.0
    %734 = vmatpush1.msra.mxu0 0.0
    %735 = vmatprep.subr.mxu0 0.0
    %736 = vmatpush1.msra.mxu0 0.0
    %737 = vmatprep.subr.mxu0 0.0
    %738 = vmatpush1.msra.mxu0 0.0
    %739 = vmatprep.subr.mxu0 0.0
    %740 = vmatpush1.msra.mxu0 0.0
    %741 = vmatprep.subr.mxu0 0.0
    %742 = vmatpush1.msra.mxu0 0.0
    %743 = vmatprep.subr.mxu0 0.0
    %744 = vmatpush1.msra.mxu0 0.0
    %745 = vmatprep.subr.mxu0 0.0
    %746 = vmatpush1.msra.mxu0 0.0
    %747 = vmatprep.subr.mxu0 0.0
    %748 = vmatpush1.msra.mxu0 0.0
    %749 = vmatprep.subr.mxu0 0.0
    %750 = vmatpush1.msra.mxu0 0.0
    %751 = vmatprep.subr.mxu0 0.0
    %752 = vmatpush1.msra.mxu0 0.0
    %753 = vmatprep.subr.mxu0 0.0
    %754 = vmatpush1.msra.mxu0 0.0
    %755 = vmatprep.subr.mxu0 0.0
    %756 = vmatpush1.msra.mxu0 0.0
    %757 = vmatprep.subr.mxu0 0.0
    %758 = vmatpush1.msra.mxu0 0.0
    %759 = vmatprep.subr.mxu0 0.0
    %760 = vmatpush1.msra.mxu0 0.0
    %761 = vmatprep.subr.mxu0 0.0
    %762 = vmatpush1.msra.mxu0 0.0
    %763 = vmatprep.subr.mxu0 0.0
    %764 = vmatpush1.msra.mxu0 0.0
    %765 = vmatprep.mubr.f32.mxu0 0.0
    %766 = vmatmul.mubr.f32.gmra.mrb[0].mxu0 %v699
    %v767 = vpop.f32.mrb[0].mxu0
    %v768 = vadd.f32 0.0, %v767
    %v769 = vpop.f32.mrb[0].mxu0
    %770 = vdwg.mxu0
    %772 = vrot.lane.b32.xlu0 %v191, 112
    %v773 = vpop.permute.xlu0 %772
    %v776 = vsel %vm347, %v693, 0
    %778 = vmatprep.subr.mxu0 0.0
    %779 = vmatpush1.msra.mxu0 %v773
    %780 = vmatprep.subr.mxu0 0.0
    %781 = vmatpush1.msra.mxu0 0.0
    %782 = vmatprep.subr.mxu0 0.0
    %783 = vmatpush1.msra.mxu0 0.0
    %784 = vmatprep.subr.mxu0 0.0
    %785 = vmatpush1.msra.mxu0 0.0
    %786 = vmatprep.subr.mxu0 0.0
    %787 = vmatpush1.msra.mxu0 0.0
    %788 = vmatprep.subr.mxu0 0.0
    %789 = vmatpush1.msra.mxu0 0.0
    %790 = vmatprep.subr.mxu0 0.0
    %791 = vmatpush1.msra.mxu0 0.0
    %792 = vmatprep.subr.mxu0 0.0
    %793 = vmatpush1.msra.mxu0 0.0
    %794 = vmatprep.subr.mxu0 0.0
    %795 = vmatpush1.msra.mxu0 0.0
    %796 = vmatprep.subr.mxu0 0.0
    %797 = vmatpush1.msra.mxu0 0.0
    %798 = vmatprep.subr.mxu0 0.0
    %799 = vmatpush1.msra.mxu0 0.0
    %800 = vmatprep.subr.mxu0 0.0
    %801 = vmatpush1.msra.mxu0 0.0
    %802 = vmatprep.subr.mxu0 0.0
    %803 = vmatpush1.msra.mxu0 0.0
    %804 = vmatprep.subr.mxu0 0.0
    %805 = vmatpush1.msra.mxu0 0.0
    %806 = vmatprep.subr.mxu0 0.0
    %807 = vmatpush1.msra.mxu0 0.0
    %808 = vmatprep.subr.mxu0 0.0
    %809 = vmatpush1.msra.mxu0 0.0
    %810 = vmatprep.subr.mxu0 0.0
    %811 = vmatpush1.msra.mxu0 0.0
    %812 = vmatprep.subr.mxu0 0.0
    %813 = vmatpush1.msra.mxu0 0.0
    %814 = vmatprep.subr.mxu0 0.0
    %815 = vmatpush1.msra.mxu0 0.0
    %816 = vmatprep.subr.mxu0 0.0
    %817 = vmatpush1.msra.mxu0 0.0
    %818 = vmatprep.subr.mxu0 0.0
    %819 = vmatpush1.msra.mxu0 0.0
    %820 = vmatprep.subr.mxu0 0.0
    %821 = vmatpush1.msra.mxu0 0.0
    %822 = vmatprep.subr.mxu0 0.0
    %823 = vmatpush1.msra.mxu0 0.0
    %824 = vmatprep.subr.mxu0 0.0
    %825 = vmatpush1.msra.mxu0 0.0
    %826 = vmatprep.subr.mxu0 0.0
    %827 = vmatpush1.msra.mxu0 0.0
    %828 = vmatprep.subr.mxu0 0.0
    %829 = vmatpush1.msra.mxu0 0.0
    %830 = vmatprep.subr.mxu0 0.0
    %831 = vmatpush1.msra.mxu0 0.0
    %832 = vmatprep.subr.mxu0 0.0
    %833 = vmatpush1.msra.mxu0 0.0
    %834 = vmatprep.subr.mxu0 0.0
    %835 = vmatpush1.msra.mxu0 0.0
    %836 = vmatprep.subr.mxu0 0.0
    %837 = vmatpush1.msra.mxu0 0.0
    %838 = vmatprep.subr.mxu0 0.0
    %839 = vmatpush1.msra.mxu0 0.0
    %840 = vmatprep.subr.mxu0 0.0
    %841 = vmatpush1.msra.mxu0 0.0
    %842 = vmatprep.mubr.f32.mxu0 0.0
    %843 = vmatmul.mubr.f32.gmra.mrb[0].mxu0 %v776
    %v844 = vpop.f32.mrb[0].mxu0
    %v845 = vadd.f32 0.0, %v844
    %v846 = vpop.f32.mrb[0].mxu0
    %847 = vdwg.mxu0
    %848 = vrot.lane.b32.xlu0 %v109, 96
    %v849 = vpop.permute.xlu0 %848
    %850 = vrot.lane.b32.xlu0 %v111, 96
    %v851 = vpop.permute.xlu0 %850
    %v852 = vsel %vm194, %v849, 0
    %v854 = vsel %vm194, %v851, 0
    %856 = vmatprep.subr.mxu0 0.0
    %857 = vmatpush1.xpose.msra.mxu0 %v854
    %858 = vmatprep.subr.mxu0 0.0
    %859 = vmatpush1.xpose.msra.mxu0 0.0
    %860 = vmatprep.subr.mxu0 0.0
    %861 = vmatpush1.xpose.msra.mxu0 0.0
    %862 = vmatprep.subr.mxu0 0.0
    %863 = vmatpush1.xpose.msra.mxu0 0.0
    %864 = vmatprep.subr.mxu0 0.0
    %865 = vmatpush1.xpose.msra.mxu0 0.0
    %866 = vmatprep.subr.mxu0 0.0
    %867 = vmatpush1.xpose.msra.mxu0 0.0
    %868 = vmatprep.subr.mxu0 0.0
    %869 = vmatpush1.xpose.msra.mxu0 0.0
    %870 = vmatprep.subr.mxu0 0.0
    %871 = vmatpush1.xpose.msra.mxu0 0.0
    %872 = vmatprep.subr.mxu0 0.0
    %873 = vmatpush1.xpose.msra.mxu0 0.0
    %874 = vmatprep.subr.mxu0 0.0
    %875 = vmatpush1.xpose.msra.mxu0 0.0
    %876 = vmatprep.subr.mxu0 0.0
    %877 = vmatpush1.xpose.msra.mxu0 0.0
    %878 = vmatprep.subr.mxu0 0.0
    %879 = vmatpush1.xpose.msra.mxu0 0.0
    %880 = vmatprep.subr.mxu0 0.0
    %881 = vmatpush1.xpose.msra.mxu0 0.0
    %882 = vmatprep.subr.mxu0 0.0
    %883 = vmatpush1.xpose.msra.mxu0 0.0
    %884 = vmatprep.subr.mxu0 0.0
    %885 = vmatpush1.xpose.msra.mxu0 0.0
    %886 = vmatprep.subr.mxu0 0.0
    %887 = vmatpush1.xpose.msra.mxu0 0.0
    %888 = vmatprep.subr.mxu0 0.0
    %889 = vmatpush1.xpose.msra.mxu0 0.0
    %890 = vmatprep.subr.mxu0 0.0
    %891 = vmatpush1.xpose.msra.mxu0 0.0
    %892 = vmatprep.subr.mxu0 0.0
    %893 = vmatpush1.xpose.msra.mxu0 0.0
    %894 = vmatprep.subr.mxu0 0.0
    %895 = vmatpush1.xpose.msra.mxu0 0.0
    %896 = vmatprep.subr.mxu0 0.0
    %897 = vmatpush1.xpose.msra.mxu0 0.0
    %898 = vmatprep.subr.mxu0 0.0
    %899 = vmatpush1.xpose.msra.mxu0 0.0
    %900 = vmatprep.subr.mxu0 0.0
    %901 = vmatpush1.xpose.msra.mxu0 0.0
    %902 = vmatprep.subr.mxu0 0.0
    %903 = vmatpush1.xpose.msra.mxu0 0.0
    %904 = vmatprep.subr.mxu0 0.0
    %905 = vmatpush1.xpose.msra.mxu0 0.0
    %906 = vmatprep.subr.mxu0 0.0
    %907 = vmatpush1.xpose.msra.mxu0 0.0
    %908 = vmatprep.subr.mxu0 0.0
    %909 = vmatpush1.xpose.msra.mxu0 0.0
    %910 = vmatprep.subr.mxu0 0.0
    %911 = vmatpush1.xpose.msra.mxu0 0.0
    %912 = vmatprep.subr.mxu0 0.0
    %913 = vmatpush1.xpose.msra.mxu0 0.0
    %914 = vmatprep.subr.mxu0 0.0
    %915 = vmatpush1.xpose.msra.mxu0 0.0
    %916 = vmatprep.subr.mxu0 0.0
    %917 = vmatpush1.xpose.msra.mxu0 0.0
    %918 = vmatprep.subr.mxu0 0.0
    %919 = vmatpush1.xpose.msra.mxu0 0.0
    %920 = vmatprep.mubr.f32.mxu0 0.0
    %921 = vmatmul.mubr.f32.gmra.mrb[0].mxu0 %v852
    %v922 = vpop.f32.mrb[0].mxu0
    %v923 = vadd.f32 0.0, %v922
    %v924 = vpop.f32.mrb[0].mxu0
    %925 = vdwg.mxu0
    %926 = vrot.lane.b32.xlu0 %v115, 96
    %v927 = vpop.permute.xlu0 %926
    %928 = vrot.lane.b32.xlu0 %v117, 96
    %v929 = vpop.permute.xlu0 %928
    %v930 = vsel %vm194, %v927, 0
    %v932 = vsel %vm194, %v929, 0
    %934 = vmatprep.subr.mxu0 0.0
    %935 = vmatpush1.xpose.msra.mxu0 %v932
    %936 = vmatprep.subr.mxu0 0.0
    %937 = vmatpush1.xpose.msra.mxu0 0.0
    %938 = vmatprep.subr.mxu0 0.0
    %939 = vmatpush1.xpose.msra.mxu0 0.0
    %940 = vmatprep.subr.mxu0 0.0
    %941 = vmatpush1.xpose.msra.mxu0 0.0
    %942 = vmatprep.subr.mxu0 0.0
    %943 = vmatpush1.xpose.msra.mxu0 0.0
    %944 = vmatprep.subr.mxu0 0.0
    %945 = vmatpush1.xpose.msra.mxu0 0.0
    %946 = vmatprep.subr.mxu0 0.0
    %947 = vmatpush1.xpose.msra.mxu0 0.0
    %948 = vmatprep.subr.mxu0 0.0
    %949 = vmatpush1.xpose.msra.mxu0 0.0
    %950 = vmatprep.subr.mxu0 0.0
    %951 = vmatpush1.xpose.msra.mxu0 0.0
    %952 = vmatprep.subr.mxu0 0.0
    %953 = vmatpush1.xpose.msra.mxu0 0.0
    %954 = vmatprep.subr.mxu0 0.0
    %955 = vmatpush1.xpose.msra.mxu0 0.0
    %956 = vmatprep.subr.mxu0 0.0
    %957 = vmatpush1.xpose.msra.mxu0 0.0
    %958 = vmatprep.subr.mxu0 0.0
    %959 = vmatpush1.xpose.msra.mxu0 0.0
    %960 = vmatprep.subr.mxu0 0.0
    %961 = vmatpush1.xpose.msra.mxu0 0.0
    %962 = vmatprep.subr.mxu0 0.0
    %963 = vmatpush1.xpose.msra.mxu0 0.0
    %964 = vmatprep.subr.mxu0 0.0
    %965 = vmatpush1.xpose.msra.mxu0 0.0
    %966 = vmatprep.subr.mxu0 0.0
    %967 = vmatpush1.xpose.msra.mxu0 0.0
    %968 = vmatprep.subr.mxu0 0.0
    %969 = vmatpush1.xpose.msra.mxu0 0.0
    %970 = vmatprep.subr.mxu0 0.0
    %971 = vmatpush1.xpose.msra.mxu0 0.0
    %972 = vmatprep.subr.mxu0 0.0
    %973 = vmatpush1.xpose.msra.mxu0 0.0
    %974 = vmatprep.subr.mxu0 0.0
    %975 = vmatpush1.xpose.msra.mxu0 0.0
    %976 = vmatprep.subr.mxu0 0.0
    %977 = vmatpush1.xpose.msra.mxu0 0.0
    %978 = vmatprep.subr.mxu0 0.0
    %979 = vmatpush1.xpose.msra.mxu0 0.0
    %980 = vmatprep.subr.mxu0 0.0
    %981 = vmatpush1.xpose.msra.mxu0 0.0
    %982 = vmatprep.subr.mxu0 0.0
    %983 = vmatpush1.xpose.msra.mxu0 0.0
    %984 = vmatprep.subr.mxu0 0.0
    %985 = vmatpush1.xpose.msra.mxu0 0.0
    %986 = vmatprep.subr.mxu0 0.0
    %987 = vmatpush1.xpose.msra.mxu0 0.0
    %988 = vmatprep.subr.mxu0 0.0
    %989 = vmatpush1.xpose.msra.mxu0 0.0
    %990 = vmatprep.subr.mxu0 0.0
    %991 = vmatpush1.xpose.msra.mxu0 0.0
    %992 = vmatprep.subr.mxu0 0.0
    %993 = vmatpush1.xpose.msra.mxu0 0.0
    %994 = vmatprep.subr.mxu0 0.0
    %995 = vmatpush1.xpose.msra.mxu0 0.0
    %996 = vmatprep.subr.mxu0 0.0
    %997 = vmatpush1.xpose.msra.mxu0 0.0
    %998 = vmatprep.mubr.f32.mxu0 0.0
    %999 = vmatmul.mubr.f32.gmra.mrb[0].mxu0 %v930
    %v1000 = vpop.f32.mrb[0].mxu0
    %v1001 = vadd.f32 0.0, %v1000
    %v1002 = vpop.f32.mrb[0].mxu0
    %1003 = vdwg.mxu0
    %v1004 = vsel %vm347, %v923, -inf
    %1005 = vmax.xlane.f32.xlu0 %v1004
    %v1006 = vpop.xlane.xlu0 %1005
    %v1007 = vsel %vm347, %v1001, -inf
    %1008 = vmax.xlane.f32.xlu0 %v1007
    %v1009 = vpop.xlane.xlu0 %1008
    %v1010 = vsub.f32 %v923, %v1006
    %v1011 = vsub.f32 %v1001, %v1009
    %v1012 = vmul.f32 %v1010, 1.442695
    %v1013 = vpow.pop %v1012
    %v1014 = vmul.f32 %v1011, 1.442695
    %v1015 = vpow.pop %v1014
    %v1016 = vsel %vm347, %v1013, 0.0
    %1017 = vadd.xlane.f32.xlu0 %v1016
    %v1018 = vpop.xlane.xlu0 %1017
    %v1019 = vsel %vm347, %v1015, 0.0
    %1020 = vadd.xlane.f32.xlu0 %v1019
    %v1021 = vpop.xlane.xlu0 %1020
    %v1022 = vrcp.pop %v1018
    %v1023 = vrcp.pop %v1021
    %v1024 = vmul.f32 %v1013, %v1022
    %v1025 = vmul.f32 %v1015, %v1023
    %1026 = vrot.lane.b32.xlu0 %v186, 96
    %v1027 = vpop.permute.xlu0 %1026
    %v1030 = vsel %vm347, %v1024, 0
    %1032 = vmatprep.subr.mxu0 0.0
    %1033 = vmatpush1.msra.mxu0 %v1027
    %1034 = vmatprep.subr.mxu0 0.0
    %1035 = vmatpush1.msra.mxu0 0.0
    %1036 = vmatprep.subr.mxu0 0.0
    %1037 = vmatpush1.msra.mxu0 0.0
    %1038 = vmatprep.subr.mxu0 0.0
    %1039 = vmatpush1.msra.mxu0 0.0
    %1040 = vmatprep.subr.mxu0 0.0
    %1041 = vmatpush1.msra.mxu0 0.0
    %1042 = vmatprep.subr.mxu0 0.0
    %1043 = vmatpush1.msra.mxu0 0.0
    %1044 = vmatprep.subr.mxu0 0.0
    %1045 = vmatpush1.msra.mxu0 0.0
    %1046 = vmatprep.subr.mxu0 0.0
    %1047 = vmatpush1.msra.mxu0 0.0
    %1048 = vmatprep.subr.mxu0 0.0
    %1049 = vmatpush1.msra.mxu0 0.0
    %1050 = vmatprep.subr.mxu0 0.0
    %1051 = vmatpush1.msra.mxu0 0.0
    %1052 = vmatprep.subr.mxu0 0.0
    %1053 = vmatpush1.msra.mxu0 0.0
    %1054 = vmatprep.subr.mxu0 0.0
    %1055 = vmatpush1.msra.mxu0 0.0
    %1056 = vmatprep.subr.mxu0 0.0
    %1057 = vmatpush1.msra.mxu0 0.0
    %1058 = vmatprep.subr.mxu0 0.0
    %1059 = vmatpush1.msra.mxu0 0.0
    %1060 = vmatprep.subr.mxu0 0.0
    %1061 = vmatpush1.msra.mxu0 0.0
    %1062 = vmatprep.subr.mxu0 0.0
    %1063 = vmatpush1.msra.mxu0 0.0
    %1064 = vmatprep.subr.mxu0 0.0
    %1065 = vmatpush1.msra.mxu0 0.0
    %1066 = vmatprep.subr.mxu0 0.0
    %1067 = vmatpush1.msra.mxu0 0.0
    %1068 = vmatprep.subr.mxu0 0.0
    %1069 = vmatpush1.msra.mxu0 0.0
    %1070 = vmatprep.subr.mxu0 0.0
    %1071 = vmatpush1.msra.mxu0 0.0
    %1072 = vmatprep.subr.mxu0 0.0
    %1073 = vmatpush1.msra.mxu0 0.0
    %1074 = vmatprep.subr.mxu0 0.0
    %1075 = vmatpush1.msra.mxu0 0.0
    %1076 = vmatprep.subr.mxu0 0.0
    %1077 = vmatpush1.msra.mxu0 0.0
    %1078 = vmatprep.subr.mxu0 0.0
    %1079 = vmatpush1.msra.mxu0 0.0
    %1080 = vmatprep.subr.mxu0 0.0
    %1081 = vmatpush1.msra.mxu0 0.0
    %1082 = vmatprep.subr.mxu0 0.0
    %1083 = vmatpush1.msra.mxu0 0.0
    %1084 = vmatprep.subr.mxu0 0.0
    %1085 = vmatpush1.msra.mxu0 0.0
    %1086 = vmatprep.subr.mxu0 0.0
    %1087 = vmatpush1.msra.mxu0 0.0
    %1088 = vmatprep.subr.mxu0 0.0
    %1089 = vmatpush1.msra.mxu0 0.0
    %1090 = vmatprep.subr.mxu0 0.0
    %1091 = vmatpush1.msra.mxu0 0.0
    %1092 = vmatprep.subr.mxu0 0.0
    %1093 = vmatpush1.msra.mxu0 0.0
    %1094 = vmatprep.subr.mxu0 0.0
    %1095 = vmatpush1.msra.mxu0 0.0
    %1096 = vmatprep.mubr.f32.mxu0 0.0
    %1097 = vmatmul.mubr.f32.gmra.mrb[0].mxu0 %v1030
    %v1098 = vpop.f32.mrb[0].mxu0
    %v1099 = vadd.f32 0.0, %v1098
    %v1100 = vpop.f32.mrb[0].mxu0
    %1101 = vdwg.mxu0
    %1102 = vrot.lane.b32.xlu0 %v191, 96
    %v1103 = vpop.permute.xlu0 %1102
    %v1106 = vsel %vm347, %v1025, 0
    %1108 = vmatprep.subr.mxu0 0.0
    %1109 = vmatpush1.msra.mxu0 %v1103
    %1110 = vmatprep.subr.mxu0 0.0
    %1111 = vmatpush1.msra.mxu0 0.0
    %1112 = vmatprep.subr.mxu0 0.0
    %1113 = vmatpush1.msra.mxu0 0.0
    %1114 = vmatprep.subr.mxu0 0.0
    %1115 = vmatpush1.msra.mxu0 0.0
    %1116 = vmatprep.subr.mxu0 0.0
    %1117 = vmatpush1.msra.mxu0 0.0
    %1118 = vmatprep.subr.mxu0 0.0
    %1119 = vmatpush1.msra.mxu0 0.0
    %1120 = vmatprep.subr.mxu0 0.0
    %1121 = vmatpush1.msra.mxu0 0.0
    %1122 = vmatprep.subr.mxu0 0.0
    %1123 = vmatpush1.msra.mxu0 0.0
    %1124 = vmatprep.subr.mxu0 0.0
    %1125 = vmatpush1.msra.mxu0 0.0
    %1126 = vmatprep.subr.mxu0 0.0
    %1127 = vmatpush1.msra.mxu0 0.0
    %1128 = vmatprep.subr.mxu0 0.0
    %1129 = vmatpush1.msra.mxu0 0.0
    %1130 = vmatprep.subr.mxu0 0.0
    %1131 = vmatpush1.msra.mxu0 0.0
    %1132 = vmatprep.subr.mxu0 0.0
    %1133 = vmatpush1.msra.mxu0 0.0
    %1134 = vmatprep.subr.mxu0 0.0
    %1135 = vmatpush1.msra.mxu0 0.0
    %1136 = vmatprep.subr.mxu0 0.0
    %1137 = vmatpush1.msra.mxu0 0.0
    %1138 = vmatprep.subr.mxu0 0.0
    %1139 = vmatpush1.msra.mxu0 0.0
    %1140 = vmatprep.subr.mxu0 0.0
    %1141 = vmatpush1.msra.mxu0 0.0
    %1142 = vmatprep.subr.mxu0 0.0
    %1143 = vmatpush1.msra.mxu0 0.0
    %1144 = vmatprep.subr.mxu0 0.0
    %1145 = vmatpush1.msra.mxu0 0.0
    %1146 = vmatprep.subr.mxu0 0.0
    %1147 = vmatpush1.msra.mxu0 0.0
    %1148 = vmatprep.subr.mxu0 0.0
    %1149 = vmatpush1.msra.mxu0 0.0
    %1150 = vmatprep.subr.mxu0 0.0
    %1151 = vmatpush1.msra.mxu0 0.0
    %1152 = vmatprep.subr.mxu0 0.0
    %1153 = vmatpush1.msra.mxu0 0.0
    %1154 = vmatprep.subr.mxu0 0.0
    %1155 = vmatpush1.msra.mxu0 0.0
    %1156 = vmatprep.subr.mxu0 0.0
    %1157 = vmatpush1.msra.mxu0 0.0
    %1158 = vmatprep.subr.mxu0 0.0
    %1159 = vmatpush1.msra.mxu0 0.0
    %1160 = vmatprep.subr.mxu0 0.0
    %1161 = vmatpush1.msra.mxu0 0.0
    %1162 = vmatprep.subr.mxu0 0.0
    %1163 = vmatpush1.msra.mxu0 0.0
    %1164 = vmatprep.subr.mxu0 0.0
    %1165 = vmatpush1.msra.mxu0 0.0
    %1166 = vmatprep.subr.mxu0 0.0
    %1167 = vmatpush1.msra.mxu0 0.0
    %1168 = vmatprep.subr.mxu0 0.0
    %1169 = vmatpush1.msra.mxu0 0.0
    %1170 = vmatprep.subr.mxu0 0.0
    %1171 = vmatpush1.msra.mxu0 0.0
    %1172 = vmatprep.mubr.f32.mxu0 0.0
    %1173 = vmatmul.mubr.f32.gmra.mrb[0].mxu0 %v1106
    %v1174 = vpop.f32.mrb[0].mxu0
    %v1175 = vadd.f32 0.0, %v1174
    %v1176 = vpop.f32.mrb[0].mxu0
    %1177 = vdwg.mxu0
    %1178 = vrot.lane.b32.xlu0 %v109, 80
    %v1179 = vpop.permute.xlu0 %1178
    %1180 = vrot.lane.b32.xlu0 %v111, 80
    %v1181 = vpop.permute.xlu0 %1180
    %v1182 = vsel %vm194, %v1179, 0
    %v1184 = vsel %vm194, %v1181, 0
    %1186 = vmatprep.subr.mxu0 0.0
    %1187 = vmatpush1.xpose.msra.mxu0 %v1184
    %1188 = vmatprep.subr.mxu0 0.0
    %1189 = vmatpush1.xpose.msra.mxu0 0.0
    %1190 = vmatprep.subr.mxu0 0.0
    %1191 = vmatpush1.xpose.msra.mxu0 0.0
    %1192 = vmatprep.subr.mxu0 0.0
    %1193 = vmatpush1.xpose.msra.mxu0 0.0
    %1194 = vmatprep.subr.mxu0 0.0
    %1195 = vmatpush1.xpose.msra.mxu0 0.0
    %1196 = vmatprep.subr.mxu0 0.0
    %1197 = vmatpush1.xpose.msra.mxu0 0.0
    %1198 = vmatprep.subr.mxu0 0.0
    %1199 = vmatpush1.xpose.msra.mxu0 0.0
    %1200 = vmatprep.subr.mxu0 0.0
    %1201 = vmatpush1.xpose.msra.mxu0 0.0
    %1202 = vmatprep.subr.mxu0 0.0
    %1203 = vmatpush1.xpose.msra.mxu0 0.0
    %1204 = vmatprep.subr.mxu0 0.0
    %1205 = vmatpush1.xpose.msra.mxu0 0.0
    %1206 = vmatprep.subr.mxu0 0.0
    %1207 = vmatpush1.xpose.msra.mxu0 0.0
    %1208 = vmatprep.subr.mxu0 0.0
    %1209 = vmatpush1.xpose.msra.mxu0 0.0
    %1210 = vmatprep.subr.mxu0 0.0
    %1211 = vmatpush1.xpose.msra.mxu0 0.0
    %1212 = vmatprep.subr.mxu0 0.0
    %1213 = vmatpush1.xpose.msra.mxu0 0.0
    %1214 = vmatprep.subr.mxu0 0.0
    %1215 = vmatpush1.xpose.msra.mxu0 0.0
    %1216 = vmatprep.subr.mxu0 0.0
    %1217 = vmatpush1.xpose.msra.mxu0 0.0
    %1218 = vmatprep.subr.mxu0 0.0
    %1219 = vmatpush1.xpose.msra.mxu0 0.0
    %1220 = vmatprep.subr.mxu0 0.0
    %1221 = vmatpush1.xpose.msra.mxu0 0.0
    %1222 = vmatprep.subr.mxu0 0.0
    %1223 = vmatpush1.xpose.msra.mxu0 0.0
    %1224 = vmatprep.subr.mxu0 0.0
    %1225 = vmatpush1.xpose.msra.mxu0 0.0
    %1226 = vmatprep.subr.mxu0 0.0
    %1227 = vmatpush1.xpose.msra.mxu0 0.0
    %1228 = vmatprep.subr.mxu0 0.0
    %1229 = vmatpush1.xpose.msra.mxu0 0.0
    %1230 = vmatprep.subr.mxu0 0.0
    %1231 = vmatpush1.xpose.msra.mxu0 0.0
    %1232 = vmatprep.subr.mxu0 0.0
    %1233 = vmatpush1.xpose.msra.mxu0 0.0
    %1234 = vmatprep.subr.mxu0 0.0
    %1235 = vmatpush1.xpose.msra.mxu0 0.0
    %1236 = vmatprep.subr.mxu0 0.0
    %1237 = vmatpush1.xpose.msra.mxu0 0.0
    %1238 = vmatprep.subr.mxu0 0.0
    %1239 = vmatpush1.xpose.msra.mxu0 0.0
    %1240 = vmatprep.subr.mxu0 0.0
    %1241 = vmatpush1.xpose.msra.mxu0 0.0
    %1242 = vmatprep.subr.mxu0 0.0
    %1243 = vmatpush1.xpose.msra.mxu0 0.0
    %1244 = vmatprep.subr.mxu0 0.0
    %1245 = vmatpush1.xpose.msra.mxu0 0.0
    %1246 = vmatprep.subr.mxu0 0.0
    %1247 = vmatpush1.xpose.msra.mxu0 0.0
    %1248 = vmatprep.subr.mxu0 0.0
    %1249 = vmatpush1.xpose.msra.mxu0 0.0
    %1250 = vmatprep.mubr.f32.mxu0 0.0
    %1251 = vmatmul.mubr.f32.gmra.mrb[0].mxu0 %v1182
    %v1252 = vpop.f32.mrb[0].mxu0
    %v1253 = vadd.f32 0.0, %v1252
    %v1254 = vpop.f32.mrb[0].mxu0
    %1255 = vdwg.mxu0
    %1256 = vrot.lane.b32.xlu0 %v115, 80
    %v1257 = vpop.permute.xlu0 %1256
    %1258 = vrot.lane.b32.xlu0 %v117, 80
    %v1259 = vpop.permute.xlu0 %1258
    %v1260 = vsel %vm194, %v1257, 0
    %v1262 = vsel %vm194, %v1259, 0
    %1264 = vmatprep.subr.mxu0 0.0
    %1265 = vmatpush1.xpose.msra.mxu0 %v1262
    %1266 = vmatprep.subr.mxu0 0.0
    %1267 = vmatpush1.xpose.msra.mxu0 0.0
    %1268 = vmatprep.subr.mxu0 0.0
    %1269 = vmatpush1.xpose.msra.mxu0 0.0
    %1270 = vmatprep.subr.mxu0 0.0
    %1271 = vmatpush1.xpose.msra.mxu0 0.0
    %1272 = vmatprep.subr.mxu0 0.0
    %1273 = vmatpush1.xpose.msra.mxu0 0.0
    %1274 = vmatprep.subr.mxu0 0.0
    %1275 = vmatpush1.xpose.msra.mxu0 0.0
    %1276 = vmatprep.subr.mxu0 0.0
    %1277 = vmatpush1.xpose.msra.mxu0 0.0
    %1278 = vmatprep.subr.mxu0 0.0
    %1279 = vmatpush1.xpose.msra.mxu0 0.0
    %1280 = vmatprep.subr.mxu0 0.0
    %1281 = vmatpush1.xpose.msra.mxu0 0.0
    %1282 = vmatprep.subr.mxu0 0.0
    %1283 = vmatpush1.xpose.msra.mxu0 0.0
    %1284 = vmatprep.subr.mxu0 0.0
    %1285 = vmatpush1.xpose.msra.mxu0 0.0
    %1286 = vmatprep.subr.mxu0 0.0
    %1287 = vmatpush1.xpose.msra.mxu0 0.0
    %1288 = vmatprep.subr.mxu0 0.0
    %1289 = vmatpush1.xpose.msra.mxu0 0.0
    %1290 = vmatprep.subr.mxu0 0.0
    %1291 = vmatpush1.xpose.msra.mxu0 0.0
    %1292 = vmatprep.subr.mxu0 0.0
    %1293 = vmatpush1.xpose.msra.mxu0 0.0
    %1294 = vmatprep.subr.mxu0 0.0
    %1295 = vmatpush1.xpose.msra.mxu0 0.0
    %1296 = vmatprep.subr.mxu0 0.0
    %1297 = vmatpush1.xpose.msra.mxu0 0.0
    %1298 = vmatprep.subr.mxu0 0.0
    %1299 = vmatpush1.xpose.msra.mxu0 0.0
    %1300 = vmatprep.subr.mxu0 0.0
    %1301 = vmatpush1.xpose.msra.mxu0 0.0
    %1302 = vmatprep.subr.mxu0 0.0
    %1303 = vmatpush1.xpose.msra.mxu0 0.0
    %1304 = vmatprep.subr.mxu0 0.0
    %1305 = vmatpush1.xpose.msra.mxu0 0.0
    %1306 = vmatprep.subr.mxu0 0.0
    %1307 = vmatpush1.xpose.msra.mxu0 0.0
    %1308 = vmatprep.subr.mxu0 0.0
    %1309 = vmatpush1.xpose.msra.mxu0 0.0
    %1310 = vmatprep.subr.mxu0 0.0
    %1311 = vmatpush1.xpose.msra.mxu0 0.0
    %1312 = vmatprep.subr.mxu0 0.0
    %1313 = vmatpush1.xpose.msra.mxu0 0.0
    %1314 = vmatprep.subr.mxu0 0.0
    %1315 = vmatpush1.xpose.msra.mxu0 0.0
    %1316 = vmatprep.subr.mxu0 0.0
    %1317 = vmatpush1.xpose.msra.mxu0 0.0
    %1318 = vmatprep.subr.mxu0 0.0
    %1319 = vmatpush1.xpose.msra.mxu0 0.0
    %1320 = vmatprep.subr.mxu0 0.0
    %1321 = vmatpush1.xpose.msra.mxu0 0.0
    %1322 = vmatprep.subr.mxu0 0.0
    %1323 = vmatpush1.xpose.msra.mxu0 0.0
    %1324 = vmatprep.subr.mxu0 0.0
    %1325 = vmatpush1.xpose.msra.mxu0 0.0
    %1326 = vmatprep.subr.mxu0 0.0
    %1327 = vmatpush1.xpose.msra.mxu0 0.0
    %1328 = vmatprep.mubr.f32.mxu0 0.0
    %1329 = vmatmul.mubr.f32.gmra.mrb[0].mxu0 %v1260
    %v1330 = vpop.f32.mrb[0].mxu0
    %v1331 = vadd.f32 0.0, %v1330
    %v1332 = vpop.f32.mrb[0].mxu0
    %1333 = vdwg.mxu0
    %v1334 = vsel %vm347, %v1253, -inf
    %1335 = vmax.xlane.f32.xlu0 %v1334
    %v1336 = vpop.xlane.xlu0 %1335
    %v1337 = vsel %vm347, %v1331, -inf
    %1338 = vmax.xlane.f32.xlu0 %v1337
    %v1339 = vpop.xlane.xlu0 %1338
    %v1340 = vsub.f32 %v1253, %v1336
    %v1341 = vsub.f32 %v1331, %v1339
    %v1342 = vmul.f32 %v1340, 1.442695
    %v1343 = vpow.pop %v1342
    %v1344 = vmul.f32 %v1341, 1.442695
    %v1345 = vpow.pop %v1344
    %v1346 = vsel %vm347, %v1343, 0.0
    %1347 = vadd.xlane.f32.xlu0 %v1346
    %v1348 = vpop.xlane.xlu0 %1347
    %v1349 = vsel %vm347, %v1345, 0.0
    %1350 = vadd.xlane.f32.xlu0 %v1349
    %v1351 = vpop.xlane.xlu0 %1350
    %v1352 = vrcp.pop %v1348
    %v1353 = vrcp.pop %v1351
    %v1354 = vmul.f32 %v1343, %v1352
    %v1355 = vmul.f32 %v1345, %v1353
    %1356 = vrot.lane.b32.xlu0 %v186, 80
    %v1357 = vpop.permute.xlu0 %1356
    %v1360 = vsel %vm347, %v1354, 0
    %1362 = vmatprep.subr.mxu0 0.0
    %1363 = vmatpush1.msra.mxu0 %v1357
    %1364 = vmatprep.subr.mxu0 0.0
    %1365 = vmatpush1.msra.mxu0 0.0
    %1366 = vmatprep.subr.mxu0 0.0
    %1367 = vmatpush1.msra.mxu0 0.0
    %1368 = vmatprep.subr.mxu0 0.0
    %1369 = vmatpush1.msra.mxu0 0.0
    %1370 = vmatprep.subr.mxu0 0.0
    %1371 = vmatpush1.msra.mxu0 0.0
    %1372 = vmatprep.subr.mxu0 0.0
    %1373 = vmatpush1.msra.mxu0 0.0
    %1374 = vmatprep.subr.mxu0 0.0
    %1375 = vmatpush1.msra.mxu0 0.0
    %1376 = vmatprep.subr.mxu0 0.0
    %1377 = vmatpush1.msra.mxu0 0.0
    %1378 = vmatprep.subr.mxu0 0.0
    %1379 = vmatpush1.msra.mxu0 0.0
    %1380 = vmatprep.subr.mxu0 0.0
    %1381 = vmatpush1.msra.mxu0 0.0
    %1382 = vmatprep.subr.mxu0 0.0
    %1383 = vmatpush1.msra.mxu0 0.0
    %1384 = vmatprep.subr.mxu0 0.0
    %1385 = vmatpush1.msra.mxu0 0.0
    %1386 = vmatprep.subr.mxu0 0.0
    %1387 = vmatpush1.msra.mxu0 0.0
    %1388 = vmatprep.subr.mxu0 0.0
    %1389 = vmatpush1.msra.mxu0 0.0
    %1390 = vmatprep.subr.mxu0 0.0
    %1391 = vmatpush1.msra.mxu0 0.0
    %1392 = vmatprep.subr.mxu0 0.0
    %1393 = vmatpush1.msra.mxu0 0.0
    %1394 = vmatprep.subr.mxu0 0.0
    %1395 = vmatpush1.msra.mxu0 0.0
    %1396 = vmatprep.subr.mxu0 0.0
    %1397 = vmatpush1.msra.mxu0 0.0
    %1398 = vmatprep.subr.mxu0 0.0
    %1399 = vmatpush1.msra.mxu0 0.0
    %1400 = vmatprep.subr.mxu0 0.0
    %1401 = vmatpush1.msra.mxu0 0.0
    %1402 = vmatprep.subr.mxu0 0.0
    %1403 = vmatpush1.msra.mxu0 0.0
    %1404 = vmatprep.subr.mxu0 0.0
    %1405 = vmatpush1.msra.mxu0 0.0
    %1406 = vmatprep.subr.mxu0 0.0
    %1407 = vmatpush1.msra.mxu0 0.0
    %1408 = vmatprep.subr.mxu0 0.0
    %1409 = vmatpush1.msra.mxu0 0.0
    %1410 = vmatprep.subr.mxu0 0.0
    %1411 = vmatpush1.msra.mxu0 0.0
    %1412 = vmatprep.subr.mxu0 0.0
    %1413 = vmatpush1.msra.mxu0 0.0
    %1414 = vmatprep.subr.mxu0 0.0
    %1415 = vmatpush1.msra.mxu0 0.0
    %1416 = vmatprep.subr.mxu0 0.0
    %1417 = vmatpush1.msra.mxu0 0.0
    %1418 = vmatprep.subr.mxu0 0.0
    %1419 = vmatpush1.msra.mxu0 0.0
    %1420 = vmatprep.subr.mxu0 0.0
    %1421 = vmatpush1.msra.mxu0 0.0
    %1422 = vmatprep.subr.mxu0 0.0
    %1423 = vmatpush1.msra.mxu0 0.0
    %1424 = vmatprep.subr.mxu0 0.0
    %1425 = vmatpush1.msra.mxu0 0.0
    %1426 = vmatprep.mubr.f32.mxu0 0.0
    %1427 = vmatmul.mubr.f32.gmra.mrb[0].mxu0 %v1360
    %v1428 = vpop.f32.mrb[0].mxu0
    %v1429 = vadd.f32 0.0, %v1428
    %v1430 = vpop.f32.mrb[0].mxu0
    %1431 = vdwg.mxu0
    %1432 = vrot.lane.b32.xlu0 %v191, 80
    %v1433 = vpop.permute.xlu0 %1432
    %v1436 = vsel %vm347, %v1355, 0
    %1438 = vmatprep.subr.mxu0 0.0
    %1439 = vmatpush1.msra.mxu0 %v1433
    %1440 = vmatprep.subr.mxu0 0.0
    %1441 = vmatpush1.msra.mxu0 0.0
    %1442 = vmatprep.subr.mxu0 0.0
    %1443 = vmatpush1.msra.mxu0 0.0
    %1444 = vmatprep.subr.mxu0 0.0
    %1445 = vmatpush1.msra.mxu0 0.0
    %1446 = vmatprep.subr.mxu0 0.0
    %1447 = vmatpush1.msra.mxu0 0.0
    %1448 = vmatprep.subr.mxu0 0.0
    %1449 = vmatpush1.msra.mxu0 0.0
    %1450 = vmatprep.subr.mxu0 0.0
    %1451 = vmatpush1.msra.mxu0 0.0
    %1452 = vmatprep.subr.mxu0 0.0
    %1453 = vmatpush1.msra.mxu0 0.0
    %1454 = vmatprep.subr.mxu0 0.0
    %1455 = vmatpush1.msra.mxu0 0.0
    %1456 = vmatprep.subr.mxu0 0.0
    %1457 = vmatpush1.msra.mxu0 0.0
    %1458 = vmatprep.subr.mxu0 0.0
    %1459 = vmatpush1.msra.mxu0 0.0
    %1460 = vmatprep.subr.mxu0 0.0
    %1461 = vmatpush1.msra.mxu0 0.0
    %1462 = vmatprep.subr.mxu0 0.0
    %1463 = vmatpush1.msra.mxu0 0.0
    %1464 = vmatprep.subr.mxu0 0.0
    %1465 = vmatpush1.msra.mxu0 0.0
    %1466 = vmatprep.subr.mxu0 0.0
    %1467 = vmatpush1.msra.mxu0 0.0
    %1468 = vmatprep.subr.mxu0 0.0
    %1469 = vmatpush1.msra.mxu0 0.0
    %1470 = vmatprep.subr.mxu0 0.0
    %1471 = vmatpush1.msra.mxu0 0.0
    %1472 = vmatprep.subr.mxu0 0.0
    %1473 = vmatpush1.msra.mxu0 0.0
    %1474 = vmatprep.subr.mxu0 0.0
    %1475 = vmatpush1.msra.mxu0 0.0
    %1476 = vmatprep.subr.mxu0 0.0
    %1477 = vmatpush1.msra.mxu0 0.0
    %1478 = vmatprep.subr.mxu0 0.0
    %1479 = vmatpush1.msra.mxu0 0.0
    %1480 = vmatprep.subr.mxu0 0.0
    %1481 = vmatpush1.msra.mxu0 0.0
    %1482 = vmatprep.subr.mxu0 0.0
    %1483 = vmatpush1.msra.mxu0 0.0
    %1484 = vmatprep.subr.mxu0 0.0
    %1485 = vmatpush1.msra.mxu0 0.0
    %1486 = vmatprep.subr.mxu0 0.0
    %1487 = vmatpush1.msra.mxu0 0.0
    %1488 = vmatprep.subr.mxu0 0.0
    %1489 = vmatpush1.msra.mxu0 0.0
    %1490 = vmatprep.subr.mxu0 0.0
    %1491 = vmatpush1.msra.mxu0 0.0
    %1492 = vmatprep.subr.mxu0 0.0
    %1493 = vmatpush1.msra.mxu0 0.0
    %1494 = vmatprep.subr.mxu0 0.0
    %1495 = vmatpush1.msra.mxu0 0.0
    %1496 = vmatprep.subr.mxu0 0.0
    %1497 = vmatpush1.msra.mxu0 0.0
    %1498 = vmatprep.subr.mxu0 0.0
    %1499 = vmatpush1.msra.mxu0 0.0
    %1500 = vmatprep.subr.mxu0 0.0
    %1501 = vmatpush1.msra.mxu0 0.0
    %1502 = vmatprep.mubr.f32.mxu0 0.0
    %1503 = vmatmul.mubr.f32.gmra.mrb[0].mxu0 %v1436
    %v1504 = vpop.f32.mrb[0].mxu0
    %v1505 = vadd.f32 0.0, %v1504
    %v1506 = vpop.f32.mrb[0].mxu0
    %1507 = vdwg.mxu0
    %1508 = vrot.lane.b32.xlu0 %v109, 64
    %v1509 = vpop.permute.xlu0 %1508
    %1510 = vrot.lane.b32.xlu0 %v111, 64
    %v1511 = vpop.permute.xlu0 %1510
    %v1512 = vsel %vm194, %v1509, 0
    %v1514 = vsel %vm194, %v1511, 0
    %1516 = vmatprep.subr.mxu0 0.0
    %1517 = vmatpush1.xpose.msra.mxu0 %v1514
    %1518 = vmatprep.subr.mxu0 0.0
    %1519 = vmatpush1.xpose.msra.mxu0 0.0
    %1520 = vmatprep.subr.mxu0 0.0
    %1521 = vmatpush1.xpose.msra.mxu0 0.0
    %1522 = vmatprep.subr.mxu0 0.0
    %1523 = vmatpush1.xpose.msra.mxu0 0.0
    %1524 = vmatprep.subr.mxu0 0.0
    %1525 = vmatpush1.xpose.msra.mxu0 0.0
    %1526 = vmatprep.subr.mxu0 0.0
    %1527 = vmatpush1.xpose.msra.mxu0 0.0
    %1528 = vmatprep.subr.mxu0 0.0
    %1529 = vmatpush1.xpose.msra.mxu0 0.0
    %1530 = vmatprep.subr.mxu0 0.0
    %1531 = vmatpush1.xpose.msra.mxu0 0.0
    %1532 = vmatprep.subr.mxu0 0.0
    %1533 = vmatpush1.xpose.msra.mxu0 0.0
    %1534 = vmatprep.subr.mxu0 0.0
    %1535 = vmatpush1.xpose.msra.mxu0 0.0
    %1536 = vmatprep.subr.mxu0 0.0
    %1537 = vmatpush1.xpose.msra.mxu0 0.0
    %1538 = vmatprep.subr.mxu0 0.0
    %1539 = vmatpush1.xpose.msra.mxu0 0.0
    %1540 = vmatprep.subr.mxu0 0.0
    %1541 = vmatpush1.xpose.msra.mxu0 0.0
    %1542 = vmatprep.subr.mxu0 0.0
    %1543 = vmatpush1.xpose.msra.mxu0 0.0
    %1544 = vmatprep.subr.mxu0 0.0
    %1545 = vmatpush1.xpose.msra.mxu0 0.0
    %1546 = vmatprep.subr.mxu0 0.0
    %1547 = vmatpush1.xpose.msra.mxu0 0.0
    %1548 = vmatprep.subr.mxu0 0.0
    %1549 = vmatpush1.xpose.msra.mxu0 0.0
    %1550 = vmatprep.subr.mxu0 0.0
    %1551 = vmatpush1.xpose.msra.mxu0 0.0
    %1552 = vmatprep.subr.mxu0 0.0
    %1553 = vmatpush1.xpose.msra.mxu0 0.0
    %1554 = vmatprep.subr.mxu0 0.0
    %1555 = vmatpush1.xpose.msra.mxu0 0.0
    %1556 = vmatprep.subr.mxu0 0.0
    %1557 = vmatpush1.xpose.msra.mxu0 0.0
    %1558 = vmatprep.subr.mxu0 0.0
    %1559 = vmatpush1.xpose.msra.mxu0 0.0
    %1560 = vmatprep.subr.mxu0 0.0
    %1561 = vmatpush1.xpose.msra.mxu0 0.0
    %1562 = vmatprep.subr.mxu0 0.0
    %1563 = vmatpush1.xpose.msra.mxu0 0.0
    %1564 = vmatprep.subr.mxu0 0.0
    %1565 = vmatpush1.xpose.msra.mxu0 0.0
    %1566 = vmatprep.subr.mxu0 0.0
    %1567 = vmatpush1.xpose.msra.mxu0 0.0
    %1568 = vmatprep.subr.mxu0 0.0
    %1569 = vmatpush1.xpose.msra.mxu0 0.0
    %1570 = vmatprep.subr.mxu0 0.0
    %1571 = vmatpush1.xpose.msra.mxu0 0.0
    %1572 = vmatprep.subr.mxu0 0.0
    %1573 = vmatpush1.xpose.msra.mxu0 0.0
    %1574 = vmatprep.subr.mxu0 0.0
    %1575 = vmatpush1.xpose.msra.mxu0 0.0
    %1576 = vmatprep.subr.mxu0 0.0
    %1577 = vmatpush1.xpose.msra.mxu0 0.0
    %1578 = vmatprep.subr.mxu0 0.0
    %1579 = vmatpush1.xpose.msra.mxu0 0.0
    %1580 = vmatprep.mubr.f32.mxu0 0.0
    %1581 = vmatmul.mubr.f32.gmra.mrb[0].mxu0 %v1512
    %v1582 = vpop.f32.mrb[0].mxu0
    %v1583 = vadd.f32 0.0, %v1582
    %v1584 = vpop.f32.mrb[0].mxu0
    %1585 = vdwg.mxu0
    %1586 = vrot.lane.b32.xlu0 %v115, 64
    %v1587 = vpop.permute.xlu0 %1586
    %1588 = vrot.lane.b32.xlu0 %v117, 64
    %v1589 = vpop.permute.xlu0 %1588
    %v1590 = vsel %vm194, %v1587, 0
    %v1592 = vsel %vm194, %v1589, 0
    %1594 = vmatprep.subr.mxu0 0.0
    %1595 = vmatpush1.xpose.msra.mxu0 %v1592
    %1596 = vmatprep.subr.mxu0 0.0
    %1597 = vmatpush1.xpose.msra.mxu0 0.0
    %1598 = vmatprep.subr.mxu0 0.0
    %1599 = vmatpush1.xpose.msra.mxu0 0.0
    %1600 = vmatprep.subr.mxu0 0.0
    %1601 = vmatpush1.xpose.msra.mxu0 0.0
    %1602 = vmatprep.subr.mxu0 0.0
    %1603 = vmatpush1.xpose.msra.mxu0 0.0
    %1604 = vmatprep.subr.mxu0 0.0
    %1605 = vmatpush1.xpose.msra.mxu0 0.0
    %1606 = vmatprep.subr.mxu0 0.0
    %1607 = vmatpush1.xpose.msra.mxu0 0.0
    %1608 = vmatprep.subr.mxu0 0.0
    %1609 = vmatpush1.xpose.msra.mxu0 0.0
    %1610 = vmatprep.subr.mxu0 0.0
    %1611 = vmatpush1.xpose.msra.mxu0 0.0
    %1612 = vmatprep.subr.mxu0 0.0
    %1613 = vmatpush1.xpose.msra.mxu0 0.0
    %1614 = vmatprep.subr.mxu0 0.0
    %1615 = vmatpush1.xpose.msra.mxu0 0.0
    %1616 = vmatprep.subr.mxu0 0.0
    %1617 = vmatpush1.xpose.msra.mxu0 0.0
    %1618 = vmatprep.subr.mxu0 0.0
    %1619 = vmatpush1.xpose.msra.mxu0 0.0
    %1620 = vmatprep.subr.mxu0 0.0
    %1621 = vmatpush1.xpose.msra.mxu0 0.0
    %1622 = vmatprep.subr.mxu0 0.0
    %1623 = vmatpush1.xpose.msra.mxu0 0.0
    %1624 = vmatprep.subr.mxu0 0.0
    %1625 = vmatpush1.xpose.msra.mxu0 0.0
    %1626 = vmatprep.subr.mxu0 0.0
    %1627 = vmatpush1.xpose.msra.mxu0 0.0
    %1628 = vmatprep.subr.mxu0 0.0
    %1629 = vmatpush1.xpose.msra.mxu0 0.0
    %1630 = vmatprep.subr.mxu0 0.0
    %1631 = vmatpush1.xpose.msra.mxu0 0.0
    %1632 = vmatprep.subr.mxu0 0.0
    %1633 = vmatpush1.xpose.msra.mxu0 0.0
    %1634 = vmatprep.subr.mxu0 0.0
    %1635 = vmatpush1.xpose.msra.mxu0 0.0
    %1636 = vmatprep.subr.mxu0 0.0
    %1637 = vmatpush1.xpose.msra.mxu0 0.0
    %1638 = vmatprep.subr.mxu0 0.0
    %1639 = vmatpush1.xpose.msra.mxu0 0.0
    %1640 = vmatprep.subr.mxu0 0.0
    %1641 = vmatpush1.xpose.msra.mxu0 0.0
    %1642 = vmatprep.subr.mxu0 0.0
    %1643 = vmatpush1.xpose.msra.mxu0 0.0
    %1644 = vmatprep.subr.mxu0 0.0
    %1645 = vmatpush1.xpose.msra.mxu0 0.0
    %1646 = vmatprep.subr.mxu0 0.0
    %1647 = vmatpush1.xpose.msra.mxu0 0.0
    %1648 = vmatprep.subr.mxu0 0.0
    %1649 = vmatpush1.xpose.msra.mxu0 0.0
    %1650 = vmatprep.subr.mxu0 0.0
    %1651 = vmatpush1.xpose.msra.mxu0 0.0
    %1652 = vmatprep.subr.mxu0 0.0
    %1653 = vmatpush1.xpose.msra.mxu0 0.0
    %1654 = vmatprep.subr.mxu0 0.0
    %1655 = vmatpush1.xpose.msra.mxu0 0.0
    %1656 = vmatprep.subr.mxu0 0.0
    %1657 = vmatpush1.xpose.msra.mxu0 0.0
    %1658 = vmatprep.mubr.f32.mxu0 0.0
    %1659 = vmatmul.mubr.f32.gmra.mrb[0].mxu0 %v1590
    %v1660 = vpop.f32.mrb[0].mxu0
    %v1661 = vadd.f32 0.0, %v1660
    %v1662 = vpop.f32.mrb[0].mxu0
    %1663 = vdwg.mxu0
    %v1664 = vsel %vm347, %v1583, -inf
    %1665 = vmax.xlane.f32.xlu0 %v1664
    %v1666 = vpop.xlane.xlu0 %1665
    %v1667 = vsel %vm347, %v1661, -inf
    %1668 = vmax.xlane.f32.xlu0 %v1667
    %v1669 = vpop.xlane.xlu0 %1668
    %v1670 = vsub.f32 %v1583, %v1666
    %v1671 = vsub.f32 %v1661, %v1669
    %v1672 = vmul.f32 %v1670, 1.442695
    %v1673 = vpow.pop %v1672
    %v1674 = vmul.f32 %v1671, 1.442695
    %v1675 = vpow.pop %v1674
    %v1676 = vsel %vm347, %v1673, 0.0
    %1677 = vadd.xlane.f32.xlu0 %v1676
    %v1678 = vpop.xlane.xlu0 %1677
    %v1679 = vsel %vm347, %v1675, 0.0
    %1680 = vadd.xlane.f32.xlu0 %v1679
    %v1681 = vpop.xlane.xlu0 %1680
    %v1682 = vrcp.pop %v1678
    %v1683 = vrcp.pop %v1681
    %v1684 = vmul.f32 %v1673, %v1682
    %v1685 = vmul.f32 %v1675, %v1683
    %1686 = vrot.lane.b32.xlu0 %v186, 64
    %v1687 = vpop.permute.xlu0 %1686
    %v1690 = vsel %vm347, %v1684, 0
    %1692 = vmatprep.subr.mxu0 0.0
    %1693 = vmatpush1.msra.mxu0 %v1687
    %1694 = vmatprep.subr.mxu0 0.0
    %1695 = vmatpush1.msra.mxu0 0.0
    %1696 = vmatprep.subr.mxu0 0.0
    %1697 = vmatpush1.msra.mxu0 0.0
    %1698 = vmatprep.subr.mxu0 0.0
    %1699 = vmatpush1.msra.mxu0 0.0
    %1700 = vmatprep.subr.mxu0 0.0
    %1701 = vmatpush1.msra.mxu0 0.0
    %1702 = vmatprep.subr.mxu0 0.0
    %1703 = vmatpush1.msra.mxu0 0.0
    %1704 = vmatprep.subr.mxu0 0.0
    %1705 = vmatpush1.msra.mxu0 0.0
    %1706 = vmatprep.subr.mxu0 0.0
    %1707 = vmatpush1.msra.mxu0 0.0
    %1708 = vmatprep.subr.mxu0 0.0
    %1709 = vmatpush1.msra.mxu0 0.0
    %1710 = vmatprep.subr.mxu0 0.0
    %1711 = vmatpush1.msra.mxu0 0.0
    %1712 = vmatprep.subr.mxu0 0.0
    %1713 = vmatpush1.msra.mxu0 0.0
    %1714 = vmatprep.subr.mxu0 0.0
    %1715 = vmatpush1.msra.mxu0 0.0
    %1716 = vmatprep.subr.mxu0 0.0
    %1717 = vmatpush1.msra.mxu0 0.0
    %1718 = vmatprep.subr.mxu0 0.0
    %1719 = vmatpush1.msra.mxu0 0.0
    %1720 = vmatprep.subr.mxu0 0.0
    %1721 = vmatpush1.msra.mxu0 0.0
    %1722 = vmatprep.subr.mxu0 0.0
    %1723 = vmatpush1.msra.mxu0 0.0
    %1724 = vmatprep.subr.mxu0 0.0
    %1725 = vmatpush1.msra.mxu0 0.0
    %1726 = vmatprep.subr.mxu0 0.0
    %1727 = vmatpush1.msra.mxu0 0.0
    %1728 = vmatprep.subr.mxu0 0.0
    %1729 = vmatpush1.msra.mxu0 0.0
    %1730 = vmatprep.subr.mxu0 0.0
    %1731 = vmatpush1.msra.mxu0 0.0
    %1732 = vmatprep.subr.mxu0 0.0
    %1733 = vmatpush1.msra.mxu0 0.0
    %1734 = vmatprep.subr.mxu0 0.0
    %1735 = vmatpush1.msra.mxu0 0.0
    %1736 = vmatprep.subr.mxu0 0.0
    %1737 = vmatpush1.msra.mxu0 0.0
    %1738 = vmatprep.subr.mxu0 0.0
    %1739 = vmatpush1.msra.mxu0 0.0
    %1740 = vmatprep.subr.mxu0 0.0
    %1741 = vmatpush1.msra.mxu0 0.0
    %1742 = vmatprep.subr.mxu0 0.0
    %1743 = vmatpush1.msra.mxu0 0.0
    %1744 = vmatprep.subr.mxu0 0.0
    %1745 = vmatpush1.msra.mxu0 0.0
    %1746 = vmatprep.subr.mxu0 0.0
    %1747 = vmatpush1.msra.mxu0 0.0
    %1748 = vmatprep.subr.mxu0 0.0
    %1749 = vmatpush1.msra.mxu0 0.0
    %1750 = vmatprep.subr.mxu0 0.0
    %1751 = vmatpush1.msra.mxu0 0.0
    %1752 = vmatprep.subr.mxu0 0.0
    %1753 = vmatpush1.msra.mxu0 0.0
    %1754 = vmatprep.subr.mxu0 0.0
    %1755 = vmatpush1.msra.mxu0 0.0
    %1756 = vmatprep.mubr.f32.mxu0 0.0
    %1757 = vmatmul.mubr.f32.gmra.mrb[0].mxu0 %v1690
    %v1758 = vpop.f32.mrb[0].mxu0
    %v1759 = vadd.f32 0.0, %v1758
    %v1760 = vpop.f32.mrb[0].mxu0
    %1761 = vdwg.mxu0
    %1762 = vrot.lane.b32.xlu0 %v191, 64
    %v1763 = vpop.permute.xlu0 %1762
    %v1766 = vsel %vm347, %v1685, 0
    %1768 = vmatprep.subr.mxu0 0.0
    %1769 = vmatpush1.msra.mxu0 %v1763
    %1770 = vmatprep.subr.mxu0 0.0
    %1771 = vmatpush1.msra.mxu0 0.0
    %1772 = vmatprep.subr.mxu0 0.0
    %1773 = vmatpush1.msra.mxu0 0.0
    %1774 = vmatprep.subr.mxu0 0.0
    %1775 = vmatpush1.msra.mxu0 0.0
    %1776 = vmatprep.subr.mxu0 0.0
    %1777 = vmatpush1.msra.mxu0 0.0
    %1778 = vmatprep.subr.mxu0 0.0
    %1779 = vmatpush1.msra.mxu0 0.0
    %1780 = vmatprep.subr.mxu0 0.0
    %1781 = vmatpush1.msra.mxu0 0.0
    %1782 = vmatprep.subr.mxu0 0.0
    %1783 = vmatpush1.msra.mxu0 0.0
    %1784 = vmatprep.subr.mxu0 0.0
    %1785 = vmatpush1.msra.mxu0 0.0
    %1786 = vmatprep.subr.mxu0 0.0
    %1787 = vmatpush1.msra.mxu0 0.0
    %1788 = vmatprep.subr.mxu0 0.0
    %1789 = vmatpush1.msra.mxu0 0.0
    %1790 = vmatprep.subr.mxu0 0.0
    %1791 = vmatpush1.msra.mxu0 0.0
    %1792 = vmatprep.subr.mxu0 0.0
    %1793 = vmatpush1.msra.mxu0 0.0
    %1794 = vmatprep.subr.mxu0 0.0
    %1795 = vmatpush1.msra.mxu0 0.0
    %1796 = vmatprep.subr.mxu0 0.0
    %1797 = vmatpush1.msra.mxu0 0.0
    %1798 = vmatprep.subr.mxu0 0.0
    %1799 = vmatpush1.msra.mxu0 0.0
    %1800 = vmatprep.subr.mxu0 0.0
    %1801 = vmatpush1.msra.mxu0 0.0
    %1802 = vmatprep.subr.mxu0 0.0
    %1803 = vmatpush1.msra.mxu0 0.0
    %1804 = vmatprep.subr.mxu0 0.0
    %1805 = vmatpush1.msra.mxu0 0.0
    %1806 = vmatprep.subr.mxu0 0.0
    %1807 = vmatpush1.msra.mxu0 0.0
    %1808 = vmatprep.subr.mxu0 0.0
    %1809 = vmatpush1.msra.mxu0 0.0
    %1810 = vmatprep.subr.mxu0 0.0
    %1811 = vmatpush1.msra.mxu0 0.0
    %1812 = vmatprep.subr.mxu0 0.0
    %1813 = vmatpush1.msra.mxu0 0.0
    %1814 = vmatprep.subr.mxu0 0.0
    %1815 = vmatpush1.msra.mxu0 0.0
    %1816 = vmatprep.subr.mxu0 0.0
    %1817 = vmatpush1.msra.mxu0 0.0
    %1818 = vmatprep.subr.mxu0 0.0
    %1819 = vmatpush1.msra.mxu0 0.0
    %1820 = vmatprep.subr.mxu0 0.0
    %1821 = vmatpush1.msra.mxu0 0.0
    %1822 = vmatprep.subr.mxu0 0.0
    %1823 = vmatpush1.msra.mxu0 0.0
    %1824 = vmatprep.subr.mxu0 0.0
    %1825 = vmatpush1.msra.mxu0 0.0
    %1826 = vmatprep.subr.mxu0 0.0
    %1827 = vmatpush1.msra.mxu0 0.0
    %1828 = vmatprep.subr.mxu0 0.0
    %1829 = vmatpush1.msra.mxu0 0.0
    %1830 = vmatprep.subr.mxu0 0.0
    %1831 = vmatpush1.msra.mxu0 0.0
    %1832 = vmatprep.mubr.f32.mxu0 0.0
    %1833 = vmatmul.mubr.f32.gmra.mrb[0].mxu0 %v1766
    %v1834 = vpop.f32.mrb[0].mxu0
    %v1835 = vadd.f32 0.0, %v1834
    %v1836 = vpop.f32.mrb[0].mxu0
    %1837 = vdwg.mxu0
    %1838 = vrot.lane.b32.xlu0 %v109, 48
    %v1839 = vpop.permute.xlu0 %1838
    %1840 = vrot.lane.b32.xlu0 %v111, 48
    %v1841 = vpop.permute.xlu0 %1840
    %v1842 = vsel %vm194, %v1839, 0
    %v1844 = vsel %vm194, %v1841, 0
    %1846 = vmatprep.subr.mxu0 0.0
    %1847 = vmatpush1.xpose.msra.mxu0 %v1844
    %1848 = vmatprep.subr.mxu0 0.0
    %1849 = vmatpush1.xpose.msra.mxu0 0.0
    %1850 = vmatprep.subr.mxu0 0.0
    %1851 = vmatpush1.xpose.msra.mxu0 0.0
    %1852 = vmatprep.subr.mxu0 0.0
    %1853 = vmatpush1.xpose.msra.mxu0 0.0
    %1854 = vmatprep.subr.mxu0 0.0
    %1855 = vmatpush1.xpose.msra.mxu0 0.0
    %1856 = vmatprep.subr.mxu0 0.0
    %1857 = vmatpush1.xpose.msra.mxu0 0.0
    %1858 = vmatprep.subr.mxu0 0.0
    %1859 = vmatpush1.xpose.msra.mxu0 0.0
    %1860 = vmatprep.subr.mxu0 0.0
    %1861 = vmatpush1.xpose.msra.mxu0 0.0
    %1862 = vmatprep.subr.mxu0 0.0
    %1863 = vmatpush1.xpose.msra.mxu0 0.0
    %1864 = vmatprep.subr.mxu0 0.0
    %1865 = vmatpush1.xpose.msra.mxu0 0.0
    %1866 = vmatprep.subr.mxu0 0.0
    %1867 = vmatpush1.xpose.msra.mxu0 0.0
    %1868 = vmatprep.subr.mxu0 0.0
    %1869 = vmatpush1.xpose.msra.mxu0 0.0
    %1870 = vmatprep.subr.mxu0 0.0
    %1871 = vmatpush1.xpose.msra.mxu0 0.0
    %1872 = vmatprep.subr.mxu0 0.0
    %1873 = vmatpush1.xpose.msra.mxu0 0.0
    %1874 = vmatprep.subr.mxu0 0.0
    %1875 = vmatpush1.xpose.msra.mxu0 0.0
    %1876 = vmatprep.subr.mxu0 0.0
    %1877 = vmatpush1.xpose.msra.mxu0 0.0
    %1878 = vmatprep.subr.mxu0 0.0
    %1879 = vmatpush1.xpose.msra.mxu0 0.0
    %1880 = vmatprep.subr.mxu0 0.0
    %1881 = vmatpush1.xpose.msra.mxu0 0.0
    %1882 = vmatprep.subr.mxu0 0.0
    %1883 = vmatpush1.xpose.msra.mxu0 0.0
    %1884 = vmatprep.subr.mxu0 0.0
    %1885 = vmatpush1.xpose.msra.mxu0 0.0
    %1886 = vmatprep.subr.mxu0 0.0
    %1887 = vmatpush1.xpose.msra.mxu0 0.0
    %1888 = vmatprep.subr.mxu0 0.0
    %1889 = vmatpush1.xpose.msra.mxu0 0.0
    %1890 = vmatprep.subr.mxu0 0.0
    %1891 = vmatpush1.xpose.msra.mxu0 0.0
    %1892 = vmatprep.subr.mxu0 0.0
    %1893 = vmatpush1.xpose.msra.mxu0 0.0
    %1894 = vmatprep.subr.mxu0 0.0
    %1895 = vmatpush1.xpose.msra.mxu0 0.0
    %1896 = vmatprep.subr.mxu0 0.0
    %1897 = vmatpush1.xpose.msra.mxu0 0.0
    %1898 = vmatprep.subr.mxu0 0.0
    %1899 = vmatpush1.xpose.msra.mxu0 0.0
    %1900 = vmatprep.subr.mxu0 0.0
    %1901 = vmatpush1.xpose.msra.mxu0 0.0
    %1902 = vmatprep.subr.mxu0 0.0
    %1903 = vmatpush1.xpose.msra.mxu0 0.0
    %1904 = vmatprep.subr.mxu0 0.0
    %1905 = vmatpush1.xpose.msra.mxu0 0.0
    %1906 = vmatprep.subr.mxu0 0.0
    %1907 = vmatpush1.xpose.msra.mxu0 0.0
    %1908 = vmatprep.subr.mxu0 0.0
    %1909 = vmatpush1.xpose.msra.mxu0 0.0
    %1910 = vmatprep.mubr.f32.mxu0 0.0
    %1911 = vmatmul.mubr.f32.gmra.mrb[0].mxu0 %v1842
    %v1912 = vpop.f32.mrb[0].mxu0
    %v1913 = vadd.f32 0.0, %v1912
    %v1914 = vpop.f32.mrb[0].mxu0
    %1915 = vdwg.mxu0
    %1916 = vrot.lane.b32.xlu0 %v115, 48
    %v1917 = vpop.permute.xlu0 %1916
    %1918 = vrot.lane.b32.xlu0 %v117, 48
    %v1919 = vpop.permute.xlu0 %1918
    %v1920 = vsel %vm194, %v1917, 0
    %v1922 = vsel %vm194, %v1919, 0
    %1924 = vmatprep.subr.mxu0 0.0
    %1925 = vmatpush1.xpose.msra.mxu0 %v1922
    %1926 = vmatprep.subr.mxu0 0.0
    %1927 = vmatpush1.xpose.msra.mxu0 0.0
    %1928 = vmatprep.subr.mxu0 0.0
    %1929 = vmatpush1.xpose.msra.mxu0 0.0
    %1930 = vmatprep.subr.mxu0 0.0
    %1931 = vmatpush1.xpose.msra.mxu0 0.0
    %1932 = vmatprep.subr.mxu0 0.0
    %1933 = vmatpush1.xpose.msra.mxu0 0.0
    %1934 = vmatprep.subr.mxu0 0.0
    %1935 = vmatpush1.xpose.msra.mxu0 0.0
    %1936 = vmatprep.subr.mxu0 0.0
    %1937 = vmatpush1.xpose.msra.mxu0 0.0
    %1938 = vmatprep.subr.mxu0 0.0
    %1939 = vmatpush1.xpose.msra.mxu0 0.0
    %1940 = vmatprep.subr.mxu0 0.0
    %1941 = vmatpush1.xpose.msra.mxu0 0.0
    %1942 = vmatprep.subr.mxu0 0.0
    %1943 = vmatpush1.xpose.msra.mxu0 0.0
    %1944 = vmatprep.subr.mxu0 0.0
    %1945 = vmatpush1.xpose.msra.mxu0 0.0
    %1946 = vmatprep.subr.mxu0 0.0
    %1947 = vmatpush1.xpose.msra.mxu0 0.0
    %1948 = vmatprep.subr.mxu0 0.0
    %1949 = vmatpush1.xpose.msra.mxu0 0.0
    %1950 = vmatprep.subr.mxu0 0.0
    %1951 = vmatpush1.xpose.msra.mxu0 0.0
    %1952 = vmatprep.subr.mxu0 0.0
    %1953 = vmatpush1.xpose.msra.mxu0 0.0
    %1954 = vmatprep.subr.mxu0 0.0
    %1955 = vmatpush1.xpose.msra.mxu0 0.0
    %1956 = vmatprep.subr.mxu0 0.0
    %1957 = vmatpush1.xpose.msra.mxu0 0.0
    %1958 = vmatprep.subr.mxu0 0.0
    %1959 = vmatpush1.xpose.msra.mxu0 0.0
    %1960 = vmatprep.subr.mxu0 0.0
    %1961 = vmatpush1.xpose.msra.mxu0 0.0
    %1962 = vmatprep.subr.mxu0 0.0
    %1963 = vmatpush1.xpose.msra.mxu0 0.0
    %1964 = vmatprep.subr.mxu0 0.0
    %1965 = vmatpush1.xpose.msra.mxu0 0.0
    %1966 = vmatprep.subr.mxu0 0.0
    %1967 = vmatpush1.xpose.msra.mxu0 0.0
    %1968 = vmatprep.subr.mxu0 0.0
    %1969 = vmatpush1.xpose.msra.mxu0 0.0
    %1970 = vmatprep.subr.mxu0 0.0
    %1971 = vmatpush1.xpose.msra.mxu0 0.0
    %1972 = vmatprep.subr.mxu0 0.0
    %1973 = vmatpush1.xpose.msra.mxu0 0.0
    %1974 = vmatprep.subr.mxu0 0.0
    %1975 = vmatpush1.xpose.msra.mxu0 0.0
    %1976 = vmatprep.subr.mxu0 0.0
    %1977 = vmatpush1.xpose.msra.mxu0 0.0
    %1978 = vmatprep.subr.mxu0 0.0
    %1979 = vmatpush1.xpose.msra.mxu0 0.0
    %1980 = vmatprep.subr.mxu0 0.0
    %1981 = vmatpush1.xpose.msra.mxu0 0.0
    %1982 = vmatprep.subr.mxu0 0.0
    %1983 = vmatpush1.xpose.msra.mxu0 0.0
    %1984 = vmatprep.subr.mxu0 0.0
    %1985 = vmatpush1.xpose.msra.mxu0 0.0
    %1986 = vmatprep.subr.mxu0 0.0
    %1987 = vmatpush1.xpose.msra.mxu0 0.0
    %1988 = vmatprep.mubr.f32.mxu0 0.0
    %1989 = vmatmul.mubr.f32.gmra.mrb[0].mxu0 %v1920
    %v1990 = vpop.f32.mrb[0].mxu0
    %v1991 = vadd.f32 0.0, %v1990
    %v1992 = vpop.f32.mrb[0].mxu0
    %1993 = vdwg.mxu0
    %v1994 = vsel %vm347, %v1913, -inf
    %1995 = vmax.xlane.f32.xlu0 %v1994
    %v1996 = vpop.xlane.xlu0 %1995
    %v1997 = vsel %vm347, %v1991, -inf
    %1998 = vmax.xlane.f32.xlu0 %v1997
    %v1999 = vpop.xlane.xlu0 %1998
    %v2000 = vsub.f32 %v1913, %v1996
    %v2001 = vsub.f32 %v1991, %v1999
    %v2002 = vmul.f32 %v2000, 1.442695
    %v2003 = vpow.pop %v2002
    %v2004 = vmul.f32 %v2001, 1.442695
    %v2005 = vpow.pop %v2004
    %v2006 = vsel %vm347, %v2003, 0.0
    %2007 = vadd.xlane.f32.xlu0 %v2006
    %v2008 = vpop.xlane.xlu0 %2007
    %v2009 = vsel %vm347, %v2005, 0.0
    %2010 = vadd.xlane.f32.xlu0 %v2009
    %v2011 = vpop.xlane.xlu0 %2010
    %v2012 = vrcp.pop %v2008
    %v2013 = vrcp.pop %v2011
    %v2014 = vmul.f32 %v2003, %v2012
    %v2015 = vmul.f32 %v2005, %v2013
    %2016 = vrot.lane.b32.xlu0 %v186, 48
    %v2017 = vpop.permute.xlu0 %2016
    %v2020 = vsel %vm347, %v2014, 0
    %2022 = vmatprep.subr.mxu0 0.0
    %2023 = vmatpush1.msra.mxu0 %v2017
    %2024 = vmatprep.subr.mxu0 0.0
    %2025 = vmatpush1.msra.mxu0 0.0
    %2026 = vmatprep.subr.mxu0 0.0
    %2027 = vmatpush1.msra.mxu0 0.0
    %2028 = vmatprep.subr.mxu0 0.0
    %2029 = vmatpush1.msra.mxu0 0.0
    %2030 = vmatprep.subr.mxu0 0.0
    %2031 = vmatpush1.msra.mxu0 0.0
    %2032 = vmatprep.subr.mxu0 0.0
    %2033 = vmatpush1.msra.mxu0 0.0
    %2034 = vmatprep.subr.mxu0 0.0
    %2035 = vmatpush1.msra.mxu0 0.0
    %2036 = vmatprep.subr.mxu0 0.0
    %2037 = vmatpush1.msra.mxu0 0.0
    %2038 = vmatprep.subr.mxu0 0.0
    %2039 = vmatpush1.msra.mxu0 0.0
    %2040 = vmatprep.subr.mxu0 0.0
    %2041 = vmatpush1.msra.mxu0 0.0
    %2042 = vmatprep.subr.mxu0 0.0
    %2043 = vmatpush1.msra.mxu0 0.0
    %2044 = vmatprep.subr.mxu0 0.0
    %2045 = vmatpush1.msra.mxu0 0.0
    %2046 = vmatprep.subr.mxu0 0.0
    %2047 = vmatpush1.msra.mxu0 0.0
    %2048 = vmatprep.subr.mxu0 0.0
    %2049 = vmatpush1.msra.mxu0 0.0
    %2050 = vmatprep.subr.mxu0 0.0
    %2051 = vmatpush1.msra.mxu0 0.0
    %2052 = vmatprep.subr.mxu0 0.0
    %2053 = vmatpush1.msra.mxu0 0.0
    %2054 = vmatprep.subr.mxu0 0.0
    %2055 = vmatpush1.msra.mxu0 0.0
    %2056 = vmatprep.subr.mxu0 0.0
    %2057 = vmatpush1.msra.mxu0 0.0
    %2058 = vmatprep.subr.mxu0 0.0
    %2059 = vmatpush1.msra.mxu0 0.0
    %2060 = vmatprep.subr.mxu0 0.0
    %2061 = vmatpush1.msra.mxu0 0.0
    %2062 = vmatprep.subr.mxu0 0.0
    %2063 = vmatpush1.msra.mxu0 0.0
    %2064 = vmatprep.subr.mxu0 0.0
    %2065 = vmatpush1.msra.mxu0 0.0
    %2066 = vmatprep.subr.mxu0 0.0
    %2067 = vmatpush1.msra.mxu0 0.0
    %2068 = vmatprep.subr.mxu0 0.0
    %2069 = vmatpush1.msra.mxu0 0.0
    %2070 = vmatprep.subr.mxu0 0.0
    %2071 = vmatpush1.msra.mxu0 0.0
    %2072 = vmatprep.subr.mxu0 0.0
    %2073 = vmatpush1.msra.mxu0 0.0
    %2074 = vmatprep.subr.mxu0 0.0
    %2075 = vmatpush1.msra.mxu0 0.0
    %2076 = vmatprep.subr.mxu0 0.0
    %2077 = vmatpush1.msra.mxu0 0.0
    %2078 = vmatprep.subr.mxu0 0.0
    %2079 = vmatpush1.msra.mxu0 0.0
    %2080 = vmatprep.subr.mxu0 0.0
    %2081 = vmatpush1.msra.mxu0 0.0
    %2082 = vmatprep.subr.mxu0 0.0
    %2083 = vmatpush1.msra.mxu0 0.0
    %2084 = vmatprep.subr.mxu0 0.0
    %2085 = vmatpush1.msra.mxu0 0.0
    %2086 = vmatprep.mubr.f32.mxu0 0.0
    %2087 = vmatmul.mubr.f32.gmra.mrb[0].mxu0 %v2020
    %v2088 = vpop.f32.mrb[0].mxu0
    %v2089 = vadd.f32 0.0, %v2088
    %v2090 = vpop.f32.mrb[0].mxu0
    %2091 = vdwg.mxu0
    %2092 = vrot.lane.b32.xlu0 %v191, 48
    %v2093 = vpop.permute.xlu0 %2092
    %v2096 = vsel %vm347, %v2015, 0
    %2098 = vmatprep.subr.mxu0 0.0
    %2099 = vmatpush1.msra.mxu0 %v2093
    %2100 = vmatprep.subr.mxu0 0.0
    %2101 = vmatpush1.msra.mxu0 0.0
    %2102 = vmatprep.subr.mxu0 0.0
    %2103 = vmatpush1.msra.mxu0 0.0
    %2104 = vmatprep.subr.mxu0 0.0
    %2105 = vmatpush1.msra.mxu0 0.0
    %2106 = vmatprep.subr.mxu0 0.0
    %2107 = vmatpush1.msra.mxu0 0.0
    %2108 = vmatprep.subr.mxu0 0.0
    %2109 = vmatpush1.msra.mxu0 0.0
    %2110 = vmatprep.subr.mxu0 0.0
    %2111 = vmatpush1.msra.mxu0 0.0
    %2112 = vmatprep.subr.mxu0 0.0
    %2113 = vmatpush1.msra.mxu0 0.0
    %2114 = vmatprep.subr.mxu0 0.0
    %2115 = vmatpush1.msra.mxu0 0.0
    %2116 = vmatprep.subr.mxu0 0.0
    %2117 = vmatpush1.msra.mxu0 0.0
    %2118 = vmatprep.subr.mxu0 0.0
    %2119 = vmatpush1.msra.mxu0 0.0
    %2120 = vmatprep.subr.mxu0 0.0
    %2121 = vmatpush1.msra.mxu0 0.0
    %2122 = vmatprep.subr.mxu0 0.0
    %2123 = vmatpush1.msra.mxu0 0.0
    %2124 = vmatprep.subr.mxu0 0.0
    %2125 = vmatpush1.msra.mxu0 0.0
    %2126 = vmatprep.subr.mxu0 0.0
    %2127 = vmatpush1.msra.mxu0 0.0
    %2128 = vmatprep.subr.mxu0 0.0
    %2129 = vmatpush1.msra.mxu0 0.0
    %2130 = vmatprep.subr.mxu0 0.0
    %2131 = vmatpush1.msra.mxu0 0.0
    %2132 = vmatprep.subr.mxu0 0.0
    %2133 = vmatpush1.msra.mxu0 0.0
    %2134 = vmatprep.subr.mxu0 0.0
    %2135 = vmatpush1.msra.mxu0 0.0
    %2136 = vmatprep.subr.mxu0 0.0
    %2137 = vmatpush1.msra.mxu0 0.0
    %2138 = vmatprep.subr.mxu0 0.0
    %2139 = vmatpush1.msra.mxu0 0.0
    %2140 = vmatprep.subr.mxu0 0.0
    %2141 = vmatpush1.msra.mxu0 0.0
    %2142 = vmatprep.subr.mxu0 0.0
    %2143 = vmatpush1.msra.mxu0 0.0
    %2144 = vmatprep.subr.mxu0 0.0
    %2145 = vmatpush1.msra.mxu0 0.0
    %2146 = vmatprep.subr.mxu0 0.0
    %2147 = vmatpush1.msra.mxu0 0.0
    %2148 = vmatprep.subr.mxu0 0.0
    %2149 = vmatpush1.msra.mxu0 0.0
    %2150 = vmatprep.subr.mxu0 0.0
    %2151 = vmatpush1.msra.mxu0 0.0
    %2152 = vmatprep.subr.mxu0 0.0
    %2153 = vmatpush1.msra.mxu0 0.0
    %2154 = vmatprep.subr.mxu0 0.0
    %2155 = vmatpush1.msra.mxu0 0.0
    %2156 = vmatprep.subr.mxu0 0.0
    %2157 = vmatpush1.msra.mxu0 0.0
    %2158 = vmatprep.subr.mxu0 0.0
    %2159 = vmatpush1.msra.mxu0 0.0
    %2160 = vmatprep.subr.mxu0 0.0
    %2161 = vmatpush1.msra.mxu0 0.0
    %2162 = vmatprep.mubr.f32.mxu0 0.0
    %2163 = vmatmul.mubr.f32.gmra.mrb[0].mxu0 %v2096
    %v2164 = vpop.f32.mrb[0].mxu0
    %v2165 = vadd.f32 0.0, %v2164
    %v2166 = vpop.f32.mrb[0].mxu0
    %2167 = vdwg.mxu0
    %2168 = vrot.lane.b32.xlu0 %v109, 32
    %v2169 = vpop.permute.xlu0 %2168
    %2170 = vrot.lane.b32.xlu0 %v111, 32
    %v2171 = vpop.permute.xlu0 %2170
    %v2172 = vsel %vm194, %v2169, 0
    %v2174 = vsel %vm194, %v2171, 0
    %2176 = vmatprep.subr.mxu0 0.0
    %2177 = vmatpush1.xpose.msra.mxu0 %v2174
    %2178 = vmatprep.subr.mxu0 0.0
    %2179 = vmatpush1.xpose.msra.mxu0 0.0
    %2180 = vmatprep.subr.mxu0 0.0
    %2181 = vmatpush1.xpose.msra.mxu0 0.0
    %2182 = vmatprep.subr.mxu0 0.0
    %2183 = vmatpush1.xpose.msra.mxu0 0.0
    %2184 = vmatprep.subr.mxu0 0.0
    %2185 = vmatpush1.xpose.msra.mxu0 0.0
    %2186 = vmatprep.subr.mxu0 0.0
    %2187 = vmatpush1.xpose.msra.mxu0 0.0
    %2188 = vmatprep.subr.mxu0 0.0
    %2189 = vmatpush1.xpose.msra.mxu0 0.0
    %2190 = vmatprep.subr.mxu0 0.0
    %2191 = vmatpush1.xpose.msra.mxu0 0.0
    %2192 = vmatprep.subr.mxu0 0.0
    %2193 = vmatpush1.xpose.msra.mxu0 0.0
    %2194 = vmatprep.subr.mxu0 0.0
    %2195 = vmatpush1.xpose.msra.mxu0 0.0
    %2196 = vmatprep.subr.mxu0 0.0
    %2197 = vmatpush1.xpose.msra.mxu0 0.0
    %2198 = vmatprep.subr.mxu0 0.0
    %2199 = vmatpush1.xpose.msra.mxu0 0.0
    %2200 = vmatprep.subr.mxu0 0.0
    %2201 = vmatpush1.xpose.msra.mxu0 0.0
    %2202 = vmatprep.subr.mxu0 0.0
    %2203 = vmatpush1.xpose.msra.mxu0 0.0
    %2204 = vmatprep.subr.mxu0 0.0
    %2205 = vmatpush1.xpose.msra.mxu0 0.0
    %2206 = vmatprep.subr.mxu0 0.0
    %2207 = vmatpush1.xpose.msra.mxu0 0.0
    %2208 = vmatprep.subr.mxu0 0.0
    %2209 = vmatpush1.xpose.msra.mxu0 0.0
    %2210 = vmatprep.subr.mxu0 0.0
    %2211 = vmatpush1.xpose.msra.mxu0 0.0
    %2212 = vmatprep.subr.mxu0 0.0
    %2213 = vmatpush1.xpose.msra.mxu0 0.0
    %2214 = vmatprep.subr.mxu0 0.0
    %2215 = vmatpush1.xpose.msra.mxu0 0.0
    %2216 = vmatprep.subr.mxu0 0.0
    %2217 = vmatpush1.xpose.msra.mxu0 0.0
    %2218 = vmatprep.subr.mxu0 0.0
    %2219 = vmatpush1.xpose.msra.mxu0 0.0
    %2220 = vmatprep.subr.mxu0 0.0
    %2221 = vmatpush1.xpose.msra.mxu0 0.0
    %2222 = vmatprep.subr.mxu0 0.0
    %2223 = vmatpush1.xpose.msra.mxu0 0.0
    %2224 = vmatprep.subr.mxu0 0.0
    %2225 = vmatpush1.xpose.msra.mxu0 0.0
    %2226 = vmatprep.subr.mxu0 0.0
    %2227 = vmatpush1.xpose.msra.mxu0 0.0
    %2228 = vmatprep.subr.mxu0 0.0
    %2229 = vmatpush1.xpose.msra.mxu0 0.0
    %2230 = vmatprep.subr.mxu0 0.0
    %2231 = vmatpush1.xpose.msra.mxu0 0.0
    %2232 = vmatprep.subr.mxu0 0.0
    %2233 = vmatpush1.xpose.msra.mxu0 0.0
    %2234 = vmatprep.subr.mxu0 0.0
    %2235 = vmatpush1.xpose.msra.mxu0 0.0
    %2236 = vmatprep.subr.mxu0 0.0
    %2237 = vmatpush1.xpose.msra.mxu0 0.0
    %2238 = vmatprep.subr.mxu0 0.0
    %2239 = vmatpush1.xpose.msra.mxu0 0.0
    %2240 = vmatprep.mubr.f32.mxu0 0.0
    %2241 = vmatmul.mubr.f32.gmra.mrb[0].mxu0 %v2172
    %v2242 = vpop.f32.mrb[0].mxu0
    %v2243 = vadd.f32 0.0, %v2242
    %v2244 = vpop.f32.mrb[0].mxu0
    %2245 = vdwg.mxu0
    %2246 = vrot.lane.b32.xlu0 %v115, 32
    %v2247 = vpop.permute.xlu0 %2246
    %2248 = vrot.lane.b32.xlu0 %v117, 32
    %v2249 = vpop.permute.xlu0 %2248
    %v2250 = vsel %vm194, %v2247, 0
    %v2252 = vsel %vm194, %v2249, 0
    %2254 = vmatprep.subr.mxu0 0.0
    %2255 = vmatpush1.xpose.msra.mxu0 %v2252
    %2256 = vmatprep.subr.mxu0 0.0
    %2257 = vmatpush1.xpose.msra.mxu0 0.0
    %2258 = vmatprep.subr.mxu0 0.0
    %2259 = vmatpush1.xpose.msra.mxu0 0.0
    %2260 = vmatprep.subr.mxu0 0.0
    %2261 = vmatpush1.xpose.msra.mxu0 0.0
    %2262 = vmatprep.subr.mxu0 0.0
    %2263 = vmatpush1.xpose.msra.mxu0 0.0
    %2264 = vmatprep.subr.mxu0 0.0
    %2265 = vmatpush1.xpose.msra.mxu0 0.0
    %2266 = vmatprep.subr.mxu0 0.0
    %2267 = vmatpush1.xpose.msra.mxu0 0.0
    %2268 = vmatprep.subr.mxu0 0.0
    %2269 = vmatpush1.xpose.msra.mxu0 0.0
    %2270 = vmatprep.subr.mxu0 0.0
    %2271 = vmatpush1.xpose.msra.mxu0 0.0
    %2272 = vmatprep.subr.mxu0 0.0
    %2273 = vmatpush1.xpose.msra.mxu0 0.0
    %2274 = vmatprep.subr.mxu0 0.0
    %2275 = vmatpush1.xpose.msra.mxu0 0.0
    %2276 = vmatprep.subr.mxu0 0.0
    %2277 = vmatpush1.xpose.msra.mxu0 0.0
    %2278 = vmatprep.subr.mxu0 0.0
    %2279 = vmatpush1.xpose.msra.mxu0 0.0
    %2280 = vmatprep.subr.mxu0 0.0
    %2281 = vmatpush1.xpose.msra.mxu0 0.0
    %2282 = vmatprep.subr.mxu0 0.0
    %2283 = vmatpush1.xpose.msra.mxu0 0.0
    %2284 = vmatprep.subr.mxu0 0.0
    %2285 = vmatpush1.xpose.msra.mxu0 0.0
    %2286 = vmatprep.subr.mxu0 0.0
    %2287 = vmatpush1.xpose.msra.mxu0 0.0
    %2288 = vmatprep.subr.mxu0 0.0
    %2289 = vmatpush1.xpose.msra.mxu0 0.0
    %2290 = vmatprep.subr.mxu0 0.0
    %2291 = vmatpush1.xpose.msra.mxu0 0.0
    %2292 = vmatprep.subr.mxu0 0.0
    %2293 = vmatpush1.xpose.msra.mxu0 0.0
    %2294 = vmatprep.subr.mxu0 0.0
    %2295 = vmatpush1.xpose.msra.mxu0 0.0
    %2296 = vmatprep.subr.mxu0 0.0
    %2297 = vmatpush1.xpose.msra.mxu0 0.0
    %2298 = vmatprep.subr.mxu0 0.0
    %2299 = vmatpush1.xpose.msra.mxu0 0.0
    %2300 = vmatprep.subr.mxu0 0.0
    %2301 = vmatpush1.xpose.msra.mxu0 0.0
    %2302 = vmatprep.subr.mxu0 0.0
    %2303 = vmatpush1.xpose.msra.mxu0 0.0
    %2304 = vmatprep.subr.mxu0 0.0
    %2305 = vmatpush1.xpose.msra.mxu0 0.0
    %2306 = vmatprep.subr.mxu0 0.0
    %2307 = vmatpush1.xpose.msra.mxu0 0.0
    %2308 = vmatprep.subr.mxu0 0.0
    %2309 = vmatpush1.xpose.msra.mxu0 0.0
    %2310 = vmatprep.subr.mxu0 0.0
    %2311 = vmatpush1.xpose.msra.mxu0 0.0
    %2312 = vmatprep.subr.mxu0 0.0
    %2313 = vmatpush1.xpose.msra.mxu0 0.0
    %2314 = vmatprep.subr.mxu0 0.0
    %2315 = vmatpush1.xpose.msra.mxu0 0.0
    %2316 = vmatprep.subr.mxu0 0.0
    %2317 = vmatpush1.xpose.msra.mxu0 0.0
    %2318 = vmatprep.mubr.f32.mxu0 0.0
    %2319 = vmatmul.mubr.f32.gmra.mrb[0].mxu0 %v2250
    %v2320 = vpop.f32.mrb[0].mxu0
    %v2321 = vadd.f32 0.0, %v2320
    %v2322 = vpop.f32.mrb[0].mxu0
    %2323 = vdwg.mxu0
    %v2324 = vsel %vm347, %v2243, -inf
    %2325 = vmax.xlane.f32.xlu0 %v2324
    %v2326 = vpop.xlane.xlu0 %2325
    %v2327 = vsel %vm347, %v2321, -inf
    %2328 = vmax.xlane.f32.xlu0 %v2327
    %v2329 = vpop.xlane.xlu0 %2328
    %v2330 = vsub.f32 %v2243, %v2326
    %v2331 = vsub.f32 %v2321, %v2329
    %v2332 = vmul.f32 %v2330, 1.442695
    %v2333 = vpow.pop %v2332
    %v2334 = vmul.f32 %v2331, 1.442695
    %v2335 = vpow.pop %v2334
    %v2336 = vsel %vm347, %v2333, 0.0
    %2337 = vadd.xlane.f32.xlu0 %v2336
    %v2338 = vpop.xlane.xlu0 %2337
    %v2339 = vsel %vm347, %v2335, 0.0
    %2340 = vadd.xlane.f32.xlu0 %v2339
    %v2341 = vpop.xlane.xlu0 %2340
    %v2342 = vrcp.pop %v2338
    %v2343 = vrcp.pop %v2341
    %v2344 = vmul.f32 %v2333, %v2342
    %v2345 = vmul.f32 %v2335, %v2343
    %2346 = vrot.lane.b32.xlu0 %v186, 32
    %v2347 = vpop.permute.xlu0 %2346
    %v2350 = vsel %vm347, %v2344, 0
    %2352 = vmatprep.subr.mxu0 0.0
    %2353 = vmatpush1.msra.mxu0 %v2347
    %2354 = vmatprep.subr.mxu0 0.0
    %2355 = vmatpush1.msra.mxu0 0.0
    %2356 = vmatprep.subr.mxu0 0.0
    %2357 = vmatpush1.msra.mxu0 0.0
    %2358 = vmatprep.subr.mxu0 0.0
    %2359 = vmatpush1.msra.mxu0 0.0
    %2360 = vmatprep.subr.mxu0 0.0
    %2361 = vmatpush1.msra.mxu0 0.0
    %2362 = vmatprep.subr.mxu0 0.0
    %2363 = vmatpush1.msra.mxu0 0.0
    %2364 = vmatprep.subr.mxu0 0.0
    %2365 = vmatpush1.msra.mxu0 0.0
    %2366 = vmatprep.subr.mxu0 0.0
    %2367 = vmatpush1.msra.mxu0 0.0
    %2368 = vmatprep.subr.mxu0 0.0
    %2369 = vmatpush1.msra.mxu0 0.0
    %2370 = vmatprep.subr.mxu0 0.0
    %2371 = vmatpush1.msra.mxu0 0.0
    %2372 = vmatprep.subr.mxu0 0.0
    %2373 = vmatpush1.msra.mxu0 0.0
    %2374 = vmatprep.subr.mxu0 0.0
    %2375 = vmatpush1.msra.mxu0 0.0
    %2376 = vmatprep.subr.mxu0 0.0
    %2377 = vmatpush1.msra.mxu0 0.0
    %2378 = vmatprep.subr.mxu0 0.0
    %2379 = vmatpush1.msra.mxu0 0.0
    %2380 = vmatprep.subr.mxu0 0.0
    %2381 = vmatpush1.msra.mxu0 0.0
    %2382 = vmatprep.subr.mxu0 0.0
    %2383 = vmatpush1.msra.mxu0 0.0
    %2384 = vmatprep.subr.mxu0 0.0
    %2385 = vmatpush1.msra.mxu0 0.0
    %2386 = vmatprep.subr.mxu0 0.0
    %2387 = vmatpush1.msra.mxu0 0.0
    %2388 = vmatprep.subr.mxu0 0.0
    %2389 = vmatpush1.msra.mxu0 0.0
    %2390 = vmatprep.subr.mxu0 0.0
    %2391 = vmatpush1.msra.mxu0 0.0
    %2392 = vmatprep.subr.mxu0 0.0
    %2393 = vmatpush1.msra.mxu0 0.0
    %2394 = vmatprep.subr.mxu0 0.0
    %2395 = vmatpush1.msra.mxu0 0.0
    %2396 = vmatprep.subr.mxu0 0.0
    %2397 = vmatpush1.msra.mxu0 0.0
    %2398 = vmatprep.subr.mxu0 0.0
    %2399 = vmatpush1.msra.mxu0 0.0
    %2400 = vmatprep.subr.mxu0 0.0
    %2401 = vmatpush1.msra.mxu0 0.0
    %2402 = vmatprep.subr.mxu0 0.0
    %2403 = vmatpush1.msra.mxu0 0.0
    %2404 = vmatprep.subr.mxu0 0.0
    %2405 = vmatpush1.msra.mxu0 0.0
    %2406 = vmatprep.subr.mxu0 0.0
    %2407 = vmatpush1.msra.mxu0 0.0
    %2408 = vmatprep.subr.mxu0 0.0
    %2409 = vmatpush1.msra.mxu0 0.0
    %2410 = vmatprep.subr.mxu0 0.0
    %2411 = vmatpush1.msra.mxu0 0.0
    %2412 = vmatprep.subr.mxu0 0.0
    %2413 = vmatpush1.msra.mxu0 0.0
    %2414 = vmatprep.subr.mxu0 0.0
    %2415 = vmatpush1.msra.mxu0 0.0
    %2416 = vmatprep.mubr.f32.mxu0 0.0
    %2417 = vmatmul.mubr.f32.gmra.mrb[0].mxu0 %v2350
    %v2418 = vpop.f32.mrb[0].mxu0
    %v2419 = vadd.f32 0.0, %v2418
    %v2420 = vpop.f32.mrb[0].mxu0
    %2421 = vdwg.mxu0
    %2422 = vrot.lane.b32.xlu0 %v191, 32
    %v2423 = vpop.permute.xlu0 %2422
    %v2426 = vsel %vm347, %v2345, 0
    %2428 = vmatprep.subr.mxu0 0.0
    %2429 = vmatpush1.msra.mxu0 %v2423
    %2430 = vmatprep.subr.mxu0 0.0
    %2431 = vmatpush1.msra.mxu0 0.0
    %2432 = vmatprep.subr.mxu0 0.0
    %2433 = vmatpush1.msra.mxu0 0.0
    %2434 = vmatprep.subr.mxu0 0.0
    %2435 = vmatpush1.msra.mxu0 0.0
    %2436 = vmatprep.subr.mxu0 0.0
    %2437 = vmatpush1.msra.mxu0 0.0
    %2438 = vmatprep.subr.mxu0 0.0
    %2439 = vmatpush1.msra.mxu0 0.0
    %2440 = vmatprep.subr.mxu0 0.0
    %2441 = vmatpush1.msra.mxu0 0.0
    %2442 = vmatprep.subr.mxu0 0.0
    %2443 = vmatpush1.msra.mxu0 0.0
    %2444 = vmatprep.subr.mxu0 0.0
    %2445 = vmatpush1.msra.mxu0 0.0
    %2446 = vmatprep.subr.mxu0 0.0
    %2447 = vmatpush1.msra.mxu0 0.0
    %2448 = vmatprep.subr.mxu0 0.0
    %2449 = vmatpush1.msra.mxu0 0.0
    %2450 = vmatprep.subr.mxu0 0.0
    %2451 = vmatpush1.msra.mxu0 0.0
    %2452 = vmatprep.subr.mxu0 0.0
    %2453 = vmatpush1.msra.mxu0 0.0
    %2454 = vmatprep.subr.mxu0 0.0
    %2455 = vmatpush1.msra.mxu0 0.0
    %2456 = vmatprep.subr.mxu0 0.0
    %2457 = vmatpush1.msra.mxu0 0.0
    %2458 = vmatprep.subr.mxu0 0.0
    %2459 = vmatpush1.msra.mxu0 0.0
    %2460 = vmatprep.subr.mxu0 0.0
    %2461 = vmatpush1.msra.mxu0 0.0
    %2462 = vmatprep.subr.mxu0 0.0
    %2463 = vmatpush1.msra.mxu0 0.0
    %2464 = vmatprep.subr.mxu0 0.0
    %2465 = vmatpush1.msra.mxu0 0.0
    %2466 = vmatprep.subr.mxu0 0.0
    %2467 = vmatpush1.msra.mxu0 0.0
    %2468 = vmatprep.subr.mxu0 0.0
    %2469 = vmatpush1.msra.mxu0 0.0
    %2470 = vmatprep.subr.mxu0 0.0
    %2471 = vmatpush1.msra.mxu0 0.0
    %2472 = vmatprep.subr.mxu0 0.0
    %2473 = vmatpush1.msra.mxu0 0.0
    %2474 = vmatprep.subr.mxu0 0.0
    %2475 = vmatpush1.msra.mxu0 0.0
    %2476 = vmatprep.subr.mxu0 0.0
    %2477 = vmatpush1.msra.mxu0 0.0
    %2478 = vmatprep.subr.mxu0 0.0
    %2479 = vmatpush1.msra.mxu0 0.0
    %2480 = vmatprep.subr.mxu0 0.0
    %2481 = vmatpush1.msra.mxu0 0.0
    %2482 = vmatprep.subr.mxu0 0.0
    %2483 = vmatpush1.msra.mxu0 0.0
    %2484 = vmatprep.subr.mxu0 0.0
    %2485 = vmatpush1.msra.mxu0 0.0
    %2486 = vmatprep.subr.mxu0 0.0
    %2487 = vmatpush1.msra.mxu0 0.0
    %2488 = vmatprep.subr.mxu0 0.0
    %2489 = vmatpush1.msra.mxu0 0.0
    %2490 = vmatprep.subr.mxu0 0.0
    %2491 = vmatpush1.msra.mxu0 0.0
    %2492 = vmatprep.mubr.f32.mxu0 0.0
    %2493 = vmatmul.mubr.f32.gmra.mrb[0].mxu0 %v2426
    %v2494 = vpop.f32.mrb[0].mxu0
    %v2495 = vadd.f32 0.0, %v2494
    %v2496 = vpop.f32.mrb[0].mxu0
    %2497 = vdwg.mxu0
    %2498 = vrot.lane.b32.xlu0 %v109, 16
    %v2499 = vpop.permute.xlu0 %2498
    %2500 = vrot.lane.b32.xlu0 %v111, 16
    %v2501 = vpop.permute.xlu0 %2500
    %v2502 = vsel %vm194, %v2499, 0
    %v2504 = vsel %vm194, %v2501, 0
    %2506 = vmatprep.subr.mxu0 0.0
    %2507 = vmatpush1.xpose.msra.mxu0 %v2504
    %2508 = vmatprep.subr.mxu0 0.0
    %2509 = vmatpush1.xpose.msra.mxu0 0.0
    %2510 = vmatprep.subr.mxu0 0.0
    %2511 = vmatpush1.xpose.msra.mxu0 0.0
    %2512 = vmatprep.subr.mxu0 0.0
    %2513 = vmatpush1.xpose.msra.mxu0 0.0
    %2514 = vmatprep.subr.mxu0 0.0
    %2515 = vmatpush1.xpose.msra.mxu0 0.0
    %2516 = vmatprep.subr.mxu0 0.0
    %2517 = vmatpush1.xpose.msra.mxu0 0.0
    %2518 = vmatprep.subr.mxu0 0.0
    %2519 = vmatpush1.xpose.msra.mxu0 0.0
    %2520 = vmatprep.subr.mxu0 0.0
    %2521 = vmatpush1.xpose.msra.mxu0 0.0
    %2522 = vmatprep.subr.mxu0 0.0
    %2523 = vmatpush1.xpose.msra.mxu0 0.0
    %2524 = vmatprep.subr.mxu0 0.0
    %2525 = vmatpush1.xpose.msra.mxu0 0.0
    %2526 = vmatprep.subr.mxu0 0.0
    %2527 = vmatpush1.xpose.msra.mxu0 0.0
    %2528 = vmatprep.subr.mxu0 0.0
    %2529 = vmatpush1.xpose.msra.mxu0 0.0
    %2530 = vmatprep.subr.mxu0 0.0
    %2531 = vmatpush1.xpose.msra.mxu0 0.0
    %2532 = vmatprep.subr.mxu0 0.0
    %2533 = vmatpush1.xpose.msra.mxu0 0.0
    %2534 = vmatprep.subr.mxu0 0.0
    %2535 = vmatpush1.xpose.msra.mxu0 0.0
    %2536 = vmatprep.subr.mxu0 0.0
    %2537 = vmatpush1.xpose.msra.mxu0 0.0
    %2538 = vmatprep.subr.mxu0 0.0
    %2539 = vmatpush1.xpose.msra.mxu0 0.0
    %2540 = vmatprep.subr.mxu0 0.0
    %2541 = vmatpush1.xpose.msra.mxu0 0.0
    %2542 = vmatprep.subr.mxu0 0.0
    %2543 = vmatpush1.xpose.msra.mxu0 0.0
    %2544 = vmatprep.subr.mxu0 0.0
    %2545 = vmatpush1.xpose.msra.mxu0 0.0
    %2546 = vmatprep.subr.mxu0 0.0
    %2547 = vmatpush1.xpose.msra.mxu0 0.0
    %2548 = vmatprep.subr.mxu0 0.0
    %2549 = vmatpush1.xpose.msra.mxu0 0.0
    %2550 = vmatprep.subr.mxu0 0.0
    %2551 = vmatpush1.xpose.msra.mxu0 0.0
    %2552 = vmatprep.subr.mxu0 0.0
    %2553 = vmatpush1.xpose.msra.mxu0 0.0
    %2554 = vmatprep.subr.mxu0 0.0
    %2555 = vmatpush1.xpose.msra.mxu0 0.0
    %2556 = vmatprep.subr.mxu0 0.0
    %2557 = vmatpush1.xpose.msra.mxu0 0.0
    %2558 = vmatprep.subr.mxu0 0.0
    %2559 = vmatpush1.xpose.msra.mxu0 0.0
    %2560 = vmatprep.subr.mxu0 0.0
    %2561 = vmatpush1.xpose.msra.mxu0 0.0
    %2562 = vmatprep.subr.mxu0 0.0
    %2563 = vmatpush1.xpose.msra.mxu0 0.0
    %2564 = vmatprep.subr.mxu0 0.0
    %2565 = vmatpush1.xpose.msra.mxu0 0.0
    %2566 = vmatprep.subr.mxu0 0.0
    %2567 = vmatpush1.xpose.msra.mxu0 0.0
    %2568 = vmatprep.subr.mxu0 0.0
    %2569 = vmatpush1.xpose.msra.mxu0 0.0
    %2570 = vmatprep.mubr.f32.mxu0 0.0
    %2571 = vmatmul.mubr.f32.gmra.mrb[0].mxu0 %v2502
    %v2572 = vpop.f32.mrb[0].mxu0
    %v2573 = vadd.f32 0.0, %v2572
    %v2574 = vpop.f32.mrb[0].mxu0
    %2575 = vdwg.mxu0
    %2576 = vrot.lane.b32.xlu0 %v115, 16
    %v2577 = vpop.permute.xlu0 %2576
    %2578 = vrot.lane.b32.xlu0 %v117, 16
    %v2579 = vpop.permute.xlu0 %2578
    %v2580 = vsel %vm194, %v2577, 0
    %v2582 = vsel %vm194, %v2579, 0
    %2584 = vmatprep.subr.mxu0 0.0
    %2585 = vmatpush1.xpose.msra.mxu0 %v2582
    %2586 = vmatprep.subr.mxu0 0.0
    %2587 = vmatpush1.xpose.msra.mxu0 0.0
    %2588 = vmatprep.subr.mxu0 0.0
    %2589 = vmatpush1.xpose.msra.mxu0 0.0
    %2590 = vmatprep.subr.mxu0 0.0
    %2591 = vmatpush1.xpose.msra.mxu0 0.0
    %2592 = vmatprep.subr.mxu0 0.0
    %2593 = vmatpush1.xpose.msra.mxu0 0.0
    %2594 = vmatprep.subr.mxu0 0.0
    %2595 = vmatpush1.xpose.msra.mxu0 0.0
    %2596 = vmatprep.subr.mxu0 0.0
    %2597 = vmatpush1.xpose.msra.mxu0 0.0
    %2598 = vmatprep.subr.mxu0 0.0
    %2599 = vmatpush1.xpose.msra.mxu0 0.0
    %2600 = vmatprep.subr.mxu0 0.0
    %2601 = vmatpush1.xpose.msra.mxu0 0.0
    %2602 = vmatprep.subr.mxu0 0.0
    %2603 = vmatpush1.xpose.msra.mxu0 0.0
    %2604 = vmatprep.subr.mxu0 0.0
    %2605 = vmatpush1.xpose.msra.mxu0 0.0
    %2606 = vmatprep.subr.mxu0 0.0
    %2607 = vmatpush1.xpose.msra.mxu0 0.0
    %2608 = vmatprep.subr.mxu0 0.0
    %2609 = vmatpush1.xpose.msra.mxu0 0.0
    %2610 = vmatprep.subr.mxu0 0.0
    %2611 = vmatpush1.xpose.msra.mxu0 0.0
    %2612 = vmatprep.subr.mxu0 0.0
    %2613 = vmatpush1.xpose.msra.mxu0 0.0
    %2614 = vmatprep.subr.mxu0 0.0
    %2615 = vmatpush1.xpose.msra.mxu0 0.0
    %2616 = vmatprep.subr.mxu0 0.0
    %2617 = vmatpush1.xpose.msra.mxu0 0.0
    %2618 = vmatprep.subr.mxu0 0.0
    %2619 = vmatpush1.xpose.msra.mxu0 0.0
    %2620 = vmatprep.subr.mxu0 0.0
    %2621 = vmatpush1.xpose.msra.mxu0 0.0
    %2622 = vmatprep.subr.mxu0 0.0
    %2623 = vmatpush1.xpose.msra.mxu0 0.0
    %2624 = vmatprep.subr.mxu0 0.0
    %2625 = vmatpush1.xpose.msra.mxu0 0.0
    %2626 = vmatprep.subr.mxu0 0.0
    %2627 = vmatpush1.xpose.msra.mxu0 0.0
    %2628 = vmatprep.subr.mxu0 0.0
    %2629 = vmatpush1.xpose.msra.mxu0 0.0
    %2630 = vmatprep.subr.mxu0 0.0
    %2631 = vmatpush1.xpose.msra.mxu0 0.0
    %2632 = vmatprep.subr.mxu0 0.0
    %2633 = vmatpush1.xpose.msra.mxu0 0.0
    %2634 = vmatprep.subr.mxu0 0.0
    %2635 = vmatpush1.xpose.msra.mxu0 0.0
    %2636 = vmatprep.subr.mxu0 0.0
    %2637 = vmatpush1.xpose.msra.mxu0 0.0
    %2638 = vmatprep.subr.mxu0 0.0
    %2639 = vmatpush1.xpose.msra.mxu0 0.0
    %2640 = vmatprep.subr.mxu0 0.0
    %2641 = vmatpush1.xpose.msra.mxu0 0.0
    %2642 = vmatprep.subr.mxu0 0.0
    %2643 = vmatpush1.xpose.msra.mxu0 0.0
    %2644 = vmatprep.subr.mxu0 0.0
    %2645 = vmatpush1.xpose.msra.mxu0 0.0
    %2646 = vmatprep.subr.mxu0 0.0
    %2647 = vmatpush1.xpose.msra.mxu0 0.0
    %2648 = vmatprep.mubr.f32.mxu0 0.0
    %2649 = vmatmul.mubr.f32.gmra.mrb[0].mxu0 %v2580
    %v2650 = vpop.f32.mrb[0].mxu0
    %v2651 = vadd.f32 0.0, %v2650
    %v2652 = vpop.f32.mrb[0].mxu0
    %2653 = vdwg.mxu0
    %v2654 = vsel %vm347, %v2573, -inf
    %2655 = vmax.xlane.f32.xlu0 %v2654
    %v2656 = vpop.xlane.xlu0 %2655
    %v2657 = vsel %vm347, %v2651, -inf
    %2658 = vmax.xlane.f32.xlu0 %v2657
    %v2659 = vpop.xlane.xlu0 %2658
    %v2660 = vsub.f32 %v2573, %v2656
    %v2661 = vsub.f32 %v2651, %v2659
    %v2662 = vmul.f32 %v2660, 1.442695
    %v2663 = vpow.pop %v2662
    %v2664 = vmul.f32 %v2661, 1.442695
    %v2665 = vpow.pop %v2664
    %v2666 = vsel %vm347, %v2663, 0.0
    %2667 = vadd.xlane.f32.xlu0 %v2666
    %v2668 = vpop.xlane.xlu0 %2667
    %v2669 = vsel %vm347, %v2665, 0.0
    %2670 = vadd.xlane.f32.xlu0 %v2669
    %v2671 = vpop.xlane.xlu0 %2670
    %v2672 = vrcp.pop %v2668
    %v2673 = vrcp.pop %v2671
    %v2674 = vmul.f32 %v2663, %v2672
    %v2675 = vmul.f32 %v2665, %v2673
    %2676 = vrot.lane.b32.xlu0 %v186, 16
    %v2677 = vpop.permute.xlu0 %2676
    %v2680 = vsel %vm347, %v2674, 0
    %2682 = vmatprep.subr.mxu0 0.0
    %2683 = vmatpush1.msra.mxu0 %v2677
    %2684 = vmatprep.subr.mxu0 0.0
    %2685 = vmatpush1.msra.mxu0 0.0
    %2686 = vmatprep.subr.mxu0 0.0
    %2687 = vmatpush1.msra.mxu0 0.0
    %2688 = vmatprep.subr.mxu0 0.0
    %2689 = vmatpush1.msra.mxu0 0.0
    %2690 = vmatprep.subr.mxu0 0.0
    %2691 = vmatpush1.msra.mxu0 0.0
    %2692 = vmatprep.subr.mxu0 0.0
    %2693 = vmatpush1.msra.mxu0 0.0
    %2694 = vmatprep.subr.mxu0 0.0
    %2695 = vmatpush1.msra.mxu0 0.0
    %2696 = vmatprep.subr.mxu0 0.0
    %2697 = vmatpush1.msra.mxu0 0.0
    %2698 = vmatprep.subr.mxu0 0.0
    %2699 = vmatpush1.msra.mxu0 0.0
    %2700 = vmatprep.subr.mxu0 0.0
    %2701 = vmatpush1.msra.mxu0 0.0
    %2702 = vmatprep.subr.mxu0 0.0
    %2703 = vmatpush1.msra.mxu0 0.0
    %2704 = vmatprep.subr.mxu0 0.0
    %2705 = vmatpush1.msra.mxu0 0.0
    %2706 = vmatprep.subr.mxu0 0.0
    %2707 = vmatpush1.msra.mxu0 0.0
    %2708 = vmatprep.subr.mxu0 0.0
    %2709 = vmatpush1.msra.mxu0 0.0
    %2710 = vmatprep.subr.mxu0 0.0
    %2711 = vmatpush1.msra.mxu0 0.0
    %2712 = vmatprep.subr.mxu0 0.0
    %2713 = vmatpush1.msra.mxu0 0.0
    %2714 = vmatprep.subr.mxu0 0.0
    %2715 = vmatpush1.msra.mxu0 0.0
    %2716 = vmatprep.subr.mxu0 0.0
    %2717 = vmatpush1.msra.mxu0 0.0
    %2718 = vmatprep.subr.mxu0 0.0
    %2719 = vmatpush1.msra.mxu0 0.0
    %2720 = vmatprep.subr.mxu0 0.0
    %2721 = vmatpush1.msra.mxu0 0.0
    %2722 = vmatprep.subr.mxu0 0.0
    %2723 = vmatpush1.msra.mxu0 0.0
    %2724 = vmatprep.subr.mxu0 0.0
    %2725 = vmatpush1.msra.mxu0 0.0
    %2726 = vmatprep.subr.mxu0 0.0
    %2727 = vmatpush1.msra.mxu0 0.0
    %2728 = vmatprep.subr.mxu0 0.0
    %2729 = vmatpush1.msra.mxu0 0.0
    %2730 = vmatprep.subr.mxu0 0.0
    %2731 = vmatpush1.msra.mxu0 0.0
    %2732 = vmatprep.subr.mxu0 0.0
    %2733 = vmatpush1.msra.mxu0 0.0
    %2734 = vmatprep.subr.mxu0 0.0
    %2735 = vmatpush1.msra.mxu0 0.0
    %2736 = vmatprep.subr.mxu0 0.0
    %2737 = vmatpush1.msra.mxu0 0.0
    %2738 = vmatprep.subr.mxu0 0.0
    %2739 = vmatpush1.msra.mxu0 0.0
    %2740 = vmatprep.subr.mxu0 0.0
    %2741 = vmatpush1.msra.mxu0 0.0
    %2742 = vmatprep.subr.mxu0 0.0
    %2743 = vmatpush1.msra.mxu0 0.0
    %2744 = vmatprep.subr.mxu0 0.0
    %2745 = vmatpush1.msra.mxu0 0.0
    %2746 = vmatprep.mubr.f32.mxu0 0.0
    %2747 = vmatmul.mubr.f32.gmra.mrb[0].mxu0 %v2680
    %v2748 = vpop.f32.mrb[0].mxu0
    %v2749 = vadd.f32 0.0, %v2748
    %v2750 = vpop.f32.mrb[0].mxu0
    %2751 = vdwg.mxu0
    %2752 = vrot.lane.b32.xlu0 %v191, 16
    %v2753 = vpop.permute.xlu0 %2752
    %v2756 = vsel %vm347, %v2675, 0
    %2758 = vmatprep.subr.mxu0 0.0
    %2759 = vmatpush1.msra.mxu0 %v2753
    %2760 = vmatprep.subr.mxu0 0.0
    %2761 = vmatpush1.msra.mxu0 0.0
    %2762 = vmatprep.subr.mxu0 0.0
    %2763 = vmatpush1.msra.mxu0 0.0
    %2764 = vmatprep.subr.mxu0 0.0
    %2765 = vmatpush1.msra.mxu0 0.0
    %2766 = vmatprep.subr.mxu0 0.0
    %2767 = vmatpush1.msra.mxu0 0.0
    %2768 = vmatprep.subr.mxu0 0.0
    %2769 = vmatpush1.msra.mxu0 0.0
    %2770 = vmatprep.subr.mxu0 0.0
    %2771 = vmatpush1.msra.mxu0 0.0
    %2772 = vmatprep.subr.mxu0 0.0
    %2773 = vmatpush1.msra.mxu0 0.0
    %2774 = vmatprep.subr.mxu0 0.0
    %2775 = vmatpush1.msra.mxu0 0.0
    %2776 = vmatprep.subr.mxu0 0.0
    %2777 = vmatpush1.msra.mxu0 0.0
    %2778 = vmatprep.subr.mxu0 0.0
    %2779 = vmatpush1.msra.mxu0 0.0
    %2780 = vmatprep.subr.mxu0 0.0
    %2781 = vmatpush1.msra.mxu0 0.0
    %2782 = vmatprep.subr.mxu0 0.0
    %2783 = vmatpush1.msra.mxu0 0.0
    %2784 = vmatprep.subr.mxu0 0.0
    %2785 = vmatpush1.msra.mxu0 0.0
    %2786 = vmatprep.subr.mxu0 0.0
    %2787 = vmatpush1.msra.mxu0 0.0
    %2788 = vmatprep.subr.mxu0 0.0
    %2789 = vmatpush1.msra.mxu0 0.0
    %2790 = vmatprep.subr.mxu0 0.0
    %2791 = vmatpush1.msra.mxu0 0.0
    %2792 = vmatprep.subr.mxu0 0.0
    %2793 = vmatpush1.msra.mxu0 0.0
    %2794 = vmatprep.subr.mxu0 0.0
    %2795 = vmatpush1.msra.mxu0 0.0
    %2796 = vmatprep.subr.mxu0 0.0
    %2797 = vmatpush1.msra.mxu0 0.0
    %2798 = vmatprep.subr.mxu0 0.0
    %2799 = vmatpush1.msra.mxu0 0.0
    %2800 = vmatprep.subr.mxu0 0.0
    %2801 = vmatpush1.msra.mxu0 0.0
    %2802 = vmatprep.subr.mxu0 0.0
    %2803 = vmatpush1.msra.mxu0 0.0
    %2804 = vmatprep.subr.mxu0 0.0
    %2805 = vmatpush1.msra.mxu0 0.0
    %2806 = vmatprep.subr.mxu0 0.0
    %2807 = vmatpush1.msra.mxu0 0.0
    %2808 = vmatprep.subr.mxu0 0.0
    %2809 = vmatpush1.msra.mxu0 0.0
    %2810 = vmatprep.subr.mxu0 0.0
    %2811 = vmatpush1.msra.mxu0 0.0
    %2812 = vmatprep.subr.mxu0 0.0
    %2813 = vmatpush1.msra.mxu0 0.0
    %2814 = vmatprep.subr.mxu0 0.0
    %2815 = vmatpush1.msra.mxu0 0.0
    %2816 = vmatprep.subr.mxu0 0.0
    %2817 = vmatpush1.msra.mxu0 0.0
    %2818 = vmatprep.subr.mxu0 0.0
    %2819 = vmatpush1.msra.mxu0 0.0
    %2820 = vmatprep.subr.mxu0 0.0
    %2821 = vmatpush1.msra.mxu0 0.0
    %2822 = vmatprep.mubr.f32.mxu0 0.0
    %2823 = vmatmul.mubr.f32.gmra.mrb[0].mxu0 %v2756
    %v2824 = vpop.f32.mrb[0].mxu0
    %v2825 = vadd.f32 0.0, %v2824
    %v2826 = vpop.f32.mrb[0].mxu0
    %2827 = vdwg.mxu0
    %2828 = vst.msk [vmem:[#allocation4] sm:$0xff] %vm347, %v368
    %2829 = vst.msk [vmem:[#allocation4 + $0x8] sm:$0xff] %vm347, %v692
    %2830 = vst.msk [vmem:[#allocation4 + $0x10] sm:$0xff] %vm347, %v1024
    %2831 = vst.msk [vmem:[#allocation4 + $0x18] sm:$0xff] %vm347, %v1354
    %2832 = vst.msk [vmem:[#allocation4 + $0x20] sm:$0xff] %vm347, %v1684
    %2833 = vst.msk [vmem:[#allocation4 + $0x28] sm:$0xff] %vm347, %v2014
    %2834 = vst.msk [vmem:[#allocation4 + $0x30] sm:$0xff] %vm347, %v2344
    %2835 = vst.msk [vmem:[#allocation4 + $0x38] sm:$0xff] %vm347, %v2674
    %2836 = vst.msk [vmem:[#allocation4 + $0x40] sm:$0xff] %vm347, %v369
    %2837 = vst.msk [vmem:[#allocation4 + $0x48] sm:$0xff] %vm347, %v693
    %2838 = vst.msk [vmem:[#allocation4 + $0x50] sm:$0xff] %vm347, %v1025
    %2839 = vst.msk [vmem:[#allocation4 + $0x58] sm:$0xff] %vm347, %v1355
    %2840 = vst.msk [vmem:[#allocation4 + $0x60] sm:$0xff] %vm347, %v1685
    %2841 = vst.msk [vmem:[#allocation4 + $0x68] sm:$0xff] %vm347, %v2015
    %2842 = vst.msk [vmem:[#allocation4 + $0x70] sm:$0xff] %vm347, %v2345
    %2843 = vst.msk [vmem:[#allocation4 + $0x78] sm:$0xff] %vm347, %v2675
    %2846 = vrot.lane.b32.xlu0 %v768, 16
    %v2847 = vpop.permute.xlu0 %2846
    %2848 = vrot.lane.b32.xlu0 %v845, 16
    %v2849 = vpop.permute.xlu0 %2848
    %2854 = vrot.lane.b32.xlu0 %v1099, 32
    %v2855 = vpop.permute.xlu0 %2854
    %2856 = vrot.lane.b32.xlu0 %v1175, 32
    %v2857 = vpop.permute.xlu0 %2856
    %2862 = vrot.lane.b32.xlu0 %v1429, 48
    %v2863 = vpop.permute.xlu0 %2862
    %2864 = vrot.lane.b32.xlu0 %v1505, 48
    %v2865 = vpop.permute.xlu0 %2864
    %2870 = vrot.lane.b32.xlu0 %v1759, 64
    %v2871 = vpop.permute.xlu0 %2870
    %2872 = vrot.lane.b32.xlu0 %v1835, 64
    %v2873 = vpop.permute.xlu0 %2872
    %2878 = vrot.lane.b32.xlu0 %v2089, 80
    %v2879 = vpop.permute.xlu0 %2878
    %2880 = vrot.lane.b32.xlu0 %v2165, 80
    %v2881 = vpop.permute.xlu0 %2880
    %2886 = vrot.lane.b32.xlu0 %v2419, 96
    %v2887 = vpop.permute.xlu0 %2886
    %2888 = vrot.lane.b32.xlu0 %v2495, 96
    %v2889 = vpop.permute.xlu0 %2888
    %2894 = vrot.lane.b32.xlu0 %v2749, 112
    %v2895 = vpop.permute.xlu0 %2894
    %2896 = vrot.lane.b32.xlu0 %v2825, 112
    %v2897 = vpop.permute.xlu0 %2896
    %v2900 = vsel %vm194, %v440, %v2847
    %v2901 = vsel %vm194, %v513, %v2849
    %v2902 = vsel %vm35, %v2900, %v2855
    %v2903 = vsel %vm35, %v2901, %v2857
    %vm2904 = vcmask 392192
    %v2905 = vsel %vm2904, %v2902, %v2863
    %v2906 = vsel %vm2904, %v2903, %v2865
    %vm2907 = vcmask 523264
    %v2908 = vsel %vm2907, %v2905, %v2871
    %v2909 = vsel %vm2907, %v2906, %v2873
    %vm2910 = vcmask 654336
    %v2911 = vsel %vm2910, %v2908, %v2879
    %v2912 = vsel %vm2910, %v2909, %v2881
    %vm2913 = vcmask 785408
    %v2914 = vsel %vm2913, %v2911, %v2887
    %v2915 = vsel %vm2913, %v2912, %v2889
    %vm2916 = vcmask 916480
    %v2917 = vsel %vm2916, %v2914, %v2895
    %v2918 = vsel %vm2916, %v2915, %v2897
    %v2919 = vld [vmem:[%s2] sm:$0xff]
    %v2920 = vld [vmem:[%s2 + $0x8] sm:$0xff]
    %v2921 = vld [vmem:[%s2 + $0x10] sm:$0xff]
    %v2922 = vld [vmem:[%s2 + $0x18] sm:$0xff]
    %v2923 = vld [vmem:[%s2 + $0x20] sm:$0xff]
    %v2924 = vld [vmem:[%s2 + $0x28] sm:$0xff]
    %v2925 = vld [vmem:[%s2 + $0x30] sm:$0xff]
    %v2926 = vld [vmem:[%s2 + $0x38] sm:$0xff]
    %v2927 = vld [vmem:[%s2 + $0x40] sm:$0xff]
    %v2928 = vld [vmem:[%s2 + $0x48] sm:$0xff]
    %v2929 = vld [vmem:[%s2 + $0x50] sm:$0xff]
    %v2930 = vld [vmem:[%s2 + $0x58] sm:$0xff]
    %v2931 = vld [vmem:[%s2 + $0x60] sm:$0xff]
    %v2932 = vld [vmem:[%s2 + $0x68] sm:$0xff]
    %v2933 = vld [vmem:[%s2 + $0x70] sm:$0xff]
    %v2934 = vld [vmem:[%s2 + $0x78] sm:$0xff]
    %v2935 = vld [vmem:[%s3] sm:$0x1]
    %v2937 = vlaneseq
    %v2938 = vshrl.u32 %v2937, 7
    %v2939 = vsub.s32 0, %v2938
    %v2940 = vrot.slane %v2935, %v2939
    %2942 = vmatprep.subr.mxu0 0.0
    %2943 = vmatpush1.msra.mxu0 %v2919
    %2944 = vmatprep.subr.mxu0 0.0
    %2945 = vmatpush1.msra.mxu0 %v2920
    %2946 = vmatprep.subr.mxu0 0.0
    %2947 = vmatpush1.msra.mxu0 %v2921
    %2948 = vmatprep.subr.mxu0 0.0
    %2949 = vmatpush1.msra.mxu0 %v2922
    %2950 = vmatprep.subr.mxu0 0.0
    %2951 = vmatpush1.msra.mxu0 %v2923
    %2952 = vmatprep.subr.mxu0 0.0
    %2953 = vmatpush1.msra.mxu0 %v2924
    %2954 = vmatprep.subr.mxu0 0.0
    %2955 = vmatpush1.msra.mxu0 %v2925
    %2956 = vmatprep.subr.mxu0 0.0
    %2957 = vmatpush1.msra.mxu0 %v2926
    %2958 = vmatprep.subr.mxu0 0.0
    %2959 = vmatpush1.msra.mxu0 %v2927
    %2960 = vmatprep.subr.mxu0 0.0
    %2961 = vmatpush1.msra.mxu0 %v2928
    %2962 = vmatprep.subr.mxu0 0.0
    %2963 = vmatpush1.msra.mxu0 %v2929
    %2964 = vmatprep.subr.mxu0 0.0
    %2965 = vmatpush1.msra.mxu0 %v2930
    %2966 = vmatprep.subr.mxu0 0.0
    %2967 = vmatpush1.msra.mxu0 %v2931
    %2968 = vmatprep.subr.mxu0 0.0
    %2969 = vmatpush1.msra.mxu0 %v2932
    %2970 = vmatprep.subr.mxu0 0.0
    %2971 = vmatpush1.msra.mxu0 %v2933
    %2972 = vmatprep.subr.mxu0 0.0
    %2973 = vmatpush1.msra.mxu0 %v2934
    %2974 = vmatprep.subr.mxu0 0.0
    %2975 = vmatpush1.msra.mxu0 0.0
    %2976 = vmatprep.subr.mxu0 0.0
    %2977 = vmatpush1.msra.mxu0 0.0
    %2978 = vmatprep.subr.mxu0 0.0
    %2979 = vmatpush1.msra.mxu0 0.0
    %2980 = vmatprep.subr.mxu0 0.0
    %2981 = vmatpush1.msra.mxu0 0.0
    %2982 = vmatprep.subr.mxu0 0.0
    %2983 = vmatpush1.msra.mxu0 0.0
    %2984 = vmatprep.subr.mxu0 0.0
    %2985 = vmatpush1.msra.mxu0 0.0
    %2986 = vmatprep.subr.mxu0 0.0
    %2987 = vmatpush1.msra.mxu0 0.0
    %2988 = vmatprep.subr.mxu0 0.0
    %2989 = vmatpush1.msra.mxu0 0.0
    %2990 = vmatprep.subr.mxu0 0.0
    %2991 = vmatpush1.msra.mxu0 0.0
    %2992 = vmatprep.subr.mxu0 0.0
    %2993 = vmatpush1.msra.mxu0 0.0
    %2994 = vmatprep.subr.mxu0 0.0
    %2995 = vmatpush1.msra.mxu0 0.0
    %2996 = vmatprep.subr.mxu0 0.0
    %2997 = vmatpush1.msra.mxu0 0.0
    %2998 = vmatprep.subr.mxu0 0.0
    %2999 = vmatpush1.msra.mxu0 0.0
    %3000 = vmatprep.subr.mxu0 0.0
    %3001 = vmatpush1.msra.mxu0 0.0
    %3002 = vmatprep.subr.mxu0 0.0
    %3003 = vmatpush1.msra.mxu0 0.0
    %3004 = vmatprep.subr.mxu0 0.0
    %3005 = vmatpush1.msra.mxu0 0.0
    %3006 = vmatprep.mubr.f32.mxu0 0.0
    %3007 = vmatmul.mubr.f32.gmra.mrb[0].mxu0 %v2917
    %v3008 = vpop.f32.mrb[0].mxu0
    %v3009 = vadd.f32 %v2940, %v3008
    %v3010 = vpop.f32.mrb[0].mxu0
    %3011 = vmatprep.mubr.f32.mxu0 0.0
    %3012 = vmatmul.mubr.f32.gmra.mrb[0].mxu0 %v2918
    %v3013 = vpop.f32.mrb[0].mxu0
    %v3014 = vadd.f32 %v2940, %v3013
    %v3015 = vpop.f32.mrb[0].mxu0
    %3016 = vdwg.mxu0
    %3017 = vst.msk [vmem:[#allocation2] sm:$0xff] %vm35, %v3009
    %3018 = vst.msk [vmem:[#allocation2 + $0x8] sm:$0xff] %vm35, %v3014
    // Predicated region
    $region18: #{tpu_custom_call.1} parent=1 // pred_check
      _
    $region19: #{tpu_custom_call.1} parent=1 // pred_check_branch
      %3020 = sbr.rel (0) target = $region21
    $region20: #{tpu_custom_call.1} parent=1 // pred_region
      %s3022 = ssub.s32 256, 256
      %3023 = vsyncadd [#allocation3], %s3022
      %s3024 = sshll.u32 [#allocation2], 4
      %s3025 = int_to_ptr.vmem [resolvable:$true] %s3024
      %3030 = dma.vmem_to_hbm [thread:$0]  %s3025, 256, %s4, [#allocation3], 128, 128, 8
    $region21: #{tpu_custom_call.1} parent=1 // pred_fallthru
      _
    // Predicated region
    $region22: #{tpu_custom_call.1} parent=1 // pred_check
      _
    $region23: #{tpu_custom_call.1} parent=1 // pred_check_branch
      %3032 = sbr.rel (0) target = $region25
    $region24: #{tpu_custom_call.1} parent=1 // pred_region
      %s3034 = ssub.s32 2048, 2048
      %3035 = vsyncadd [#allocation5], %s3034
      %s3036 = sshll.u32 [#allocation4], 4
      %s3037 = int_to_ptr.vmem [resolvable:$true] %s3036
      %3042 = dma.vmem_to_hbm [thread:$0]  %s3037, 2048, %s5, [#allocation5], 128, 128, 8
    $region25: #{tpu_custom_call.1} parent=1 // pred_fallthru
      _
    // Predicated region
    $region26: #{tpu_custom_call.1} parent=1 // pred_check
      _
    $region27: #{tpu_custom_call.1} parent=1 // pred_check_branch
      %3044 = sbr.rel (0) target = $region29
    $region28: #{tpu_custom_call.1} parent=1 // pred_region
      %3045 = dma.done [#allocation3], 256
    $region29: #{tpu_custom_call.1} parent=1 // pred_fallthru
      _
    // Predicated region
    $region30: #{tpu_custom_call.1} parent=1 // pred_check
      _
    $region31: #{tpu_custom_call.1} parent=1 // pred_check_branch
      %3047 = sbr.rel (0) target = $region33
    $region32: #{tpu_custom_call.1} parent=1 // pred_region
      %3048 = dma.done [#allocation5], 2048
    $region33: #{tpu_custom_call.1} parent=1 // pred_fallthru
      _
    %3049 = vsyncpa [#allocation3], 1
    %3050 = vsyncpa [#allocation5], 1

</llo_original>
